<compile_context>
chip_gen: v6e
topology: v6e:2x2x1
jax: 0.10.0
libtpu: 0.0.40
codegen_flags: <defaults>
</compile_context>

<pallas_src>
import jax
import jax.numpy as jnp
from jax.experimental import pallas as pl
from jax.experimental.pallas import tpu as pltpu

# ----------------------------- static sizes --------------------------------
B, C, T = 2, 16, 32          # batch, EEG channels, time steps
H, H2, NC = 64, 32, 4        # hidden_dim, hidden_dim // 2, num_classes
F1, F2 = 16, 32              # conv feature widths
KT, PAD = 5, 2               # temporal kernel size / symmetric padding
CHUNK = 8                    # memory chunk size
NCHUNK = T // CHUNK
MEM_LR = 0.01                # test-time memory learning rate
BT = B * T
LANES = 128                  # lane-dense packing width
OUT_ROWS = 8                 # sublane-pad the output -> full-tile unmasked store
SLAB_W = 3 * H               # 192 lanes (widest packed matrix: fused W_qkv)

# --------------- single weight-slab layout (row offsets, all %8 == 0) --------
R_W1, R_W2, R_P1, R_P2 = 0, 16, 96, 128
R_QKV, R_C1, R_C2, R_C3 = 192, 256, 320, 384
R_VEC = 416
VEC_LAYOUT = (("b1", F1), ("b2", F2),
              ("p1b", H), ("ln1g", H), ("ln1b", H),
              ("p2b", H), ("ln2g", H), ("ln2b", H),
              ("c1b", H), ("cl1g", H), ("cl1b", H),
              ("c2b", H2), ("cl2g", H2), ("cl2b", H2),
              ("c3b", NC))
VEC_IDX = {name: i for i, (name, _) in enumerate(VEC_LAYOUT)}
SLAB_ROWS = 432              # R_VEC + 15 vector rows, padded up to a multiple of 8


# ----------------------------- kernel helpers -------------------------------
def _elu(x):
    return jnp.where(x > 0, x, jnp.exp(x) - 1.0)


def _gelu(x):
    # exact (erf) GELU, matching PyTorch nn.GELU() default
    return 0.5 * x * (1.0 + jax.lax.erf(x * 0.7071067811865476))


def _layernorm(x, g, b, eps=1e-5):
    mu = jnp.mean(x, axis=-1, keepdims=True)
    var = jnp.mean((x - mu) ** 2, axis=-1, keepdims=True)
    return (x - mu) * jax.lax.rsqrt(var + eps) * g + b


# ------------------------------- kernel -------------------------------------
def titans_kernel(x_ref, w_ref, out_ref, qkv_scr):
    def vrow(name, width):
        r = R_VEC + VEC_IDX[name]
        return w_ref[r:r + 1, 0:width]             # (1, width) row of the packed vectors

    x = x_ref[...]                                  # (B*T, C), batch fused on sublanes

    # --- spatial conv: Conv2d(1,16,(C,1)) + BN(eval; scale folded into weights) + ELU
    h1 = _elu(jnp.dot(x, w_ref[R_W1:R_W1 + C, 0:F1],
                      preferred_element_type=jnp.float32) + vrow("b1", F1))    # (BT, F1)

    # --- temporal conv: Conv2d(16,32,(1,5), pad=(0,2)) + BN(folded) + ELU
    #     tap-wise accumulation: 5 small independent MXU pushes, no lane-offset concat
    row = jax.lax.broadcasted_iota(jnp.int32, (BT, 1), 0)
    t_idx = (row & (T - 1)) if (T & (T - 1)) == 0 else (row % T)   # within-trial time
    acc2 = jnp.zeros((BT, F2), jnp.float32)
    for k in range(KT):
        s = k - PAD                                 # tap k reads h1 at time t + s
        if s == 0:
            tap_in = h1
        else:
            shifted = pltpu.roll(h1, shift=(-s) % BT, axis=0)      # row r <- h1[r + s]
            valid = jnp.logical_and(t_idx + s >= 0, t_idx + s < T)
            tap_in = jnp.where(valid, shifted, 0.0)                # zero-pad across trials
        acc2 = acc2 + jnp.dot(tap_in, w_ref[R_W2 + k * F1:R_W2 + (k + 1) * F1, 0:F2],
                              preferred_element_type=jnp.float32)
    h2 = _elu(acc2 + vrow("b2", F2))                               # (BT, F2)

    # --- input projection: (Linear -> LN -> GELU) x 2 (dropout = eval identity)
    z = jnp.dot(h2, w_ref[R_P1:R_P1 + F2, 0:H],
                preferred_element_type=jnp.float32) + vrow("p1b", H)
    z = _gelu(_layernorm(z, vrow("ln1g", H), vrow("ln1b", H)))
    z = jnp.dot(z, w_ref[R_P2:R_P2 + H, 0:H],
                preferred_element_type=jnp.float32) + vrow("p2b", H)
    z = _gelu(_layernorm(z, vrow("ln2g", H), vrow("ln2b", H)))     # (BT, H)

    # --- fused Q/K/V projection (one MXU push); parked in VMEM scratch so the
    #     unrolled memory loop reads cheap per-chunk vlds instead of long-lived vregs.
    qkv_scr[...] = jnp.dot(z, w_ref[R_QKV:R_QKV + H, 0:3 * H],
                           preferred_element_type=jnp.float32)     # (BT, 3H)

    # --- simplified Titans chunked linear associative memory, both trials lane-packed.
    # TODO(synk): real titans-pytorch NeuralMemory (MLP memory, momentum, adaptive LR)
    # not available; this is retrieve-then-one-SGD-step per chunk on a linear memory.

    # K transposed + chunk-permuted ONCE, off the serial M-dependent chain, so the
    # per-chunk dM matmul is a standard last/first-dim contraction (no in-loop transpose).
    k_perm = jnp.concatenate(
        [qkv_scr[b * T + c * CHUNK: b * T + (c + 1) * CHUNK, H:2 * H]
         for c in range(NCHUNK) for b in range(B)], axis=0)        # (BT, H)
    kT_perm = jnp.transpose(k_perm, (1, 0))                        # (H, BT)

    lane = jax.lax.broadcasted_iota(jnp.int32, (2 * CHUNK, 2 * H), 1)
    subl = jax.lax.broadcasted_iota(jnp.int32, (2 * CHUNK, 2 * H), 0)
    half_mask = jnp.where((subl < CHUNK) == (lane < H), 1.0, 0.0)  # each trial's lane half

    zpad = jnp.zeros((CHUNK, H), jnp.float32)
    M_both = jnp.zeros((H, 2 * H), jnp.float32)                    # [M0 | M1] lane-packed
    P = jnp.zeros((2 * CHUNK, 2 * H), jnp.float32)                 # retrieved accumulator

    for c in range(NCHUNK):                        # true serial dependence over chunks
        r0 = c * CHUNK                             # trial 0 rows
        r1 = T + c * CHUNK                         # trial 1 rows
        q0 = qkv_scr[r0:r0 + CHUNK, 0:H]
        q1 = qkv_scr[r1:r1 + CHUNK, 0:H]
        k0 = qkv_scr[r0:r0 + CHUNK, H:2 * H]
        k1 = qkv_scr[r1:r1 + CHUNK, H:2 * H]
        v0 = qkv_scr[r0:r0 + CHUNK, 2 * H:3 * H]
        v1 = qkv_scr[r1:r1 + CHUNK, 2 * H:3 * H]
        qk = jnp.concatenate([q0, q1, k0, k1], axis=0)             # (32, H)
        v_placed = jnp.concatenate(
            [jnp.concatenate([v0, zpad], axis=1),
             jnp.concatenate([zpad, v1], axis=1)], axis=0)         # (16, 128)

        # one 128-lane retrieval push: [q0;q1;k0;k1] @ [M0 | M1]
        R = jnp.dot(qk, M_both, preferred_element_type=jnp.float32)  # (32, 128)
        P = P + R[0:2 * CHUNK, :]                                  # q@M halves accumulate
        E = R[2 * CHUNK:4 * CHUNK, :] * half_mask - v_placed       # masked (k@M - v)

        # one 128-lane update push: [k0_c^T | k1_c^T] @ E -> [dM0 | dM1]
        dM = jnp.dot(kT_perm[:, c * 2 * CHUNK:(c + 1) * 2 * CHUNK], E,
                     preferred_element_type=jnp.float32)           # (H, 2H)
        M_both = M_both - MEM_LR * dM

    pooled0 = jnp.sum(P[0:CHUNK, 0:H], axis=0, keepdims=True)              # trial 0
    pooled1 = jnp.sum(P[CHUNK:2 * CHUNK, H:2 * H], axis=0, keepdims=True)  # trial 1
    pooled = jnp.concatenate(
        [pooled0, pooled1, jnp.zeros((OUT_ROWS - B, H), jnp.float32)],
        axis=0) * (1.0 / T)                                        # (8, H) mean over time

    # --- classifier head on a full (8, H) sublane tile; lane-dense (8, 128) store
    y = jnp.dot(pooled, w_ref[R_C1:R_C1 + H, 0:H],
                preferred_element_type=jnp.float32) + vrow("c1b", H)
    y = _gelu(_layernorm(y, vrow("cl1g", H), vrow("cl1b", H)))
    y = jnp.dot(y, w_ref[R_C2:R_C2 + H, 0:H2],
                preferred_element_type=jnp.float32) + vrow("c2b", H2)
    y = _gelu(_layernorm(y, vrow("cl2g", H2), vrow("cl2b", H2)))
    y = jnp.dot(y, w_ref[R_C3:R_C3 + H2, 0:LANES],
                preferred_element_type=jnp.float32) + vrow("c3b", LANES)
    out_ref[...] = y                                               # (8, 128) full-tile vst


# ------------------------------- wrappers ------------------------------------
def prepare_params(p):
    """One-time weight prep (NOT in the per-call jit): fold BN eval scales into the conv
    weights, fuse Wq/Wk/Wv, lane-pad the classifier output weight, and pack every matrix
    + small vector into a single (SLAB_ROWS, 192) f32 slab -> one DMA for all weights."""
    w1s = (p["w1"] * p["s1"]).astype(jnp.float32)                              # (C, F1)
    w2s = (p["w2"] * p["s2"].reshape(1, 1, F2)).astype(jnp.float32).reshape(KT * F1, F2)
    wqkv = jnp.concatenate([p["wq"], p["wk"], p["wv"]], axis=1).astype(jnp.float32)
    c3p = jnp.zeros((H2, LANES), jnp.float32).at[:, :NC].set(p["c3w"])

    slab = jnp.zeros((SLAB_ROWS, SLAB_W), jnp.float32)
    slab = slab.at[R_W1:R_W1 + C, 0:F1].set(w1s)
    slab = slab.at[R_W2:R_W2 + KT * F1, 0:F2].set(w2s)
    slab = slab.at[R_P1:R_P1 + F2, 0:H].set(p["p1w"])
    slab = slab.at[R_P2:R_P2 + H, 0:H].set(p["p2w"])
    slab = slab.at[R_QKV:R_QKV + H, 0:3 * H].set(wqkv)
    slab = slab.at[R_C1:R_C1 + H, 0:H].set(p["c1w"])
    slab = slab.at[R_C2:R_C2 + H, 0:H2].set(p["c2w"])
    slab = slab.at[R_C3:R_C3 + H2, 0:LANES].set(c3p)
    for name, width in VEC_LAYOUT:
        r = R_VEC + VEC_IDX[name]
        slab = slab.at[r:r + 1, 0:width].set(p[name].reshape(1, -1).astype(jnp.float32))
    return jax.device_put(slab)


@jax.jit
def titans_eeg_forward(x, wslab):
    """x: (B, C, T) float32 (like the PyTorch module input); wslab: prepare_params()."""
    xt = jnp.transpose(x, (0, 2, 1)).astype(jnp.float32).reshape(BT, C)        # (B*T, C)
    out = pl.pallas_call(
        titans_kernel,
        out_shape=jax.ShapeDtypeStruct((OUT_ROWS, LANES), jnp.float32),
        # No grid: total live data (~0.4 MB) << VMEM on v5e/v6e/v7x, so a single
        # whole-block invocation with just 2 input DMAs avoids pipeline overhead.
        scratch_shapes=[pltpu.VMEM((BT, 3 * H), jnp.float32)],
    )(xt, wslab)
    return out[:B, :NC]                                                        # (B, NC)


# --------------------------- deterministic params ----------------------------
def init_params(key):
    """Deterministic params. s1/b1, s2/b2 are the eval-mode folded BatchNorm
    scale/shift (scale = gamma/sqrt(running_var+eps), shift = beta - mean*scale);
    at default init stats that is scale = 1/sqrt(1+eps), shift = 0."""
    keys = jax.random.split(key, 16)

    def nrm(k, shape, scale=0.1):
        return jax.random.normal(k, shape, jnp.float32) * scale

    eps = 1e-5
    bn_scale = 1.0 / float(jnp.sqrt(1.0 + eps))
    p = {}
    p["w1"] = nrm(keys[0], (C, F1))                       # Conv2d(1,16,(C,1)) as matmul
    p["s1"] = jnp.full((1, F1), bn_scale, jnp.float32)    # folded BatchNorm2d(16)
    p["b1"] = jnp.zeros((1, F1), jnp.float32)
    p["w2"] = nrm(keys[1], (KT, F1, F2))                  # Conv2d(16,32,(1,5)) taps
    p["s2"] = jnp.full((1, F2), bn_scale, jnp.float32)    # folded BatchNorm2d(32)
    p["b2"] = jnp.zeros((1, F2), jnp.float32)
    p["p1w"] = nrm(keys[2], (F2, H)); p["p1b"] = nrm(keys[3], (1, H), 0.01)
    p["ln1g"] = jnp.ones((1, H), jnp.float32); p["ln1b"] = jnp.zeros((1, H), jnp.float32)
    p["p2w"] = nrm(keys[4], (H, H)); p["p2b"] = nrm(keys[5], (1, H), 0.01)
    p["ln2g"] = jnp.ones((1, H), jnp.float32); p["ln2b"] = jnp.zeros((1, H), jnp.float32)
    p["wq"] = nrm(keys[6], (H, H)); p["wk"] = nrm(keys[7], (H, H)); p["wv"] = nrm(keys[8], (H, H))
    p["c1w"] = nrm(keys[9], (H, H)); p["c1b"] = nrm(keys[10], (1, H), 0.01)
    p["cl1g"] = jnp.ones((1, H), jnp.float32); p["cl1b"] = jnp.zeros((1, H), jnp.float32)
    p["c2w"] = nrm(keys[11], (H, H2)); p["c2b"] = nrm(keys[12], (1, H2), 0.01)
    p["cl2g"] = jnp.ones((1, H2), jnp.float32); p["cl2b"] = jnp.zeros((1, H2), jnp.float32)
    p["c3w"] = nrm(keys[13], (H2, NC)); p["c3b"] = nrm(keys[14], (1, NC), 0.01)
    return p


if __name__ == "__main__":
    key = jax.random.PRNGKey(0)
    pkey, xkey = jax.random.split(key)
    params = init_params(pkey)
    wslab = prepare_params(params)                 # one-time prep, outside the jitted path
    x = jax.random.normal(xkey, (B, C, T), jnp.float32)   # (batch, channels, time)
    out = titans_eeg_forward(x, wslab)
    jax.block_until_ready(out)
    assert out.shape == (B, NC) and out.dtype == jnp.float32
    print("KERNEL_OK")
</pallas_src>

<mosaic_0001>
module attributes {stable_mosaic.version = 11 : i64} {
  func.func @titans_kernel(%arg0: memref<64x16xf32, #tpu.memory_space<vmem>>, %arg1: memref<432x192xf32, #tpu.memory_space<vmem>>, %arg2: memref<8x128xf32, #tpu.memory_space<vmem>>, %arg3: memref<64x192xf32, #tpu.memory_space<vmem>>) attributes {dimension_semantics = [], scalar_prefetch = 0 : i64, scratch_operands = 1 : i64, tpu.core_type = #tpu.core_type<tc>} {
    %c0 = arith.constant 0 : index
    %c0_0 = arith.constant 0 : index
    %0 = vector.load %arg0[%c0, %c0_0] : memref<64x16xf32, #tpu.memory_space<vmem>>, vector<64x16xf32>
    %c0_1 = arith.constant 0 : index
    %c0_2 = arith.constant 0 : index
    %1 = vector.load %arg1[%c0_1, %c0_2] : memref<432x192xf32, #tpu.memory_space<vmem>>, vector<16x16xf32>
    %cst = arith.constant dense<0.000000e+00> : vector<64x16xf32>
    %2 = tpu.matmul %0, %1, %cst {dimension_numbers = #tpu.dot_dimension_numbers<[1], [0], [0], [1], [0, 0, 1, 1], [], []>} : vector<64x16xf32>, vector<16x16xf32>, vector<64x16xf32> -> vector<64x16xf32>
    %c416 = arith.constant 416 : index
    %c0_3 = arith.constant 0 : index
    %3 = vector.load %arg1[%c416, %c0_3] : memref<432x192xf32, #tpu.memory_space<vmem>>, vector<1x16xf32>
    %4 = vector.broadcast %3 : vector<1x16xf32> to vector<64x16xf32>
    %5 = arith.addf %2, %4 : vector<64x16xf32>
    %cst_4 = arith.constant 0.000000e+00 : f32
    %6 = vector.broadcast %cst_4 : f32 to vector<64x16xf32>
    %7 = arith.cmpf ogt, %5, %6 : vector<64x16xf32>
    %8 = math.exp %5 : vector<64x16xf32>
    %cst_5 = arith.constant 1.000000e+00 : f32
    %9 = vector.broadcast %cst_5 : f32 to vector<64x16xf32>
    %10 = arith.subf %8, %9 : vector<64x16xf32>
    %11 = arith.select %7, %5, %10 : vector<64x16xi1>, vector<64x16xf32>
    %12 = tpu.iota {dimensions = array<i32: 0>} : vector<64x1xi32>
    %c31_i32 = arith.constant 31 : i32
    %13 = vector.broadcast %c31_i32 : i32 to vector<64x1xi32>
    %14 = arith.andi %12, %13 : vector<64x1xi32>
    %cst_6 = arith.constant 0.000000e+00 : f32
    %15 = vector.broadcast %cst_6 : f32 to vector<64x32xf32>
    %c2_i32 = arith.constant 2 : i32
    %16 = tpu.dynamic_rotate %11 by %c2_i32 dim 0 : vector<64x16xf32>, i32 -> vector<64x16xf32>
    %c-2_i32 = arith.constant -2 : i32
    %17 = vector.broadcast %c-2_i32 : i32 to vector<64x1xi32>
    %18 = arith.addi %14, %17 : vector<64x1xi32>
    %c0_i32 = arith.constant 0 : i32
    %19 = vector.broadcast %c0_i32 : i32 to vector<64x1xi32>
    %20 = arith.cmpi sge, %18, %19 : vector<64x1xi32>
    %c-2_i32_7 = arith.constant -2 : i32
    %21 = vector.broadcast %c-2_i32_7 : i32 to vector<64x1xi32>
    %22 = arith.addi %14, %21 : vector<64x1xi32>
    %c32_i32 = arith.constant 32 : i32
    %23 = vector.broadcast %c32_i32 : i32 to vector<64x1xi32>
    %24 = arith.cmpi slt, %22, %23 : vector<64x1xi32>
    %25 = arith.andi %20, %24 : vector<64x1xi1>
    %cst_8 = arith.constant 0.000000e+00 : f32
    %26 = vector.shape_cast %25 : vector<64x1xi1> to vector<64x1xi1>
    %27 = vector.broadcast %26 : vector<64x1xi1> to vector<64x16xi1>
    %28 = vector.broadcast %cst_8 : f32 to vector<64x16xf32>
    %29 = arith.select %27, %16, %28 : vector<64x16xi1>, vector<64x16xf32>
    %c16 = arith.constant 16 : index
    %c0_9 = arith.constant 0 : index
    %30 = vector.load %arg1[%c16, %c0_9] : memref<432x192xf32, #tpu.memory_space<vmem>>, vector<16x32xf32>
    %cst_10 = arith.constant dense<0.000000e+00> : vector<64x32xf32>
    %31 = tpu.matmul %29, %30, %cst_10 {dimension_numbers = #tpu.dot_dimension_numbers<[1], [0], [0], [1], [0, 0, 1, 1], [], []>} : vector<64x16xf32>, vector<16x32xf32>, vector<64x32xf32> -> vector<64x32xf32>
    %32 = arith.addf %15, %31 : vector<64x32xf32>
    %c1_i32 = arith.constant 1 : i32
    %33 = tpu.dynamic_rotate %11 by %c1_i32 dim 0 : vector<64x16xf32>, i32 -> vector<64x16xf32>
    %c-1_i32 = arith.constant -1 : i32
    %34 = vector.broadcast %c-1_i32 : i32 to vector<64x1xi32>
    %35 = arith.addi %14, %34 : vector<64x1xi32>
    %c0_i32_11 = arith.constant 0 : i32
    %36 = vector.broadcast %c0_i32_11 : i32 to vector<64x1xi32>
    %37 = arith.cmpi sge, %35, %36 : vector<64x1xi32>
    %c-1_i32_12 = arith.constant -1 : i32
    %38 = vector.broadcast %c-1_i32_12 : i32 to vector<64x1xi32>
    %39 = arith.addi %14, %38 : vector<64x1xi32>
    %c32_i32_13 = arith.constant 32 : i32
    %40 = vector.broadcast %c32_i32_13 : i32 to vector<64x1xi32>
    %41 = arith.cmpi slt, %39, %40 : vector<64x1xi32>
    %42 = arith.andi %37, %41 : vector<64x1xi1>
    %cst_14 = arith.constant 0.000000e+00 : f32
    %43 = vector.shape_cast %42 : vector<64x1xi1> to vector<64x1xi1>
    %44 = vector.broadcast %43 : vector<64x1xi1> to vector<64x16xi1>
    %45 = vector.broadcast %cst_14 : f32 to vector<64x16xf32>
    %46 = arith.select %44, %33, %45 : vector<64x16xi1>, vector<64x16xf32>
    %c32 = arith.constant 32 : index
    %c0_15 = arith.constant 0 : index
    %47 = vector.load %arg1[%c32, %c0_15] : memref<432x192xf32, #tpu.memory_space<vmem>>, vector<16x32xf32>
    %cst_16 = arith.constant dense<0.000000e+00> : vector<64x32xf32>
    %48 = tpu.matmul %46, %47, %cst_16 {dimension_numbers = #tpu.dot_dimension_numbers<[1], [0], [0], [1], [0, 0, 1, 1], [], []>} : vector<64x16xf32>, vector<16x32xf32>, vector<64x32xf32> -> vector<64x32xf32>
    %49 = arith.addf %32, %48 : vector<64x32xf32>
    %c48 = arith.constant 48 : index
    %c0_17 = arith.constant 0 : index
    %50 = vector.load %arg1[%c48, %c0_17] : memref<432x192xf32, #tpu.memory_space<vmem>>, vector<16x32xf32>
    %cst_18 = arith.constant dense<0.000000e+00> : vector<64x32xf32>
    %51 = tpu.matmul %11, %50, %cst_18 {dimension_numbers = #tpu.dot_dimension_numbers<[1], [0], [0], [1], [0, 0, 1, 1], [], []>} : vector<64x16xf32>, vector<16x32xf32>, vector<64x32xf32> -> vector<64x32xf32>
    %52 = arith.addf %49, %51 : vector<64x32xf32>
    %c63_i32 = arith.constant 63 : i32
    %53 = tpu.dynamic_rotate %11 by %c63_i32 dim 0 : vector<64x16xf32>, i32 -> vector<64x16xf32>
    %c1_i32_19 = arith.constant 1 : i32
    %54 = vector.broadcast %c1_i32_19 : i32 to vector<64x1xi32>
    %55 = arith.addi %14, %54 : vector<64x1xi32>
    %c0_i32_20 = arith.constant 0 : i32
    %56 = vector.broadcast %c0_i32_20 : i32 to vector<64x1xi32>
    %57 = arith.cmpi sge, %55, %56 : vector<64x1xi32>
    %c1_i32_21 = arith.constant 1 : i32
    %58 = vector.broadcast %c1_i32_21 : i32 to vector<64x1xi32>
    %59 = arith.addi %14, %58 : vector<64x1xi32>
    %c32_i32_22 = arith.constant 32 : i32
    %60 = vector.broadcast %c32_i32_22 : i32 to vector<64x1xi32>
    %61 = arith.cmpi slt, %59, %60 : vector<64x1xi32>
    %62 = arith.andi %57, %61 : vector<64x1xi1>
    %cst_23 = arith.constant 0.000000e+00 : f32
    %63 = vector.shape_cast %62 : vector<64x1xi1> to vector<64x1xi1>
    %64 = vector.broadcast %63 : vector<64x1xi1> to vector<64x16xi1>
    %65 = vector.broadcast %cst_23 : f32 to vector<64x16xf32>
    %66 = arith.select %64, %53, %65 : vector<64x16xi1>, vector<64x16xf32>
    %c64 = arith.constant 64 : index
    %c0_24 = arith.constant 0 : index
    %67 = vector.load %arg1[%c64, %c0_24] : memref<432x192xf32, #tpu.memory_space<vmem>>, vector<16x32xf32>
    %cst_25 = arith.constant dense<0.000000e+00> : vector<64x32xf32>
    %68 = tpu.matmul %66, %67, %cst_25 {dimension_numbers = #tpu.dot_dimension_numbers<[1], [0], [0], [1], [0, 0, 1, 1], [], []>} : vector<64x16xf32>, vector<16x32xf32>, vector<64x32xf32> -> vector<64x32xf32>
    %69 = arith.addf %52, %68 : vector<64x32xf32>
    %c62_i32 = arith.constant 62 : i32
    %70 = tpu.dynamic_rotate %11 by %c62_i32 dim 0 : vector<64x16xf32>, i32 -> vector<64x16xf32>
    %c2_i32_26 = arith.constant 2 : i32
    %71 = vector.broadcast %c2_i32_26 : i32 to vector<64x1xi32>
    %72 = arith.addi %14, %71 : vector<64x1xi32>
    %c0_i32_27 = arith.constant 0 : i32
    %73 = vector.broadcast %c0_i32_27 : i32 to vector<64x1xi32>
    %74 = arith.cmpi sge, %72, %73 : vector<64x1xi32>
    %c2_i32_28 = arith.constant 2 : i32
    %75 = vector.broadcast %c2_i32_28 : i32 to vector<64x1xi32>
    %76 = arith.addi %14, %75 : vector<64x1xi32>
    %c32_i32_29 = arith.constant 32 : i32
    %77 = vector.broadcast %c32_i32_29 : i32 to vector<64x1xi32>
    %78 = arith.cmpi slt, %76, %77 : vector<64x1xi32>
    %79 = arith.andi %74, %78 : vector<64x1xi1>
    %cst_30 = arith.constant 0.000000e+00 : f32
    %80 = vector.shape_cast %79 : vector<64x1xi1> to vector<64x1xi1>
    %81 = vector.broadcast %80 : vector<64x1xi1> to vector<64x16xi1>
    %82 = vector.broadcast %cst_30 : f32 to vector<64x16xf32>
    %83 = arith.select %81, %70, %82 : vector<64x16xi1>, vector<64x16xf32>
    %c80 = arith.constant 80 : index
    %c0_31 = arith.constant 0 : index
    %84 = vector.load %arg1[%c80, %c0_31] : memref<432x192xf32, #tpu.memory_space<vmem>>, vector<16x32xf32>
    %cst_32 = arith.constant dense<0.000000e+00> : vector<64x32xf32>
    %85 = tpu.matmul %83, %84, %cst_32 {dimension_numbers = #tpu.dot_dimension_numbers<[1], [0], [0], [1], [0, 0, 1, 1], [], []>} : vector<64x16xf32>, vector<16x32xf32>, vector<64x32xf32> -> vector<64x32xf32>
    %86 = arith.addf %69, %85 : vector<64x32xf32>
    %c417 = arith.constant 417 : index
    %c0_33 = arith.constant 0 : index
    %87 = vector.load %arg1[%c417, %c0_33] : memref<432x192xf32, #tpu.memory_space<vmem>>, vector<1x32xf32>
    %88 = vector.broadcast %87 : vector<1x32xf32> to vector<64x32xf32>
    %89 = arith.addf %86, %88 : vector<64x32xf32>
    %cst_34 = arith.constant 0.000000e+00 : f32
    %90 = vector.broadcast %cst_34 : f32 to vector<64x32xf32>
    %91 = arith.cmpf ogt, %89, %90 : vector<64x32xf32>
    %92 = math.exp %89 : vector<64x32xf32>
    %cst_35 = arith.constant 1.000000e+00 : f32
    %93 = vector.broadcast %cst_35 : f32 to vector<64x32xf32>
    %94 = arith.subf %92, %93 : vector<64x32xf32>
    %95 = arith.select %91, %89, %94 : vector<64x32xi1>, vector<64x32xf32>
    %c96 = arith.constant 96 : index
    %c0_36 = arith.constant 0 : index
    %96 = vector.load %arg1[%c96, %c0_36] : memref<432x192xf32, #tpu.memory_space<vmem>>, vector<32x64xf32>
    %cst_37 = arith.constant dense<0.000000e+00> : vector<64x64xf32>
    %97 = tpu.matmul %95, %96, %cst_37 {dimension_numbers = #tpu.dot_dimension_numbers<[1], [0], [0], [1], [0, 0, 1, 1], [], []>} : vector<64x32xf32>, vector<32x64xf32>, vector<64x64xf32> -> vector<64x64xf32>
    %c418 = arith.constant 418 : index
    %c0_38 = arith.constant 0 : index
    %98 = vector.load %arg1[%c418, %c0_38] : memref<432x192xf32, #tpu.memory_space<vmem>>, vector<1x64xf32>
    %99 = vector.broadcast %98 : vector<1x64xf32> to vector<64x64xf32>
    %100 = arith.addf %97, %99 : vector<64x64xf32>
    %c419 = arith.constant 419 : index
    %c0_39 = arith.constant 0 : index
    %101 = vector.load %arg1[%c419, %c0_39] : memref<432x192xf32, #tpu.memory_space<vmem>>, vector<1x64xf32>
    %c420 = arith.constant 420 : index
    %c0_40 = arith.constant 0 : index
    %102 = vector.load %arg1[%c420, %c0_40] : memref<432x192xf32, #tpu.memory_space<vmem>>, vector<1x64xf32>
    %cst_41 = arith.constant dense<0.000000e+00> : vector<64xf32>
    %103 = vector.multi_reduction <add>, %100, %cst_41 [1] : vector<64x64xf32> to vector<64xf32>
    %104 = vector.shape_cast %103 : vector<64xf32> to vector<64x1xf32>
    %cst_42 = arith.constant 6.400000e+01 : f32
    %105 = vector.broadcast %cst_42 : f32 to vector<64x1xf32>
    %106 = arith.divf %104, %105 : vector<64x1xf32>
    %107 = vector.broadcast %106 : vector<64x1xf32> to vector<64x64xf32>
    %108 = arith.subf %100, %107 : vector<64x64xf32>
    %109 = arith.mulf %108, %108 : vector<64x64xf32>
    %cst_43 = arith.constant dense<0.000000e+00> : vector<64xf32>
    %110 = vector.multi_reduction <add>, %109, %cst_43 [1] : vector<64x64xf32> to vector<64xf32>
    %111 = vector.shape_cast %110 : vector<64xf32> to vector<64x1xf32>
    %cst_44 = arith.constant 6.400000e+01 : f32
    %112 = vector.broadcast %cst_44 : f32 to vector<64x1xf32>
    %113 = arith.divf %111, %112 : vector<64x1xf32>
    %114 = vector.broadcast %106 : vector<64x1xf32> to vector<64x64xf32>
    %115 = arith.subf %100, %114 : vector<64x64xf32>
    %cst_45 = arith.constant 9.99999974E-6 : f32
    %116 = vector.broadcast %cst_45 : f32 to vector<64x1xf32>
    %117 = arith.addf %113, %116 : vector<64x1xf32>
    %118 = math.rsqrt %117 : vector<64x1xf32>
    %119 = vector.broadcast %118 : vector<64x1xf32> to vector<64x64xf32>
    %120 = arith.mulf %115, %119 : vector<64x64xf32>
    %121 = vector.broadcast %101 : vector<1x64xf32> to vector<64x64xf32>
    %122 = arith.mulf %120, %121 : vector<64x64xf32>
    %123 = vector.broadcast %102 : vector<1x64xf32> to vector<64x64xf32>
    %124 = arith.addf %122, %123 : vector<64x64xf32>
    %cst_46 = arith.constant 5.000000e-01 : f32
    %125 = vector.broadcast %cst_46 : f32 to vector<64x64xf32>
    %126 = arith.mulf %125, %124 : vector<64x64xf32>
    %cst_47 = arith.constant 0.707106769 : f32
    %127 = vector.broadcast %cst_47 : f32 to vector<64x64xf32>
    %128 = arith.mulf %124, %127 : vector<64x64xf32>
    %129 = math.erf %128 : vector<64x64xf32>
    %cst_48 = arith.constant 1.000000e+00 : f32
    %130 = vector.broadcast %cst_48 : f32 to vector<64x64xf32>
    %131 = arith.addf %130, %129 : vector<64x64xf32>
    %132 = arith.mulf %126, %131 : vector<64x64xf32>
    %c128 = arith.constant 128 : index
    %c0_49 = arith.constant 0 : index
    %133 = vector.load %arg1[%c128, %c0_49] : memref<432x192xf32, #tpu.memory_space<vmem>>, vector<64x64xf32>
    %cst_50 = arith.constant dense<0.000000e+00> : vector<64x64xf32>
    %134 = tpu.matmul %132, %133, %cst_50 {dimension_numbers = #tpu.dot_dimension_numbers<[1], [0], [0], [1], [0, 0, 1, 1], [], []>} : vector<64x64xf32>, vector<64x64xf32>, vector<64x64xf32> -> vector<64x64xf32>
    %c421 = arith.constant 421 : index
    %c0_51 = arith.constant 0 : index
    %135 = vector.load %arg1[%c421, %c0_51] : memref<432x192xf32, #tpu.memory_space<vmem>>, vector<1x64xf32>
    %136 = vector.broadcast %135 : vector<1x64xf32> to vector<64x64xf32>
    %137 = arith.addf %134, %136 : vector<64x64xf32>
    %c422 = arith.constant 422 : index
    %c0_52 = arith.constant 0 : index
    %138 = vector.load %arg1[%c422, %c0_52] : memref<432x192xf32, #tpu.memory_space<vmem>>, vector<1x64xf32>
    %c423 = arith.constant 423 : index
    %c0_53 = arith.constant 0 : index
    %139 = vector.load %arg1[%c423, %c0_53] : memref<432x192xf32, #tpu.memory_space<vmem>>, vector<1x64xf32>
    %cst_54 = arith.constant dense<0.000000e+00> : vector<64xf32>
    %140 = vector.multi_reduction <add>, %137, %cst_54 [1] : vector<64x64xf32> to vector<64xf32>
    %141 = vector.shape_cast %140 : vector<64xf32> to vector<64x1xf32>
    %cst_55 = arith.constant 6.400000e+01 : f32
    %142 = vector.broadcast %cst_55 : f32 to vector<64x1xf32>
    %143 = arith.divf %141, %142 : vector<64x1xf32>
    %144 = vector.broadcast %143 : vector<64x1xf32> to vector<64x64xf32>
    %145 = arith.subf %137, %144 : vector<64x64xf32>
    %146 = arith.mulf %145, %145 : vector<64x64xf32>
    %cst_56 = arith.constant dense<0.000000e+00> : vector<64xf32>
    %147 = vector.multi_reduction <add>, %146, %cst_56 [1] : vector<64x64xf32> to vector<64xf32>
    %148 = vector.shape_cast %147 : vector<64xf32> to vector<64x1xf32>
    %cst_57 = arith.constant 6.400000e+01 : f32
    %149 = vector.broadcast %cst_57 : f32 to vector<64x1xf32>
    %150 = arith.divf %148, %149 : vector<64x1xf32>
    %151 = vector.broadcast %143 : vector<64x1xf32> to vector<64x64xf32>
    %152 = arith.subf %137, %151 : vector<64x64xf32>
    %cst_58 = arith.constant 9.99999974E-6 : f32
    %153 = vector.broadcast %cst_58 : f32 to vector<64x1xf32>
    %154 = arith.addf %150, %153 : vector<64x1xf32>
    %155 = math.rsqrt %154 : vector<64x1xf32>
    %156 = vector.broadcast %155 : vector<64x1xf32> to vector<64x64xf32>
    %157 = arith.mulf %152, %156 : vector<64x64xf32>
    %158 = vector.broadcast %138 : vector<1x64xf32> to vector<64x64xf32>
    %159 = arith.mulf %157, %158 : vector<64x64xf32>
    %160 = vector.broadcast %139 : vector<1x64xf32> to vector<64x64xf32>
    %161 = arith.addf %159, %160 : vector<64x64xf32>
    %cst_59 = arith.constant 5.000000e-01 : f32
    %162 = vector.broadcast %cst_59 : f32 to vector<64x64xf32>
    %163 = arith.mulf %162, %161 : vector<64x64xf32>
    %cst_60 = arith.constant 0.707106769 : f32
    %164 = vector.broadcast %cst_60 : f32 to vector<64x64xf32>
    %165 = arith.mulf %161, %164 : vector<64x64xf32>
    %166 = math.erf %165 : vector<64x64xf32>
    %cst_61 = arith.constant 1.000000e+00 : f32
    %167 = vector.broadcast %cst_61 : f32 to vector<64x64xf32>
    %168 = arith.addf %167, %166 : vector<64x64xf32>
    %169 = arith.mulf %163, %168 : vector<64x64xf32>
    %c192 = arith.constant 192 : index
    %c0_62 = arith.constant 0 : index
    %170 = vector.load %arg1[%c192, %c0_62] : memref<432x192xf32, #tpu.memory_space<vmem>>, vector<64x192xf32>
    %cst_63 = arith.constant dense<0.000000e+00> : vector<64x192xf32>
    %171 = tpu.matmul %169, %170, %cst_63 {dimension_numbers = #tpu.dot_dimension_numbers<[1], [0], [0], [1], [0, 0, 1, 1], [], []>} : vector<64x64xf32>, vector<64x192xf32>, vector<64x192xf32> -> vector<64x192xf32>
    %c0_64 = arith.constant 0 : index
    %c0_65 = arith.constant 0 : index
    %172 = vector.load %arg3[%c0_64, %c0_65] : memref<64x192xf32, #tpu.memory_space<vmem>>, vector<64x192xf32>
    tpu.vector_store %arg3[%c0_64, %c0_65], %171 {strides = array<i32>} : memref<64x192xf32, #tpu.memory_space<vmem>>, vector<64x192xf32>,
    %c0_66 = arith.constant 0 : index
    %c64_67 = arith.constant 64 : index
    %173 = vector.load %arg3[%c0_66, %c64_67] : memref<64x192xf32, #tpu.memory_space<vmem>>, vector<8x64xf32>
    %c32_68 = arith.constant 32 : index
    %c64_69 = arith.constant 64 : index
    %174 = vector.load %arg3[%c32_68, %c64_69] : memref<64x192xf32, #tpu.memory_space<vmem>>, vector<8x64xf32>
    %c8 = arith.constant 8 : index
    %c64_70 = arith.constant 64 : index
    %175 = vector.load %arg3[%c8, %c64_70] : memref<64x192xf32, #tpu.memory_space<vmem>>, vector<8x64xf32>
    %c40 = arith.constant 40 : index
    %c64_71 = arith.constant 64 : index
    %176 = vector.load %arg3[%c40, %c64_71] : memref<64x192xf32, #tpu.memory_space<vmem>>, vector<8x64xf32>
    %c16_72 = arith.constant 16 : index
    %c64_73 = arith.constant 64 : index
    %177 = vector.load %arg3[%c16_72, %c64_73] : memref<64x192xf32, #tpu.memory_space<vmem>>, vector<8x64xf32>
    %c48_74 = arith.constant 48 : index
    %c64_75 = arith.constant 64 : index
    %178 = vector.load %arg3[%c48_74, %c64_75] : memref<64x192xf32, #tpu.memory_space<vmem>>, vector<8x64xf32>
    %c24 = arith.constant 24 : index
    %c64_76 = arith.constant 64 : index
    %179 = vector.load %arg3[%c24, %c64_76] : memref<64x192xf32, #tpu.memory_space<vmem>>, vector<8x64xf32>
    %c56 = arith.constant 56 : index
    %c64_77 = arith.constant 64 : index
    %180 = vector.load %arg3[%c56, %c64_77] : memref<64x192xf32, #tpu.memory_space<vmem>>, vector<8x64xf32>
    %181 = tpu.concatenate %173, %174, %175, %176, %177, %178, %179, %180 in 0 : vector<8x64xf32>, vector<8x64xf32>, vector<8x64xf32>, vector<8x64xf32>, vector<8x64xf32>, vector<8x64xf32>, vector<8x64xf32>, vector<8x64xf32> -> vector<64x64xf32>
    %182 = tpu.transpose %181, [1, 0] : vector<64x64xf32> -> vector<64x64xf32>
    %183 = tpu.iota {dimensions = array<i32: 1>} : vector<16x128xi32>
    %184 = tpu.iota {dimensions = array<i32: 0>} : vector<16x128xi32>
    %c8_i32 = arith.constant 8 : i32
    %185 = vector.broadcast %c8_i32 : i32 to vector<16x128xi32>
    %186 = arith.cmpi slt, %184, %185 : vector<16x128xi32>
    %c64_i32 = arith.constant 64 : i32
    %187 = vector.broadcast %c64_i32 : i32 to vector<16x128xi32>
    %188 = arith.cmpi slt, %183, %187 : vector<16x128xi32>
    %189 = arith.xori %186, %188 : vector<16x128xi1>
    %cst_78 = arith.constant dense<true> : vector<16x128xi1>
    %190 = arith.xori %189, %cst_78 : vector<16x128xi1>
    %cst_79 = arith.constant 1.000000e+00 : f32
    %cst_80 = arith.constant 0.000000e+00 : f32
    %191 = vector.broadcast %cst_79 : f32 to vector<16x128xf32>
    %192 = vector.broadcast %cst_80 : f32 to vector<16x128xf32>
    %193 = arith.select %190, %191, %192 : vector<16x128xi1>, vector<16x128xf32>
    %cst_81 = arith.constant 0.000000e+00 : f32
    %194 = vector.broadcast %cst_81 : f32 to vector<8x64xf32>
    %cst_82 = arith.constant 0.000000e+00 : f32
    %195 = vector.broadcast %cst_82 : f32 to vector<64x128xf32>
    %cst_83 = arith.constant 0.000000e+00 : f32
    %196 = vector.broadcast %cst_83 : f32 to vector<16x128xf32>
    %c0_84 = arith.constant 0 : index
    %c0_85 = arith.constant 0 : index
    %197 = vector.load %arg3[%c0_84, %c0_85] : memref<64x192xf32, #tpu.memory_space<vmem>>, vector<8x64xf32>
    %c32_86 = arith.constant 32 : index
    %c0_87 = arith.constant 0 : index
    %198 = vector.load %arg3[%c32_86, %c0_87] : memref<64x192xf32, #tpu.memory_space<vmem>>, vector<8x64xf32>
    %c0_88 = arith.constant 0 : index
    %c64_89 = arith.constant 64 : index
    %199 = vector.load %arg3[%c0_88, %c64_89] : memref<64x192xf32, #tpu.memory_space<vmem>>, vector<8x64xf32>
    %c32_90 = arith.constant 32 : index
    %c64_91 = arith.constant 64 : index
    %200 = vector.load %arg3[%c32_90, %c64_91] : memref<64x192xf32, #tpu.memory_space<vmem>>, vector<8x64xf32>
    %c0_92 = arith.constant 0 : index
    %c128_93 = arith.constant 128 : index
    %201 = vector.load %arg3[%c0_92, %c128_93] : memref<64x192xf32, #tpu.memory_space<vmem>>, vector<8x64xf32>
    %c32_94 = arith.constant 32 : index
    %c128_95 = arith.constant 128 : index
    %202 = vector.load %arg3[%c32_94, %c128_95] : memref<64x192xf32, #tpu.memory_space<vmem>>, vector<8x64xf32>
    %203 = tpu.concatenate %197, %198, %199, %200 in 0 : vector<8x64xf32>, vector<8x64xf32>, vector<8x64xf32>, vector<8x64xf32> -> vector<32x64xf32>
    %204 = tpu.concatenate %201, %194 in 1 : vector<8x64xf32>, vector<8x64xf32> -> vector<8x128xf32>
    %205 = tpu.concatenate %194, %202 in 1 : vector<8x64xf32>, vector<8x64xf32> -> vector<8x128xf32>
    %206 = tpu.concatenate %204, %205 in 0 : vector<8x128xf32>, vector<8x128xf32> -> vector<16x128xf32>
    %cst_96 = arith.constant dense<0.000000e+00> : vector<32x128xf32>
    %207 = tpu.matmul %203, %195, %cst_96 {dimension_numbers = #tpu.dot_dimension_numbers<[1], [0], [0], [1], [0, 0, 1, 1], [], []>} : vector<32x64xf32>, vector<64x128xf32>, vector<32x128xf32> -> vector<32x128xf32>
    %208 = vector.extract_strided_slice %207 {offsets = [0, 0], sizes = [16, 128], strides = [1, 1]} : vector<32x128xf32> to vector<16x128xf32>
    %209 = arith.addf %196, %208 : vector<16x128xf32>
    %210 = vector.extract_strided_slice %207 {offsets = [16, 0], sizes = [16, 128], strides = [1, 1]} : vector<32x128xf32> to vector<16x128xf32>
    %211 = arith.mulf %210, %193 : vector<16x128xf32>
    %212 = arith.subf %211, %206 : vector<16x128xf32>
    %213 = vector.extract_strided_slice %182 {offsets = [0, 0], sizes = [64, 16], strides = [1, 1]} : vector<64x64xf32> to vector<64x16xf32>
    %cst_97 = arith.constant dense<0.000000e+00> : vector<64x128xf32>
    %214 = tpu.matmul %213, %212, %cst_97 {dimension_numbers = #tpu.dot_dimension_numbers<[1], [0], [0], [1], [0, 0, 1, 1], [], []>} : vector<64x16xf32>, vector<16x128xf32>, vector<64x128xf32> -> vector<64x128xf32>
    %cst_98 = arith.constant 0.00999999977 : f32
    %215 = vector.broadcast %cst_98 : f32 to vector<64x128xf32>
    %216 = arith.mulf %215, %214 : vector<64x128xf32>
    %217 = arith.subf %195, %216 : vector<64x128xf32>
    %c8_99 = arith.constant 8 : index
    %c0_100 = arith.constant 0 : index
    %218 = vector.load %arg3[%c8_99, %c0_100] : memref<64x192xf32, #tpu.memory_space<vmem>>, vector<8x64xf32>
    %c40_101 = arith.constant 40 : index
    %c0_102 = arith.constant 0 : index
    %219 = vector.load %arg3[%c40_101, %c0_102] : memref<64x192xf32, #tpu.memory_space<vmem>>, vector<8x64xf32>
    %c8_103 = arith.constant 8 : index
    %c64_104 = arith.constant 64 : index
    %220 = vector.load %arg3[%c8_103, %c64_104] : memref<64x192xf32, #tpu.memory_space<vmem>>, vector<8x64xf32>
    %c40_105 = arith.constant 40 : index
    %c64_106 = arith.constant 64 : index
    %221 = vector.load %arg3[%c40_105, %c64_106] : memref<64x192xf32, #tpu.memory_space<vmem>>, vector<8x64xf32>
    %c8_107 = arith.constant 8 : index
    %c128_108 = arith.constant 128 : index
    %222 = vector.load %arg3[%c8_107, %c128_108] : memref<64x192xf32, #tpu.memory_space<vmem>>, vector<8x64xf32>
    %c40_109 = arith.constant 40 : index
    %c128_110 = arith.constant 128 : index
    %223 = vector.load %arg3[%c40_109, %c128_110] : memref<64x192xf32, #tpu.memory_space<vmem>>, vector<8x64xf32>
    %224 = tpu.concatenate %218, %219, %220, %221 in 0 : vector<8x64xf32>, vector<8x64xf32>, vector<8x64xf32>, vector<8x64xf32> -> vector<32x64xf32>
    %225 = tpu.concatenate %222, %194 in 1 : vector<8x64xf32>, vector<8x64xf32> -> vector<8x128xf32>
    %226 = tpu.concatenate %194, %223 in 1 : vector<8x64xf32>, vector<8x64xf32> -> vector<8x128xf32>
    %227 = tpu.concatenate %225, %226 in 0 : vector<8x128xf32>, vector<8x128xf32> -> vector<16x128xf32>
    %cst_111 = arith.constant dense<0.000000e+00> : vector<32x128xf32>
    %228 = tpu.matmul %224, %217, %cst_111 {dimension_numbers = #tpu.dot_dimension_numbers<[1], [0], [0], [1], [0, 0, 1, 1], [], []>} : vector<32x64xf32>, vector<64x128xf32>, vector<32x128xf32> -> vector<32x128xf32>
    %229 = vector.extract_strided_slice %228 {offsets = [0, 0], sizes = [16, 128], strides = [1, 1]} : vector<32x128xf32> to vector<16x128xf32>
    %230 = arith.addf %209, %229 : vector<16x128xf32>
    %231 = vector.extract_strided_slice %228 {offsets = [16, 0], sizes = [16, 128], strides = [1, 1]} : vector<32x128xf32> to vector<16x128xf32>
    %232 = arith.mulf %231, %193 : vector<16x128xf32>
    %233 = arith.subf %232, %227 : vector<16x128xf32>
    %234 = vector.extract_strided_slice %182 {offsets = [0, 16], sizes = [64, 16], strides = [1, 1]} : vector<64x64xf32> to vector<64x16xf32>
    %cst_112 = arith.constant dense<0.000000e+00> : vector<64x128xf32>
    %235 = tpu.matmul %234, %233, %cst_112 {dimension_numbers = #tpu.dot_dimension_numbers<[1], [0], [0], [1], [0, 0, 1, 1], [], []>} : vector<64x16xf32>, vector<16x128xf32>, vector<64x128xf32> -> vector<64x128xf32>
    %cst_113 = arith.constant 0.00999999977 : f32
    %236 = vector.broadcast %cst_113 : f32 to vector<64x128xf32>
    %237 = arith.mulf %236, %235 : vector<64x128xf32>
    %238 = arith.subf %217, %237 : vector<64x128xf32>
    %c16_114 = arith.constant 16 : index
    %c0_115 = arith.constant 0 : index
    %239 = vector.load %arg3[%c16_114, %c0_115] : memref<64x192xf32, #tpu.memory_space<vmem>>, vector<8x64xf32>
    %c48_116 = arith.constant 48 : index
    %c0_117 = arith.constant 0 : index
    %240 = vector.load %arg3[%c48_116, %c0_117] : memref<64x192xf32, #tpu.memory_space<vmem>>, vector<8x64xf32>
    %c16_118 = arith.constant 16 : index
    %c64_119 = arith.constant 64 : index
    %241 = vector.load %arg3[%c16_118, %c64_119] : memref<64x192xf32, #tpu.memory_space<vmem>>, vector<8x64xf32>
    %c48_120 = arith.constant 48 : index
    %c64_121 = arith.constant 64 : index
    %242 = vector.load %arg3[%c48_120, %c64_121] : memref<64x192xf32, #tpu.memory_space<vmem>>, vector<8x64xf32>
    %c16_122 = arith.constant 16 : index
    %c128_123 = arith.constant 128 : index
    %243 = vector.load %arg3[%c16_122, %c128_123] : memref<64x192xf32, #tpu.memory_space<vmem>>, vector<8x64xf32>
    %c48_124 = arith.constant 48 : index
    %c128_125 = arith.constant 128 : index
    %244 = vector.load %arg3[%c48_124, %c128_125] : memref<64x192xf32, #tpu.memory_space<vmem>>, vector<8x64xf32>
    %245 = tpu.concatenate %239, %240, %241, %242 in 0 : vector<8x64xf32>, vector<8x64xf32>, vector<8x64xf32>, vector<8x64xf32> -> vector<32x64xf32>
    %246 = tpu.concatenate %243, %194 in 1 : vector<8x64xf32>, vector<8x64xf32> -> vector<8x128xf32>
    %247 = tpu.concatenate %194, %244 in 1 : vector<8x64xf32>, vector<8x64xf32> -> vector<8x128xf32>
    %248 = tpu.concatenate %246, %247 in 0 : vector<8x128xf32>, vector<8x128xf32> -> vector<16x128xf32>
    %cst_126 = arith.constant dense<0.000000e+00> : vector<32x128xf32>
    %249 = tpu.matmul %245, %238, %cst_126 {dimension_numbers = #tpu.dot_dimension_numbers<[1], [0], [0], [1], [0, 0, 1, 1], [], []>} : vector<32x64xf32>, vector<64x128xf32>, vector<32x128xf32> -> vector<32x128xf32>
    %250 = vector.extract_strided_slice %249 {offsets = [0, 0], sizes = [16, 128], strides = [1, 1]} : vector<32x128xf32> to vector<16x128xf32>
    %251 = arith.addf %230, %250 : vector<16x128xf32>
    %252 = vector.extract_strided_slice %249 {offsets = [16, 0], sizes = [16, 128], strides = [1, 1]} : vector<32x128xf32> to vector<16x128xf32>
    %253 = arith.mulf %252, %193 : vector<16x128xf32>
    %254 = arith.subf %253, %248 : vector<16x128xf32>
    %255 = vector.extract_strided_slice %182 {offsets = [0, 32], sizes = [64, 16], strides = [1, 1]} : vector<64x64xf32> to vector<64x16xf32>
    %cst_127 = arith.constant dense<0.000000e+00> : vector<64x128xf32>
    %256 = tpu.matmul %255, %254, %cst_127 {dimension_numbers = #tpu.dot_dimension_numbers<[1], [0], [0], [1], [0, 0, 1, 1], [], []>} : vector<64x16xf32>, vector<16x128xf32>, vector<64x128xf32> -> vector<64x128xf32>
    %cst_128 = arith.constant 0.00999999977 : f32
    %257 = vector.broadcast %cst_128 : f32 to vector<64x128xf32>
    %258 = arith.mulf %257, %256 : vector<64x128xf32>
    %259 = arith.subf %238, %258 : vector<64x128xf32>
    %c24_129 = arith.constant 24 : index
    %c0_130 = arith.constant 0 : index
    %260 = vector.load %arg3[%c24_129, %c0_130] : memref<64x192xf32, #tpu.memory_space<vmem>>, vector<8x64xf32>
    %c56_131 = arith.constant 56 : index
    %c0_132 = arith.constant 0 : index
    %261 = vector.load %arg3[%c56_131, %c0_132] : memref<64x192xf32, #tpu.memory_space<vmem>>, vector<8x64xf32>
    %c24_133 = arith.constant 24 : index
    %c64_134 = arith.constant 64 : index
    %262 = vector.load %arg3[%c24_133, %c64_134] : memref<64x192xf32, #tpu.memory_space<vmem>>, vector<8x64xf32>
    %c56_135 = arith.constant 56 : index
    %c64_136 = arith.constant 64 : index
    %263 = vector.load %arg3[%c56_135, %c64_136] : memref<64x192xf32, #tpu.memory_space<vmem>>, vector<8x64xf32>
    %264 = tpu.concatenate %260, %261, %262, %263 in 0 : vector<8x64xf32>, vector<8x64xf32>, vector<8x64xf32>, vector<8x64xf32> -> vector<32x64xf32>
    %cst_137 = arith.constant dense<0.000000e+00> : vector<32x128xf32>
    %265 = tpu.matmul %264, %259, %cst_137 {dimension_numbers = #tpu.dot_dimension_numbers<[1], [0], [0], [1], [0, 0, 1, 1], [], []>} : vector<32x64xf32>, vector<64x128xf32>, vector<32x128xf32> -> vector<32x128xf32>
    %266 = vector.extract_strided_slice %265 {offsets = [0, 0], sizes = [16, 128], strides = [1, 1]} : vector<32x128xf32> to vector<16x128xf32>
    %267 = arith.addf %251, %266 : vector<16x128xf32>
    %268 = vector.extract_strided_slice %267 {offsets = [0, 0], sizes = [8, 64], strides = [1, 1]} : vector<16x128xf32> to vector<8x64xf32>
    %cst_138 = arith.constant dense<0.000000e+00> : vector<64xf32>
    %269 = vector.multi_reduction <add>, %268, %cst_138 [0] : vector<8x64xf32> to vector<64xf32>
    %270 = vector.shape_cast %269 : vector<64xf32> to vector<1x64xf32>
    %271 = vector.extract_strided_slice %267 {offsets = [8, 64], sizes = [8, 64], strides = [1, 1]} : vector<16x128xf32> to vector<8x64xf32>
    %cst_139 = arith.constant dense<0.000000e+00> : vector<64xf32>
    %272 = vector.multi_reduction <add>, %271, %cst_139 [0] : vector<8x64xf32> to vector<64xf32>
    %273 = vector.shape_cast %272 : vector<64xf32> to vector<1x64xf32>
    %cst_140 = arith.constant 0.000000e+00 : f32
    %274 = vector.broadcast %cst_140 : f32 to vector<6x64xf32>
    %275 = tpu.concatenate %270, %273, %274 in 0 : vector<1x64xf32>, vector<1x64xf32>, vector<6x64xf32> -> vector<8x64xf32>
    %cst_141 = arith.constant 3.125000e-02 : f32
    %276 = vector.broadcast %cst_141 : f32 to vector<8x64xf32>
    %277 = arith.mulf %275, %276 : vector<8x64xf32>
    %c256 = arith.constant 256 : index
    %c0_142 = arith.constant 0 : index
    %278 = vector.load %arg1[%c256, %c0_142] : memref<432x192xf32, #tpu.memory_space<vmem>>, vector<64x64xf32>
    %cst_143 = arith.constant dense<0.000000e+00> : vector<8x64xf32>
    %279 = tpu.matmul %277, %278, %cst_143 {dimension_numbers = #tpu.dot_dimension_numbers<[1], [0], [0], [1], [0, 0, 1, 1], [], []>} : vector<8x64xf32>, vector<64x64xf32>, vector<8x64xf32> -> vector<8x64xf32>
    %c424 = arith.constant 424 : index
    %c0_144 = arith.constant 0 : index
    %280 = vector.load %arg1[%c424, %c0_144] : memref<432x192xf32, #tpu.memory_space<vmem>>, vector<1x64xf32>
    %281 = vector.broadcast %280 : vector<1x64xf32> to vector<8x64xf32>
    %282 = arith.addf %279, %281 : vector<8x64xf32>
    %c425 = arith.constant 425 : index
    %c0_145 = arith.constant 0 : index
    %283 = vector.load %arg1[%c425, %c0_145] : memref<432x192xf32, #tpu.memory_space<vmem>>, vector<1x64xf32>
    %c426 = arith.constant 426 : index
    %c0_146 = arith.constant 0 : index
    %284 = vector.load %arg1[%c426, %c0_146] : memref<432x192xf32, #tpu.memory_space<vmem>>, vector<1x64xf32>
    %cst_147 = arith.constant dense<0.000000e+00> : vector<8xf32>
    %285 = vector.multi_reduction <add>, %282, %cst_147 [1] : vector<8x64xf32> to vector<8xf32>
    %286 = vector.shape_cast %285 : vector<8xf32> to vector<8x1xf32>
    %cst_148 = arith.constant 6.400000e+01 : f32
    %287 = vector.broadcast %cst_148 : f32 to vector<8x1xf32>
    %288 = arith.divf %286, %287 : vector<8x1xf32>
    %289 = vector.broadcast %288 : vector<8x1xf32> to vector<8x64xf32>
    %290 = arith.subf %282, %289 : vector<8x64xf32>
    %291 = arith.mulf %290, %290 : vector<8x64xf32>
    %cst_149 = arith.constant dense<0.000000e+00> : vector<8xf32>
    %292 = vector.multi_reduction <add>, %291, %cst_149 [1] : vector<8x64xf32> to vector<8xf32>
    %293 = vector.shape_cast %292 : vector<8xf32> to vector<8x1xf32>
    %cst_150 = arith.constant 6.400000e+01 : f32
    %294 = vector.broadcast %cst_150 : f32 to vector<8x1xf32>
    %295 = arith.divf %293, %294 : vector<8x1xf32>
    %296 = vector.broadcast %288 : vector<8x1xf32> to vector<8x64xf32>
    %297 = arith.subf %282, %296 : vector<8x64xf32>
    %cst_151 = arith.constant 9.99999974E-6 : f32
    %298 = vector.broadcast %cst_151 : f32 to vector<8x1xf32>
    %299 = arith.addf %295, %298 : vector<8x1xf32>
    %300 = math.rsqrt %299 : vector<8x1xf32>
    %301 = vector.broadcast %300 : vector<8x1xf32> to vector<8x64xf32>
    %302 = arith.mulf %297, %301 : vector<8x64xf32>
    %303 = vector.broadcast %283 : vector<1x64xf32> to vector<8x64xf32>
    %304 = arith.mulf %302, %303 : vector<8x64xf32>
    %305 = vector.broadcast %284 : vector<1x64xf32> to vector<8x64xf32>
    %306 = arith.addf %304, %305 : vector<8x64xf32>
    %cst_152 = arith.constant 5.000000e-01 : f32
    %307 = vector.broadcast %cst_152 : f32 to vector<8x64xf32>
    %308 = arith.mulf %307, %306 : vector<8x64xf32>
    %cst_153 = arith.constant 0.707106769 : f32
    %309 = vector.broadcast %cst_153 : f32 to vector<8x64xf32>
    %310 = arith.mulf %306, %309 : vector<8x64xf32>
    %311 = math.erf %310 : vector<8x64xf32>
    %cst_154 = arith.constant 1.000000e+00 : f32
    %312 = vector.broadcast %cst_154 : f32 to vector<8x64xf32>
    %313 = arith.addf %312, %311 : vector<8x64xf32>
    %314 = arith.mulf %308, %313 : vector<8x64xf32>
    %c320 = arith.constant 320 : index
    %c0_155 = arith.constant 0 : index
    %315 = vector.load %arg1[%c320, %c0_155] : memref<432x192xf32, #tpu.memory_space<vmem>>, vector<64x32xf32>
    %cst_156 = arith.constant dense<0.000000e+00> : vector<8x32xf32>
    %316 = tpu.matmul %314, %315, %cst_156 {dimension_numbers = #tpu.dot_dimension_numbers<[1], [0], [0], [1], [0, 0, 1, 1], [], []>} : vector<8x64xf32>, vector<64x32xf32>, vector<8x32xf32> -> vector<8x32xf32>
    %c427 = arith.constant 427 : index
    %c0_157 = arith.constant 0 : index
    %317 = vector.load %arg1[%c427, %c0_157] : memref<432x192xf32, #tpu.memory_space<vmem>>, vector<1x32xf32>
    %318 = vector.broadcast %317 : vector<1x32xf32> to vector<8x32xf32>
    %319 = arith.addf %316, %318 : vector<8x32xf32>
    %c428 = arith.constant 428 : index
    %c0_158 = arith.constant 0 : index
    %320 = vector.load %arg1[%c428, %c0_158] : memref<432x192xf32, #tpu.memory_space<vmem>>, vector<1x32xf32>
    %c429 = arith.constant 429 : index
    %c0_159 = arith.constant 0 : index
    %321 = vector.load %arg1[%c429, %c0_159] : memref<432x192xf32, #tpu.memory_space<vmem>>, vector<1x32xf32>
    %cst_160 = arith.constant dense<0.000000e+00> : vector<8xf32>
    %322 = vector.multi_reduction <add>, %319, %cst_160 [1] : vector<8x32xf32> to vector<8xf32>
    %323 = vector.shape_cast %322 : vector<8xf32> to vector<8x1xf32>
    %cst_161 = arith.constant 3.200000e+01 : f32
    %324 = vector.broadcast %cst_161 : f32 to vector<8x1xf32>
    %325 = arith.divf %323, %324 : vector<8x1xf32>
    %326 = vector.broadcast %325 : vector<8x1xf32> to vector<8x32xf32>
    %327 = arith.subf %319, %326 : vector<8x32xf32>
    %328 = arith.mulf %327, %327 : vector<8x32xf32>
    %cst_162 = arith.constant dense<0.000000e+00> : vector<8xf32>
    %329 = vector.multi_reduction <add>, %328, %cst_162 [1] : vector<8x32xf32> to vector<8xf32>
    %330 = vector.shape_cast %329 : vector<8xf32> to vector<8x1xf32>
    %cst_163 = arith.constant 3.200000e+01 : f32
    %331 = vector.broadcast %cst_163 : f32 to vector<8x1xf32>
    %332 = arith.divf %330, %331 : vector<8x1xf32>
    %333 = vector.broadcast %325 : vector<8x1xf32> to vector<8x32xf32>
    %334 = arith.subf %319, %333 : vector<8x32xf32>
    %cst_164 = arith.constant 9.99999974E-6 : f32
    %335 = vector.broadcast %cst_164 : f32 to vector<8x1xf32>
    %336 = arith.addf %332, %335 : vector<8x1xf32>
    %337 = math.rsqrt %336 : vector<8x1xf32>
    %338 = vector.broadcast %337 : vector<8x1xf32> to vector<8x32xf32>
    %339 = arith.mulf %334, %338 : vector<8x32xf32>
    %340 = vector.broadcast %320 : vector<1x32xf32> to vector<8x32xf32>
    %341 = arith.mulf %339, %340 : vector<8x32xf32>
    %342 = vector.broadcast %321 : vector<1x32xf32> to vector<8x32xf32>
    %343 = arith.addf %341, %342 : vector<8x32xf32>
    %cst_165 = arith.constant 5.000000e-01 : f32
    %344 = vector.broadcast %cst_165 : f32 to vector<8x32xf32>
    %345 = arith.mulf %344, %343 : vector<8x32xf32>
    %cst_166 = arith.constant 0.707106769 : f32
    %346 = vector.broadcast %cst_166 : f32 to vector<8x32xf32>
    %347 = arith.mulf %343, %346 : vector<8x32xf32>
    %348 = math.erf %347 : vector<8x32xf32>
    %cst_167 = arith.constant 1.000000e+00 : f32
    %349 = vector.broadcast %cst_167 : f32 to vector<8x32xf32>
    %350 = arith.addf %349, %348 : vector<8x32xf32>
    %351 = arith.mulf %345, %350 : vector<8x32xf32>
    %c384 = arith.constant 384 : index
    %c0_168 = arith.constant 0 : index
    %352 = vector.load %arg1[%c384, %c0_168] : memref<432x192xf32, #tpu.memory_space<vmem>>, vector<32x128xf32>
    %cst_169 = arith.constant dense<0.000000e+00> : vector<8x128xf32>
    %353 = tpu.matmul %351, %352, %cst_169 {dimension_numbers = #tpu.dot_dimension_numbers<[1], [0], [0], [1], [0, 0, 1, 1], [], []>} : vector<8x32xf32>, vector<32x128xf32>, vector<8x128xf32> -> vector<8x128xf32>
    %c430 = arith.constant 430 : index
    %c0_170 = arith.constant 0 : index
    %354 = vector.load %arg1[%c430, %c0_170] : memref<432x192xf32, #tpu.memory_space<vmem>>, vector<1x128xf32>
    %355 = vector.broadcast %354 : vector<1x128xf32> to vector<8x128xf32>
    %356 = arith.addf %353, %355 : vector<8x128xf32>
    %c0_171 = arith.constant 0 : index
    %c0_172 = arith.constant 0 : index
    %357 = vector.load %arg2[%c0_171, %c0_172] : memref<8x128xf32, #tpu.memory_space<vmem>>, vector<8x128xf32>
    tpu.vector_store %arg2[%c0_171, %c0_172], %356 {strides = array<i32>} : memref<8x128xf32, #tpu.memory_space<vmem>>, vector<8x128xf32>,
    return
  }
}

</mosaic_0001>

<llo_original>
// kernel: titans_eeg_forward.1
$region0: #{titans_eeg_forward.1}
  #allocation0 [shape = 'u32[]', space=smem, size = 0x4, offset = 0x4, fixed_abs, tag = 'smem constant byte address 0x4 - core index']
  #allocation1 [shape = 'u32[144,128]{1,0:T(1,128)}', space=vmem, size = 0x12000, scoped, tag = 'internal scratch']
  #allocation2 [shape = 'f32[64,192]{1,0:T(8,128)}', space=vmem, size = 0x10000, scoped, tag = 'scratch operand']
  %s0 = inlined_call_operand.vmem [shape: f32[64,16], index: 0, kind: input, shape index: {}]
  %s1 = inlined_call_operand.vmem [shape: f32[432,192], index: 1, kind: input, shape index: {}]
  %s2 = inlined_call_operand.vmem [shape: f32[8,128], index: 2, kind: output, shape index: {}]
  %s3 = sld [smem:[#allocation0]]
  $region18: #{titans_eeg_forward.1} parent=0
    _
  %s5 = ssub.s32 1, %s3
  %s6 = scalar_select 0, %s5, %s3
  // Predicated region
  $region2: #{titans_eeg_forward.1} parent=0 // pred_check
    _
  $region3: #{titans_eeg_forward.1} parent=0 // pred_check_branch
    %8 = sbr.rel (0) target = $region5
  $region4: #{titans_eeg_forward.1} parent=0 // pred_region
    _
  $region5: #{titans_eeg_forward.1} parent=0 // pred_fallthru
    _
  // Predicated region
  $region6: #{titans_eeg_forward.1} parent=0 // pred_check
    _
  $region7: #{titans_eeg_forward.1} parent=0 // pred_check_branch
    %10 = sbr.rel (0) target = $region9
  $region8: #{titans_eeg_forward.1} parent=0 // pred_region
    _
  $region9: #{titans_eeg_forward.1} parent=0 // pred_fallthru
    _
  %v11 = vld [vmem:[%s0] sm:$0xff]
  %v12 = vld [vmem:[%s0 + $0x8] sm:$0xff]
  %v13 = vld [vmem:[%s0 + $0x10] sm:$0xff]
  %v14 = vld [vmem:[%s0 + $0x18] sm:$0xff]
  %v15 = vld [vmem:[%s0 + $0x20] sm:$0xff]
  %v16 = vld [vmem:[%s0 + $0x28] sm:$0xff]
  %v17 = vld [vmem:[%s0 + $0x30] sm:$0xff]
  %v18 = vld [vmem:[%s0 + $0x38] sm:$0xff]
  %v19 = vld [vmem:[%s1] sm:$0xff]
  %v20 = vld [vmem:[%s1 + $0x10] sm:$0xff]
  %v21 = vld [vmem:[%s1 + $0x340] ss:$0 sm:$0xff]
  %vm22 = vcmask 130048
  %v24 = vsel %vm22, %v11, 0
  %v27 = vsel %vm22, %v12, 0
  %v30 = vsel %vm22, %v13, 0
  %v33 = vsel %vm22, %v14, 0
  %v36 = vsel %vm22, %v15, 0
  %v39 = vsel %vm22, %v16, 0
  %v42 = vsel %vm22, %v17, 0
  %v45 = vsel %vm22, %v18, 0
  %47 = vmatprep.subr.mxu0 0.0
  %48 = vmatpush1.msra.mxu0 0.0
  %49 = vmatprep.subr.mxu0 0.0
  %50 = vmatpush1.msra.mxu0 0.0
  %51 = vmatprep.subr.mxu0 0.0
  %52 = vmatpush1.msra.mxu0 0.0
  %53 = vmatprep.subr.mxu0 0.0
  %54 = vmatpush1.msra.mxu0 0.0
  %55 = vmatprep.subr.mxu0 0.0
  %56 = vmatpush1.msra.mxu0 0.0
  %57 = vmatprep.subr.mxu0 0.0
  %58 = vmatpush1.msra.mxu0 0.0
  %59 = vmatprep.subr.mxu0 0.0
  %60 = vmatpush1.msra.mxu0 0.0
  %61 = vmatprep.subr.mxu0 0.0
  %62 = vmatpush1.msra.mxu0 0.0
  %63 = vmatprep.subr.mxu0 0.0
  %64 = vmatpush1.msra.mxu0 0.0
  %65 = vmatprep.subr.mxu0 0.0
  %66 = vmatpush1.msra.mxu0 0.0
  %67 = vmatprep.subr.mxu0 0.0
  %68 = vmatpush1.msra.mxu0 0.0
  %69 = vmatprep.subr.mxu0 0.0
  %70 = vmatpush1.msra.mxu0 0.0
  %71 = vmatprep.subr.mxu0 0.0
  %72 = vmatpush1.msra.mxu0 0.0
  %73 = vmatprep.subr.mxu0 0.0
  %74 = vmatpush1.msra.mxu0 0.0
  %75 = vmatprep.subr.mxu0 0.0
  %76 = vmatpush1.msra.mxu0 %v20
  %77 = vmatprep.subr.mxu0 0.0
  %78 = vmatpush1.msra.mxu0 %v19
  %79 = vmatprep.subr.mxu0 0.0
  %80 = vmatpush2.msra.mxu0 0.0
  %81 = vmatprep.subr.mxu0 0.0
  %82 = vmatpush2.msra.mxu0 0.0
  %83 = vmatprep.subr.mxu0 0.0
  %84 = vmatpush2.msra.mxu0 0.0
  %85 = vmatprep.subr.mxu0 0.0
  %86 = vmatpush2.msra.mxu0 0.0
  %87 = vmatprep.subr.mxu0 0.0
  %88 = vmatpush2.msra.mxu0 0.0
  %89 = vmatprep.subr.mxu0 0.0
  %90 = vmatpush2.msra.mxu0 0.0
  %91 = vmatprep.subr.mxu0 0.0
  %92 = vmatpush2.msra.mxu0 0.0
  %93 = vmatprep.subr.mxu0 0.0
  %94 = vmatpush2.msra.mxu0 0.0
  %95 = vmatprep.subr.mxu0 0.0
  %96 = vmatpush2.msra.mxu0 0.0
  %97 = vmatprep.subr.mxu0 0.0
  %98 = vmatpush2.msra.mxu0 0.0
  %99 = vmatprep.subr.mxu0 0.0
  %100 = vmatpush2.msra.mxu0 0.0
  %101 = vmatprep.subr.mxu0 0.0
  %102 = vmatpush2.msra.mxu0 0.0
  %103 = vmatprep.subr.mxu0 0.0
  %104 = vmatpush2.msra.mxu0 0.0
  %105 = vmatprep.subr.mxu0 0.0
  %106 = vmatpush2.msra.mxu0 0.0
  %107 = vmatprep.subr.mxu0 0.0
  %108 = vmatpush2.msra.mxu0 0.0
  %109 = vmatprep.subr.mxu0 0.0
  %110 = vmatpush2.msra.mxu0 0.0
  %111 = vmatprep.mubr.f32.mxu0 0.0
  %112 = vmatmul.mubr.f32.gmra.mxu0 %v24
  %v113 = vpop.f32.mrf.mxu0
  %v114 = vadd.f32 %v21, %v113
  %v115 = vpop.f32.mrf.mxu0
  %116 = vmatprep.mubr.f32.mxu0 0.0
  %117 = vmatmul.mubr.f32.gmra.mxu0 %v27
  %v118 = vpop.f32.mrf.mxu0
  %v119 = vadd.f32 %v21, %v118
  %v120 = vpop.f32.mrf.mxu0
  %121 = vmatprep.mubr.f32.mxu0 0.0
  %122 = vmatmul.mubr.f32.gmra.mxu0 %v30
  %v123 = vpop.f32.mrf.mxu0
  %v124 = vadd.f32 %v21, %v123
  %v125 = vpop.f32.mrf.mxu0
  %126 = vmatprep.mubr.f32.mxu0 0.0
  %127 = vmatmul.mubr.f32.gmra.mxu0 %v33
  %v128 = vpop.f32.mrf.mxu0
  %v129 = vadd.f32 %v21, %v128
  %v130 = vpop.f32.mrf.mxu0
  %131 = vmatprep.mubr.f32.mxu0 0.0
  %132 = vmatmul.mubr.f32.gmra.mxu0 %v36
  %v133 = vpop.f32.mrf.mxu0
  %v134 = vadd.f32 %v21, %v133
  %v135 = vpop.f32.mrf.mxu0
  %136 = vmatprep.mubr.f32.mxu0 0.0
  %137 = vmatmul.mubr.f32.gmra.mxu0 %v39
  %v138 = vpop.f32.mrf.mxu0
  %v139 = vadd.f32 %v21, %v138
  %v140 = vpop.f32.mrf.mxu0
  %141 = vmatprep.mubr.f32.mxu0 0.0
  %142 = vmatmul.mubr.f32.gmra.mxu0 %v42
  %v143 = vpop.f32.mrf.mxu0
  %v144 = vadd.f32 %v21, %v143
  %v145 = vpop.f32.mrf.mxu0
  %146 = vmatprep.mubr.f32.mxu0 0.0
  %147 = vmatmul.mubr.f32.gmra.mxu0 %v45
  %v148 = vpop.f32.mrf.mxu0
  %v149 = vadd.f32 %v21, %v148
  %v150 = vpop.f32.mrf.mxu0
  %151 = vdwg.mxu0
  %vm152 = vcmp.gt.f32.partialorder %v114, 0.0
  %vm153 = vcmp.gt.f32.partialorder %v119, 0.0
  %vm154 = vcmp.gt.f32.partialorder %v124, 0.0
  %vm155 = vcmp.gt.f32.partialorder %v129, 0.0
  %vm156 = vcmp.gt.f32.partialorder %v134, 0.0
  %vm157 = vcmp.gt.f32.partialorder %v139, 0.0
  %vm158 = vcmp.gt.f32.partialorder %v144, 0.0
  %vm159 = vcmp.gt.f32.partialorder %v149, 0.0
  %v160 = vmul.f32 %v114, 1.442695
  %v161 = vpow.pop %v160
  %v162 = vmul.f32 %v119, 1.442695
  %v163 = vpow.pop %v162
  %v164 = vmul.f32 %v124, 1.442695
  %v165 = vpow.pop %v164
  %v166 = vmul.f32 %v129, 1.442695
  %v167 = vpow.pop %v166
  %v168 = vmul.f32 %v134, 1.442695
  %v169 = vpow.pop %v168
  %v170 = vmul.f32 %v139, 1.442695
  %v171 = vpow.pop %v170
  %v172 = vmul.f32 %v144, 1.442695
  %v173 = vpow.pop %v172
  %v174 = vmul.f32 %v149, 1.442695
  %v175 = vpow.pop %v174
  %v176 = vsub.f32 %v161, 1.0
  %v177 = vsub.f32 %v163, 1.0
  %v178 = vsub.f32 %v165, 1.0
  %v179 = vsub.f32 %v167, 1.0
  %v180 = vsub.f32 %v169, 1.0
  %v181 = vsub.f32 %v171, 1.0
  %v182 = vsub.f32 %v173, 1.0
  %v183 = vsub.f32 %v175, 1.0
  %v184 = vsel %vm152, %v114, %v176
  %v185 = vsel %vm153, %v119, %v177
  %v186 = vsel %vm154, %v124, %v178
  %v187 = vsel %vm155, %v129, %v179
  %v188 = vsel %vm156, %v134, %v180
  %v189 = vsel %vm157, %v139, %v181
  %v190 = vsel %vm158, %v144, %v182
  %v191 = vsel %vm159, %v149, %v183
  %v192 = vlaneseq
  %v193 = vshrl.u32 %v192, 7
  %v194 = vadd.s32 %v193, 8
  %v195 = vadd.s32 %v193, 16
  %v196 = vadd.s32 %v193, 24
  %v197 = vadd.s32 %v193, 32
  %v198 = vadd.s32 %v193, 40
  %v199 = vadd.s32 %v193, 48
  %v200 = vadd.s32 %v193, 56
  %v201 = vand.u32 %v193, 31
  %v202 = vand.u32 %v194, 31
  %v203 = vand.u32 %v195, 31
  %v204 = vand.u32 %v196, 31
  %v205 = vand.u32 %v197, 31
  %v206 = vand.u32 %v198, 31
  %v207 = vand.u32 %v199, 31
  %v208 = vand.u32 %v200, 31
  %v209 = vrot.slane %v184, 6
  %v210 = vrot.slane %v185, 6
  %v211 = vrot.slane %v186, 6
  %v212 = vrot.slane %v187, 6
  %v213 = vrot.slane %v188, 6
  %v214 = vrot.slane %v189, 6
  %v215 = vrot.slane %v190, 6
  %v216 = vrot.slane %v191, 6
  %vm217 = vcmp.lt.s32.totalorder %v193, 2
  %v218 = vsel %vm217, %v215, %v216
  %v219 = vsel %vm217, %v214, %v215
  %v220 = vsel %vm217, %v213, %v214
  %v221 = vsel %vm217, %v212, %v213
  %v222 = vsel %vm217, %v211, %v212
  %v223 = vsel %vm217, %v210, %v211
  %v224 = vsel %vm217, %v209, %v210
  %v225 = vsel %vm217, %v216, %v209
  %v226 = vadd.s32 %v201, 4294967294
  %v227 = vadd.s32 %v202, 4294967294
  %v228 = vadd.s32 %v203, 4294967294
  %v229 = vadd.s32 %v204, 4294967294
  %v230 = vadd.s32 %v205, 4294967294
  %v231 = vadd.s32 %v206, 4294967294
  %v232 = vadd.s32 %v207, 4294967294
  %v233 = vadd.s32 %v208, 4294967294
  %vm234 = vcmp.ge.s32.totalorder %v226, 0
  %vm235 = vcmp.ge.s32.totalorder %v227, 0
  %vm236 = vcmp.ge.s32.totalorder %v228, 0
  %vm237 = vcmp.ge.s32.totalorder %v229, 0
  %vm238 = vcmp.ge.s32.totalorder %v230, 0
  %vm239 = vcmp.ge.s32.totalorder %v231, 0
  %vm240 = vcmp.ge.s32.totalorder %v232, 0
  %vm241 = vcmp.ge.s32.totalorder %v233, 0
  %vm242 = vcmp.lt.s32.totalorder %v226, 32
  %vm243 = vcmp.lt.s32.totalorder %v227, 32
  %vm244 = vcmp.lt.s32.totalorder %v228, 32
  %vm245 = vcmp.lt.s32.totalorder %v229, 32
  %vm246 = vcmp.lt.s32.totalorder %v230, 32
  %vm247 = vcmp.lt.s32.totalorder %v231, 32
  %vm248 = vcmp.lt.s32.totalorder %v232, 32
  %vm249 = vcmp.lt.s32.totalorder %v233, 32
  %vm250 = vmand %vm234, %vm242
  %vm251 = vmand %vm235, %vm243
  %vm252 = vmand %vm236, %vm244
  %vm253 = vmand %vm237, %vm245
  %vm254 = vmand %vm238, %vm246
  %vm255 = vmand %vm239, %vm247
  %vm256 = vmand %vm240, %vm248
  %vm257 = vmand %vm241, %vm249
  %v258 = vsel %vm250, 1, 0
  %v259 = vsel %vm251, 1, 0
  %v260 = vsel %vm252, 1, 0
  %v261 = vsel %vm253, 1, 0
  %v262 = vsel %vm254, 1, 0
  %v263 = vsel %vm255, 1, 0
  %v264 = vsel %vm256, 1, 0
  %v265 = vsel %vm257, 1, 0
  %vm266 = vcmp.eq.s32.totalorder %v258, 1
  %vm267 = vcmp.eq.s32.totalorder %v259, 1
  %vm268 = vcmp.eq.s32.totalorder %v260, 1
  %vm269 = vcmp.eq.s32.totalorder %v261, 1
  %vm270 = vcmp.eq.s32.totalorder %v262, 1
  %vm271 = vcmp.eq.s32.totalorder %v263, 1
  %vm272 = vcmp.eq.s32.totalorder %v264, 1
  %vm273 = vcmp.eq.s32.totalorder %v265, 1
  %v274 = vsel %vm266, %v225, 0.0
  %v275 = vsel %vm267, %v224, 0.0
  %v276 = vsel %vm268, %v223, 0.0
  %v277 = vsel %vm269, %v222, 0.0
  %v278 = vsel %vm270, %v221, 0.0
  %v279 = vsel %vm271, %v220, 0.0
  %v280 = vsel %vm272, %v219, 0.0
  %v281 = vsel %vm273, %v218, 0.0
  %v282 = vld [vmem:[%s1 + $0x20] sm:$0xff]
  %v283 = vld [vmem:[%s1 + $0x30] sm:$0xff]
  %v284 = vrot.slane %v184, 7
  %v285 = vrot.slane %v185, 7
  %v286 = vrot.slane %v186, 7
  %v287 = vrot.slane %v187, 7
  %v288 = vrot.slane %v188, 7
  %v289 = vrot.slane %v189, 7
  %v290 = vrot.slane %v190, 7
  %v291 = vrot.slane %v191, 7
  %vm292 = vcmp.lt.s32.totalorder %v193, 1
  %v293 = vsel %vm292, %v290, %v291
  %v294 = vsel %vm292, %v289, %v290
  %v295 = vsel %vm292, %v288, %v289
  %v296 = vsel %vm292, %v287, %v288
  %v297 = vsel %vm292, %v286, %v287
  %v298 = vsel %vm292, %v285, %v286
  %v299 = vsel %vm292, %v284, %v285
  %v300 = vsel %vm292, %v291, %v284
  %v301 = vadd.s32 %v201, 4294967295
  %v302 = vadd.s32 %v202, 4294967295
  %v303 = vadd.s32 %v203, 4294967295
  %v304 = vadd.s32 %v204, 4294967295
  %v305 = vadd.s32 %v205, 4294967295
  %v306 = vadd.s32 %v206, 4294967295
  %v307 = vadd.s32 %v207, 4294967295
  %v308 = vadd.s32 %v208, 4294967295
  %vm309 = vcmp.ge.s32.totalorder %v301, 0
  %vm310 = vcmp.ge.s32.totalorder %v302, 0
  %vm311 = vcmp.ge.s32.totalorder %v303, 0
  %vm312 = vcmp.ge.s32.totalorder %v304, 0
  %vm313 = vcmp.ge.s32.totalorder %v305, 0
  %vm314 = vcmp.ge.s32.totalorder %v306, 0
  %vm315 = vcmp.ge.s32.totalorder %v307, 0
  %vm316 = vcmp.ge.s32.totalorder %v308, 0
  %vm317 = vcmp.lt.s32.totalorder %v301, 32
  %vm318 = vcmp.lt.s32.totalorder %v302, 32
  %vm319 = vcmp.lt.s32.totalorder %v303, 32
  %vm320 = vcmp.lt.s32.totalorder %v304, 32
  %vm321 = vcmp.lt.s32.totalorder %v305, 32
  %vm322 = vcmp.lt.s32.totalorder %v306, 32
  %vm323 = vcmp.lt.s32.totalorder %v307, 32
  %vm324 = vcmp.lt.s32.totalorder %v308, 32
  %vm325 = vmand %vm309, %vm317
  %vm326 = vmand %vm310, %vm318
  %vm327 = vmand %vm311, %vm319
  %vm328 = vmand %vm312, %vm320
  %vm329 = vmand %vm313, %vm321
  %vm330 = vmand %vm314, %vm322
  %vm331 = vmand %vm315, %vm323
  %vm332 = vmand %vm316, %vm324
  %v333 = vsel %vm325, 1, 0
  %v334 = vsel %vm326, 1, 0
  %v335 = vsel %vm327, 1, 0
  %v336 = vsel %vm328, 1, 0
  %v337 = vsel %vm329, 1, 0
  %v338 = vsel %vm330, 1, 0
  %v339 = vsel %vm331, 1, 0
  %v340 = vsel %vm332, 1, 0
  %vm341 = vcmp.eq.s32.totalorder %v333, 1
  %vm342 = vcmp.eq.s32.totalorder %v334, 1
  %vm343 = vcmp.eq.s32.totalorder %v335, 1
  %vm344 = vcmp.eq.s32.totalorder %v336, 1
  %vm345 = vcmp.eq.s32.totalorder %v337, 1
  %vm346 = vcmp.eq.s32.totalorder %v338, 1
  %vm347 = vcmp.eq.s32.totalorder %v339, 1
  %vm348 = vcmp.eq.s32.totalorder %v340, 1
  %v349 = vsel %vm341, %v300, 0.0
  %v350 = vsel %vm342, %v299, 0.0
  %v351 = vsel %vm343, %v298, 0.0
  %v352 = vsel %vm344, %v297, 0.0
  %v353 = vsel %vm345, %v296, 0.0
  %v354 = vsel %vm346, %v295, 0.0
  %v355 = vsel %vm347, %v294, 0.0
  %v356 = vsel %vm348, %v293, 0.0
  %v357 = vld [vmem:[%s1 + $0x40] sm:$0xff]
  %v358 = vld [vmem:[%s1 + $0x50] sm:$0xff]
  %v360 = vsel %vm22, %v349, 0
  %v363 = vsel %vm22, %v350, 0
  %v366 = vsel %vm22, %v351, 0
  %v369 = vsel %vm22, %v352, 0
  %v372 = vsel %vm22, %v353, 0
  %v375 = vsel %vm22, %v354, 0
  %v378 = vsel %vm22, %v355, 0
  %v381 = vsel %vm22, %v356, 0
  %383 = vmatprep.subr.mxu0 0.0
  %384 = vmatpush1.msra.mxu0 0.0
  %385 = vmatprep.subr.mxu0 0.0
  %386 = vmatpush1.msra.mxu0 0.0
  %387 = vmatprep.subr.mxu0 0.0
  %388 = vmatpush1.msra.mxu0 0.0
  %389 = vmatprep.subr.mxu0 0.0
  %390 = vmatpush1.msra.mxu0 0.0
  %391 = vmatprep.subr.mxu0 0.0
  %392 = vmatpush1.msra.mxu0 0.0
  %393 = vmatprep.subr.mxu0 0.0
  %394 = vmatpush1.msra.mxu0 0.0
  %395 = vmatprep.subr.mxu0 0.0
  %396 = vmatpush1.msra.mxu0 0.0
  %397 = vmatprep.subr.mxu0 0.0
  %398 = vmatpush1.msra.mxu0 0.0
  %399 = vmatprep.subr.mxu0 0.0
  %400 = vmatpush1.msra.mxu0 0.0
  %401 = vmatprep.subr.mxu0 0.0
  %402 = vmatpush1.msra.mxu0 0.0
  %403 = vmatprep.subr.mxu0 0.0
  %404 = vmatpush1.msra.mxu0 0.0
  %405 = vmatprep.subr.mxu0 0.0
  %406 = vmatpush1.msra.mxu0 0.0
  %407 = vmatprep.subr.mxu0 0.0
  %408 = vmatpush1.msra.mxu0 0.0
  %409 = vmatprep.subr.mxu0 0.0
  %410 = vmatpush1.msra.mxu0 0.0
  %411 = vmatprep.subr.mxu0 0.0
  %412 = vmatpush1.msra.mxu0 %v358
  %413 = vmatprep.subr.mxu0 0.0
  %414 = vmatpush1.msra.mxu0 %v357
  %415 = vmatprep.subr.mxu0 0.0
  %416 = vmatpush2.msra.mxu0 0.0
  %417 = vmatprep.subr.mxu0 0.0
  %418 = vmatpush2.msra.mxu0 0.0
  %419 = vmatprep.subr.mxu0 0.0
  %420 = vmatpush2.msra.mxu0 0.0
  %421 = vmatprep.subr.mxu0 0.0
  %422 = vmatpush2.msra.mxu0 0.0
  %423 = vmatprep.subr.mxu0 0.0
  %424 = vmatpush2.msra.mxu0 0.0
  %425 = vmatprep.subr.mxu0 0.0
  %426 = vmatpush2.msra.mxu0 0.0
  %427 = vmatprep.subr.mxu0 0.0
  %428 = vmatpush2.msra.mxu0 0.0
  %429 = vmatprep.subr.mxu0 0.0
  %430 = vmatpush2.msra.mxu0 0.0
  %431 = vmatprep.subr.mxu0 0.0
  %432 = vmatpush2.msra.mxu0 0.0
  %433 = vmatprep.subr.mxu0 0.0
  %434 = vmatpush2.msra.mxu0 0.0
  %435 = vmatprep.subr.mxu0 0.0
  %436 = vmatpush2.msra.mxu0 0.0
  %437 = vmatprep.subr.mxu0 0.0
  %438 = vmatpush2.msra.mxu0 0.0
  %439 = vmatprep.subr.mxu0 0.0
  %440 = vmatpush2.msra.mxu0 0.0
  %441 = vmatprep.subr.mxu0 0.0
  %442 = vmatpush2.msra.mxu0 0.0
  %443 = vmatprep.subr.mxu0 0.0
  %444 = vmatpush2.msra.mxu0 0.0
  %445 = vmatprep.subr.mxu0 0.0
  %446 = vmatpush2.msra.mxu0 0.0
  %447 = vmatprep.mubr.f32.mxu0 0.0
  %448 = vmatmul.mubr.f32.gmra.mxu0 %v360
  %v449 = vpop.f32.mrf.mxu0
  %v450 = vadd.f32 0.0, %v449
  %v451 = vpop.f32.mrf.mxu0
  %452 = vmatprep.mubr.f32.mxu0 0.0
  %453 = vmatmul.mubr.f32.gmra.mxu0 %v363
  %v454 = vpop.f32.mrf.mxu0
  %v455 = vadd.f32 0.0, %v454
  %v456 = vpop.f32.mrf.mxu0
  %457 = vmatprep.mubr.f32.mxu0 0.0
  %458 = vmatmul.mubr.f32.gmra.mxu0 %v366
  %v459 = vpop.f32.mrf.mxu0
  %v460 = vadd.f32 0.0, %v459
  %v461 = vpop.f32.mrf.mxu0
  %462 = vmatprep.mubr.f32.mxu0 0.0
  %463 = vmatmul.mubr.f32.gmra.mxu0 %v369
  %v464 = vpop.f32.mrf.mxu0
  %v465 = vadd.f32 0.0, %v464
  %v466 = vpop.f32.mrf.mxu0
  %467 = vmatprep.mubr.f32.mxu0 0.0
  %468 = vmatmul.mubr.f32.gmra.mxu0 %v372
  %v469 = vpop.f32.mrf.mxu0
  %v470 = vadd.f32 0.0, %v469
  %v471 = vpop.f32.mrf.mxu0
  %472 = vmatprep.mubr.f32.mxu0 0.0
  %473 = vmatmul.mubr.f32.gmra.mxu0 %v375
  %v474 = vpop.f32.mrf.mxu0
  %v475 = vadd.f32 0.0, %v474
  %v476 = vpop.f32.mrf.mxu0
  %477 = vmatprep.mubr.f32.mxu0 0.0
  %478 = vmatmul.mubr.f32.gmra.mxu0 %v378
  %v479 = vpop.f32.mrf.mxu0
  %v480 = vadd.f32 0.0, %v479
  %v481 = vpop.f32.mrf.mxu0
  %482 = vmatprep.mubr.f32.mxu0 0.0
  %483 = vmatmul.mubr.f32.gmra.mxu0 %v381
  %v484 = vpop.f32.mrf.mxu0
  %v485 = vadd.f32 0.0, %v484
  %v486 = vpop.f32.mrf.mxu0
  %487 = vdwg.mxu0
  %v489 = vsel %vm22, %v274, 0
  %v492 = vsel %vm22, %v275, 0
  %v495 = vsel %vm22, %v276, 0
  %v498 = vsel %vm22, %v277, 0
  %v501 = vsel %vm22, %v278, 0
  %v504 = vsel %vm22, %v279, 0
  %v507 = vsel %vm22, %v280, 0
  %v510 = vsel %vm22, %v281, 0
  %512 = vmatprep.subr.mxu0 0.0
  %513 = vmatpush1.msra.mxu0 0.0
  %514 = vmatprep.subr.mxu0 0.0
  %515 = vmatpush1.msra.mxu0 0.0
  %516 = vmatprep.subr.mxu0 0.0
  %517 = vmatpush1.msra.mxu0 0.0
  %518 = vmatprep.subr.mxu0 0.0
  %519 = vmatpush1.msra.mxu0 0.0
  %520 = vmatprep.subr.mxu0 0.0
  %521 = vmatpush1.msra.mxu0 0.0
  %522 = vmatprep.subr.mxu0 0.0
  %523 = vmatpush1.msra.mxu0 0.0
  %524 = vmatprep.subr.mxu0 0.0
  %525 = vmatpush1.msra.mxu0 0.0
  %526 = vmatprep.subr.mxu0 0.0
  %527 = vmatpush1.msra.mxu0 0.0
  %528 = vmatprep.subr.mxu0 0.0
  %529 = vmatpush1.msra.mxu0 0.0
  %530 = vmatprep.subr.mxu0 0.0
  %531 = vmatpush1.msra.mxu0 0.0
  %532 = vmatprep.subr.mxu0 0.0
  %533 = vmatpush1.msra.mxu0 0.0
  %534 = vmatprep.subr.mxu0 0.0
  %535 = vmatpush1.msra.mxu0 0.0
  %536 = vmatprep.subr.mxu0 0.0
  %537 = vmatpush1.msra.mxu0 0.0
  %538 = vmatprep.subr.mxu0 0.0
  %539 = vmatpush1.msra.mxu0 0.0
  %540 = vmatprep.subr.mxu0 0.0
  %541 = vmatpush1.msra.mxu0 %v283
  %542 = vmatprep.subr.mxu0 0.0
  %543 = vmatpush1.msra.mxu0 %v282
  %544 = vmatprep.subr.mxu0 0.0
  %545 = vmatpush2.msra.mxu0 0.0
  %546 = vmatprep.subr.mxu0 0.0
  %547 = vmatpush2.msra.mxu0 0.0
  %548 = vmatprep.subr.mxu0 0.0
  %549 = vmatpush2.msra.mxu0 0.0
  %550 = vmatprep.subr.mxu0 0.0
  %551 = vmatpush2.msra.mxu0 0.0
  %552 = vmatprep.subr.mxu0 0.0
  %553 = vmatpush2.msra.mxu0 0.0
  %554 = vmatprep.subr.mxu0 0.0
  %555 = vmatpush2.msra.mxu0 0.0
  %556 = vmatprep.subr.mxu0 0.0
  %557 = vmatpush2.msra.mxu0 0.0
  %558 = vmatprep.subr.mxu0 0.0
  %559 = vmatpush2.msra.mxu0 0.0
  %560 = vmatprep.subr.mxu0 0.0
  %561 = vmatpush2.msra.mxu0 0.0
  %562 = vmatprep.subr.mxu0 0.0
  %563 = vmatpush2.msra.mxu0 0.0
  %564 = vmatprep.subr.mxu0 0.0
  %565 = vmatpush2.msra.mxu0 0.0
  %566 = vmatprep.subr.mxu0 0.0
  %567 = vmatpush2.msra.mxu0 0.0
  %568 = vmatprep.subr.mxu0 0.0
  %569 = vmatpush2.msra.mxu0 0.0
  %570 = vmatprep.subr.mxu0 0.0
  %571 = vmatpush2.msra.mxu0 0.0
  %572 = vmatprep.subr.mxu0 0.0
  %573 = vmatpush2.msra.mxu0 0.0
  %574 = vmatprep.subr.mxu0 0.0
  %575 = vmatpush2.msra.mxu0 0.0
  %576 = vmatprep.mubr.f32.mxu0 0.0
  %577 = vmatmul.mubr.f32.gmra.mxu0 %v489
  %v578 = vpop.f32.mrf.mxu0
  %v579 = vadd.f32 %v450, %v578
  %v580 = vpop.f32.mrf.mxu0
  %581 = vmatprep.mubr.f32.mxu0 0.0
  %582 = vmatmul.mubr.f32.gmra.mxu0 %v492
  %v583 = vpop.f32.mrf.mxu0
  %v584 = vadd.f32 %v455, %v583
  %v585 = vpop.f32.mrf.mxu0
  %586 = vmatprep.mubr.f32.mxu0 0.0
  %587 = vmatmul.mubr.f32.gmra.mxu0 %v495
  %v588 = vpop.f32.mrf.mxu0
  %v589 = vadd.f32 %v460, %v588
  %v590 = vpop.f32.mrf.mxu0
  %591 = vmatprep.mubr.f32.mxu0 0.0
  %592 = vmatmul.mubr.f32.gmra.mxu0 %v498
  %v593 = vpop.f32.mrf.mxu0
  %v594 = vadd.f32 %v465, %v593
  %v595 = vpop.f32.mrf.mxu0
  %596 = vmatprep.mubr.f32.mxu0 0.0
  %597 = vmatmul.mubr.f32.gmra.mxu0 %v501
  %v598 = vpop.f32.mrf.mxu0
  %v599 = vadd.f32 %v470, %v598
  %v600 = vpop.f32.mrf.mxu0
  %601 = vmatprep.mubr.f32.mxu0 0.0
  %602 = vmatmul.mubr.f32.gmra.mxu0 %v504
  %v603 = vpop.f32.mrf.mxu0
  %v604 = vadd.f32 %v475, %v603
  %v605 = vpop.f32.mrf.mxu0
  %606 = vmatprep.mubr.f32.mxu0 0.0
  %607 = vmatmul.mubr.f32.gmra.mxu0 %v507
  %v608 = vpop.f32.mrf.mxu0
  %v609 = vadd.f32 %v480, %v608
  %v610 = vpop.f32.mrf.mxu0
  %611 = vmatprep.mubr.f32.mxu0 0.0
  %612 = vmatmul.mubr.f32.gmra.mxu0 %v510
  %v613 = vpop.f32.mrf.mxu0
  %v614 = vadd.f32 %v485, %v613
  %v615 = vpop.f32.mrf.mxu0
  %616 = vdwg.mxu0
  %v617 = vld [vmem:[%s1 + $0x60] sm:$0xff]
  %v618 = vld [vmem:[%s1 + $0x70] sm:$0xff]
  %v620 = vsel %vm22, %v184, 0
  %v623 = vsel %vm22, %v185, 0
  %v626 = vsel %vm22, %v186, 0
  %v629 = vsel %vm22, %v187, 0
  %v632 = vsel %vm22, %v188, 0
  %v635 = vsel %vm22, %v189, 0
  %v638 = vsel %vm22, %v190, 0
  %v641 = vsel %vm22, %v191, 0
  %643 = vmatprep.subr.mxu0 0.0
  %644 = vmatpush1.msra.mxu0 0.0
  %645 = vmatprep.subr.mxu0 0.0
  %646 = vmatpush1.msra.mxu0 0.0
  %647 = vmatprep.subr.mxu0 0.0
  %648 = vmatpush1.msra.mxu0 0.0
  %649 = vmatprep.subr.mxu0 0.0
  %650 = vmatpush1.msra.mxu0 0.0
  %651 = vmatprep.subr.mxu0 0.0
  %652 = vmatpush1.msra.mxu0 0.0
  %653 = vmatprep.subr.mxu0 0.0
  %654 = vmatpush1.msra.mxu0 0.0
  %655 = vmatprep.subr.mxu0 0.0
  %656 = vmatpush1.msra.mxu0 0.0
  %657 = vmatprep.subr.mxu0 0.0
  %658 = vmatpush1.msra.mxu0 0.0
  %659 = vmatprep.subr.mxu0 0.0
  %660 = vmatpush1.msra.mxu0 0.0
  %661 = vmatprep.subr.mxu0 0.0
  %662 = vmatpush1.msra.mxu0 0.0
  %663 = vmatprep.subr.mxu0 0.0
  %664 = vmatpush1.msra.mxu0 0.0
  %665 = vmatprep.subr.mxu0 0.0
  %666 = vmatpush1.msra.mxu0 0.0
  %667 = vmatprep.subr.mxu0 0.0
  %668 = vmatpush1.msra.mxu0 0.0
  %669 = vmatprep.subr.mxu0 0.0
  %670 = vmatpush1.msra.mxu0 0.0
  %671 = vmatprep.subr.mxu0 0.0
  %672 = vmatpush1.msra.mxu0 %v618
  %673 = vmatprep.subr.mxu0 0.0
  %674 = vmatpush1.msra.mxu0 %v617
  %675 = vmatprep.subr.mxu0 0.0
  %676 = vmatpush2.msra.mxu0 0.0
  %677 = vmatprep.subr.mxu0 0.0
  %678 = vmatpush2.msra.mxu0 0.0
  %679 = vmatprep.subr.mxu0 0.0
  %680 = vmatpush2.msra.mxu0 0.0
  %681 = vmatprep.subr.mxu0 0.0
  %682 = vmatpush2.msra.mxu0 0.0
  %683 = vmatprep.subr.mxu0 0.0
  %684 = vmatpush2.msra.mxu0 0.0
  %685 = vmatprep.subr.mxu0 0.0
  %686 = vmatpush2.msra.mxu0 0.0
  %687 = vmatprep.subr.mxu0 0.0
  %688 = vmatpush2.msra.mxu0 0.0
  %689 = vmatprep.subr.mxu0 0.0
  %690 = vmatpush2.msra.mxu0 0.0
  %691 = vmatprep.subr.mxu0 0.0
  %692 = vmatpush2.msra.mxu0 0.0
  %693 = vmatprep.subr.mxu0 0.0
  %694 = vmatpush2.msra.mxu0 0.0
  %695 = vmatprep.subr.mxu0 0.0
  %696 = vmatpush2.msra.mxu0 0.0
  %697 = vmatprep.subr.mxu0 0.0
  %698 = vmatpush2.msra.mxu0 0.0
  %699 = vmatprep.subr.mxu0 0.0
  %700 = vmatpush2.msra.mxu0 0.0
  %701 = vmatprep.subr.mxu0 0.0
  %702 = vmatpush2.msra.mxu0 0.0
  %703 = vmatprep.subr.mxu0 0.0
  %704 = vmatpush2.msra.mxu0 0.0
  %705 = vmatprep.subr.mxu0 0.0
  %706 = vmatpush2.msra.mxu0 0.0
  %707 = vmatprep.mubr.f32.mxu0 0.0
  %708 = vmatmul.mubr.f32.gmra.mxu0 %v620
  %v709 = vpop.f32.mrf.mxu0
  %v710 = vadd.f32 0.0, %v709
  %v711 = vpop.f32.mrf.mxu0
  %712 = vmatprep.mubr.f32.mxu0 0.0
  %713 = vmatmul.mubr.f32.gmra.mxu0 %v623
  %v714 = vpop.f32.mrf.mxu0
  %v715 = vadd.f32 0.0, %v714
  %v716 = vpop.f32.mrf.mxu0
  %717 = vmatprep.mubr.f32.mxu0 0.0
  %718 = vmatmul.mubr.f32.gmra.mxu0 %v626
  %v719 = vpop.f32.mrf.mxu0
  %v720 = vadd.f32 0.0, %v719
  %v721 = vpop.f32.mrf.mxu0
  %722 = vmatprep.mubr.f32.mxu0 0.0
  %723 = vmatmul.mubr.f32.gmra.mxu0 %v629
  %v724 = vpop.f32.mrf.mxu0
  %v725 = vadd.f32 0.0, %v724
  %v726 = vpop.f32.mrf.mxu0
  %727 = vmatprep.mubr.f32.mxu0 0.0
  %728 = vmatmul.mubr.f32.gmra.mxu0 %v632
  %v729 = vpop.f32.mrf.mxu0
  %v730 = vadd.f32 0.0, %v729
  %v731 = vpop.f32.mrf.mxu0
  %732 = vmatprep.mubr.f32.mxu0 0.0
  %733 = vmatmul.mubr.f32.gmra.mxu0 %v635
  %v734 = vpop.f32.mrf.mxu0
  %v735 = vadd.f32 0.0, %v734
  %v736 = vpop.f32.mrf.mxu0
  %737 = vmatprep.mubr.f32.mxu0 0.0
  %738 = vmatmul.mubr.f32.gmra.mxu0 %v638
  %v739 = vpop.f32.mrf.mxu0
  %v740 = vadd.f32 0.0, %v739
  %v741 = vpop.f32.mrf.mxu0
  %742 = vmatprep.mubr.f32.mxu0 0.0
  %743 = vmatmul.mubr.f32.gmra.mxu0 %v641
  %v744 = vpop.f32.mrf.mxu0
  %v745 = vadd.f32 0.0, %v744
  %v746 = vpop.f32.mrf.mxu0
  %747 = vdwg.mxu0
  %v748 = vadd.f32 %v579, %v710
  %v749 = vadd.f32 %v584, %v715
  %v750 = vadd.f32 %v589, %v720
  %v751 = vadd.f32 %v594, %v725
  %v752 = vadd.f32 %v599, %v730
  %v753 = vadd.f32 %v604, %v735
  %v754 = vadd.f32 %v609, %v740
  %v755 = vadd.f32 %v614, %v745
  %v756 = vrot.slane %v184, 1
  %v757 = vrot.slane %v185, 1
  %v758 = vrot.slane %v186, 1
  %v759 = vrot.slane %v187, 1
  %v760 = vrot.slane %v188, 1
  %v761 = vrot.slane %v189, 1
  %v762 = vrot.slane %v190, 1
  %v763 = vrot.slane %v191, 1
  %vm764 = vcmp.lt.s32.totalorder %v193, 7
  %v765 = vsel %vm764, %v762, %v763
  %v766 = vsel %vm764, %v761, %v762
  %v767 = vsel %vm764, %v760, %v761
  %v768 = vsel %vm764, %v759, %v760
  %v769 = vsel %vm764, %v758, %v759
  %v770 = vsel %vm764, %v757, %v758
  %v771 = vsel %vm764, %v756, %v757
  %v772 = vsel %vm764, %v763, %v756
  %v773 = vadd.s32 %v201, 1
  %v774 = vadd.s32 %v202, 1
  %v775 = vadd.s32 %v203, 1
  %v776 = vadd.s32 %v204, 1
  %v777 = vadd.s32 %v205, 1
  %v778 = vadd.s32 %v206, 1
  %v779 = vadd.s32 %v207, 1
  %v780 = vadd.s32 %v208, 1
  %vm781 = vcmp.ge.s32.totalorder %v773, 0
  %vm782 = vcmp.ge.s32.totalorder %v774, 0
  %vm783 = vcmp.ge.s32.totalorder %v775, 0
  %vm784 = vcmp.ge.s32.totalorder %v776, 0
  %vm785 = vcmp.ge.s32.totalorder %v777, 0
  %vm786 = vcmp.ge.s32.totalorder %v778, 0
  %vm787 = vcmp.ge.s32.totalorder %v779, 0
  %vm788 = vcmp.ge.s32.totalorder %v780, 0
  %vm789 = vcmp.lt.s32.totalorder %v773, 32
  %vm790 = vcmp.lt.s32.totalorder %v774, 32
  %vm791 = vcmp.lt.s32.totalorder %v775, 32
  %vm792 = vcmp.lt.s32.totalorder %v776, 32
  %vm793 = vcmp.lt.s32.totalorder %v777, 32
  %vm794 = vcmp.lt.s32.totalorder %v778, 32
  %vm795 = vcmp.lt.s32.totalorder %v779, 32
  %vm796 = vcmp.lt.s32.totalorder %v780, 32
  %vm797 = vmand %vm781, %vm789
  %vm798 = vmand %vm782, %vm790
  %vm799 = vmand %vm783, %vm791
  %vm800 = vmand %vm784, %vm792
  %vm801 = vmand %vm785, %vm793
  %vm802 = vmand %vm786, %vm794
  %vm803 = vmand %vm787, %vm795
  %vm804 = vmand %vm788, %vm796
  %v805 = vsel %vm797, 1, 0
  %v806 = vsel %vm798, 1, 0
  %v807 = vsel %vm799, 1, 0
  %v808 = vsel %vm800, 1, 0
  %v809 = vsel %vm801, 1, 0
  %v810 = vsel %vm802, 1, 0
  %v811 = vsel %vm803, 1, 0
  %v812 = vsel %vm804, 1, 0
  %vm813 = vcmp.eq.s32.totalorder %v805, 1
  %vm814 = vcmp.eq.s32.totalorder %v806, 1
  %vm815 = vcmp.eq.s32.totalorder %v807, 1
  %vm816 = vcmp.eq.s32.totalorder %v808, 1
  %vm817 = vcmp.eq.s32.totalorder %v809, 1
  %vm818 = vcmp.eq.s32.totalorder %v810, 1
  %vm819 = vcmp.eq.s32.totalorder %v811, 1
  %vm820 = vcmp.eq.s32.totalorder %v812, 1
  %v821 = vsel %vm813, %v771, 0.0
  %v822 = vsel %vm814, %v770, 0.0
  %v823 = vsel %vm815, %v769, 0.0
  %v824 = vsel %vm816, %v768, 0.0
  %v825 = vsel %vm817, %v767, 0.0
  %v826 = vsel %vm818, %v766, 0.0
  %v827 = vsel %vm819, %v765, 0.0
  %v828 = vsel %vm820, %v772, 0.0
  %v829 = vld [vmem:[%s1 + $0x80] sm:$0xff]
  %v830 = vld [vmem:[%s1 + $0x90] sm:$0xff]
  %v832 = vsel %vm22, %v821, 0
  %v835 = vsel %vm22, %v822, 0
  %v838 = vsel %vm22, %v823, 0
  %v841 = vsel %vm22, %v824, 0
  %v844 = vsel %vm22, %v825, 0
  %v847 = vsel %vm22, %v826, 0
  %v850 = vsel %vm22, %v827, 0
  %v853 = vsel %vm22, %v828, 0
  %855 = vmatprep.subr.mxu0 0.0
  %856 = vmatpush1.msra.mxu0 0.0
  %857 = vmatprep.subr.mxu0 0.0
  %858 = vmatpush1.msra.mxu0 0.0
  %859 = vmatprep.subr.mxu0 0.0
  %860 = vmatpush1.msra.mxu0 0.0
  %861 = vmatprep.subr.mxu0 0.0
  %862 = vmatpush1.msra.mxu0 0.0
  %863 = vmatprep.subr.mxu0 0.0
  %864 = vmatpush1.msra.mxu0 0.0
  %865 = vmatprep.subr.mxu0 0.0
  %866 = vmatpush1.msra.mxu0 0.0
  %867 = vmatprep.subr.mxu0 0.0
  %868 = vmatpush1.msra.mxu0 0.0
  %869 = vmatprep.subr.mxu0 0.0
  %870 = vmatpush1.msra.mxu0 0.0
  %871 = vmatprep.subr.mxu0 0.0
  %872 = vmatpush1.msra.mxu0 0.0
  %873 = vmatprep.subr.mxu0 0.0
  %874 = vmatpush1.msra.mxu0 0.0
  %875 = vmatprep.subr.mxu0 0.0
  %876 = vmatpush1.msra.mxu0 0.0
  %877 = vmatprep.subr.mxu0 0.0
  %878 = vmatpush1.msra.mxu0 0.0
  %879 = vmatprep.subr.mxu0 0.0
  %880 = vmatpush1.msra.mxu0 0.0
  %881 = vmatprep.subr.mxu0 0.0
  %882 = vmatpush1.msra.mxu0 0.0
  %883 = vmatprep.subr.mxu0 0.0
  %884 = vmatpush1.msra.mxu0 %v830
  %885 = vmatprep.subr.mxu0 0.0
  %886 = vmatpush1.msra.mxu0 %v829
  %887 = vmatprep.subr.mxu0 0.0
  %888 = vmatpush2.msra.mxu0 0.0
  %889 = vmatprep.subr.mxu0 0.0
  %890 = vmatpush2.msra.mxu0 0.0
  %891 = vmatprep.subr.mxu0 0.0
  %892 = vmatpush2.msra.mxu0 0.0
  %893 = vmatprep.subr.mxu0 0.0
  %894 = vmatpush2.msra.mxu0 0.0
  %895 = vmatprep.subr.mxu0 0.0
  %896 = vmatpush2.msra.mxu0 0.0
  %897 = vmatprep.subr.mxu0 0.0
  %898 = vmatpush2.msra.mxu0 0.0
  %899 = vmatprep.subr.mxu0 0.0
  %900 = vmatpush2.msra.mxu0 0.0
  %901 = vmatprep.subr.mxu0 0.0
  %902 = vmatpush2.msra.mxu0 0.0
  %903 = vmatprep.subr.mxu0 0.0
  %904 = vmatpush2.msra.mxu0 0.0
  %905 = vmatprep.subr.mxu0 0.0
  %906 = vmatpush2.msra.mxu0 0.0
  %907 = vmatprep.subr.mxu0 0.0
  %908 = vmatpush2.msra.mxu0 0.0
  %909 = vmatprep.subr.mxu0 0.0
  %910 = vmatpush2.msra.mxu0 0.0
  %911 = vmatprep.subr.mxu0 0.0
  %912 = vmatpush2.msra.mxu0 0.0
  %913 = vmatprep.subr.mxu0 0.0
  %914 = vmatpush2.msra.mxu0 0.0
  %915 = vmatprep.subr.mxu0 0.0
  %916 = vmatpush2.msra.mxu0 0.0
  %917 = vmatprep.subr.mxu0 0.0
  %918 = vmatpush2.msra.mxu0 0.0
  %919 = vmatprep.mubr.f32.mxu0 0.0
  %920 = vmatmul.mubr.f32.gmra.mxu0 %v832
  %v921 = vpop.f32.mrf.mxu0
  %v922 = vadd.f32 0.0, %v921
  %v923 = vpop.f32.mrf.mxu0
  %924 = vmatprep.mubr.f32.mxu0 0.0
  %925 = vmatmul.mubr.f32.gmra.mxu0 %v835
  %v926 = vpop.f32.mrf.mxu0
  %v927 = vadd.f32 0.0, %v926
  %v928 = vpop.f32.mrf.mxu0
  %929 = vmatprep.mubr.f32.mxu0 0.0
  %930 = vmatmul.mubr.f32.gmra.mxu0 %v838
  %v931 = vpop.f32.mrf.mxu0
  %v932 = vadd.f32 0.0, %v931
  %v933 = vpop.f32.mrf.mxu0
  %934 = vmatprep.mubr.f32.mxu0 0.0
  %935 = vmatmul.mubr.f32.gmra.mxu0 %v841
  %v936 = vpop.f32.mrf.mxu0
  %v937 = vadd.f32 0.0, %v936
  %v938 = vpop.f32.mrf.mxu0
  %939 = vmatprep.mubr.f32.mxu0 0.0
  %940 = vmatmul.mubr.f32.gmra.mxu0 %v844
  %v941 = vpop.f32.mrf.mxu0
  %v942 = vadd.f32 0.0, %v941
  %v943 = vpop.f32.mrf.mxu0
  %944 = vmatprep.mubr.f32.mxu0 0.0
  %945 = vmatmul.mubr.f32.gmra.mxu0 %v847
  %v946 = vpop.f32.mrf.mxu0
  %v947 = vadd.f32 0.0, %v946
  %v948 = vpop.f32.mrf.mxu0
  %949 = vmatprep.mubr.f32.mxu0 0.0
  %950 = vmatmul.mubr.f32.gmra.mxu0 %v850
  %v951 = vpop.f32.mrf.mxu0
  %v952 = vadd.f32 0.0, %v951
  %v953 = vpop.f32.mrf.mxu0
  %954 = vmatprep.mubr.f32.mxu0 0.0
  %955 = vmatmul.mubr.f32.gmra.mxu0 %v853
  %v956 = vpop.f32.mrf.mxu0
  %v957 = vadd.f32 0.0, %v956
  %v958 = vpop.f32.mrf.mxu0
  %959 = vdwg.mxu0
  %v960 = vadd.f32 %v748, %v922
  %v961 = vadd.f32 %v749, %v927
  %v962 = vadd.f32 %v750, %v932
  %v963 = vadd.f32 %v751, %v937
  %v964 = vadd.f32 %v752, %v942
  %v965 = vadd.f32 %v753, %v947
  %v966 = vadd.f32 %v754, %v952
  %v967 = vadd.f32 %v755, %v957
  %v968 = vrot.slane %v184, 2
  %v969 = vrot.slane %v185, 2
  %v970 = vrot.slane %v186, 2
  %v971 = vrot.slane %v187, 2
  %v972 = vrot.slane %v188, 2
  %v973 = vrot.slane %v189, 2
  %v974 = vrot.slane %v190, 2
  %v975 = vrot.slane %v191, 2
  %vm976 = vcmp.lt.s32.totalorder %v193, 6
  %v977 = vsel %vm976, %v974, %v975
  %v978 = vsel %vm976, %v973, %v974
  %v979 = vsel %vm976, %v972, %v973
  %v980 = vsel %vm976, %v971, %v972
  %v981 = vsel %vm976, %v970, %v971
  %v982 = vsel %vm976, %v969, %v970
  %v983 = vsel %vm976, %v968, %v969
  %v984 = vsel %vm976, %v975, %v968
  %v985 = vadd.s32 %v201, 2
  %v986 = vadd.s32 %v202, 2
  %v987 = vadd.s32 %v203, 2
  %v988 = vadd.s32 %v204, 2
  %v989 = vadd.s32 %v205, 2
  %v990 = vadd.s32 %v206, 2
  %v991 = vadd.s32 %v207, 2
  %v992 = vadd.s32 %v208, 2
  %vm993 = vcmp.ge.s32.totalorder %v985, 0
  %vm994 = vcmp.ge.s32.totalorder %v986, 0
  %vm995 = vcmp.ge.s32.totalorder %v987, 0
  %vm996 = vcmp.ge.s32.totalorder %v988, 0
  %vm997 = vcmp.ge.s32.totalorder %v989, 0
  %vm998 = vcmp.ge.s32.totalorder %v990, 0
  %vm999 = vcmp.ge.s32.totalorder %v991, 0
  %vm1000 = vcmp.ge.s32.totalorder %v992, 0
  %vm1001 = vcmp.lt.s32.totalorder %v985, 32
  %vm1002 = vcmp.lt.s32.totalorder %v986, 32
  %vm1003 = vcmp.lt.s32.totalorder %v987, 32
  %vm1004 = vcmp.lt.s32.totalorder %v988, 32
  %vm1005 = vcmp.lt.s32.totalorder %v989, 32
  %vm1006 = vcmp.lt.s32.totalorder %v990, 32
  %vm1007 = vcmp.lt.s32.totalorder %v991, 32
  %vm1008 = vcmp.lt.s32.totalorder %v992, 32
  %vm1009 = vmand %vm993, %vm1001
  %vm1010 = vmand %vm994, %vm1002
  %vm1011 = vmand %vm995, %vm1003
  %vm1012 = vmand %vm996, %vm1004
  %vm1013 = vmand %vm997, %vm1005
  %vm1014 = vmand %vm998, %vm1006
  %vm1015 = vmand %vm999, %vm1007
  %vm1016 = vmand %vm1000, %vm1008
  %v1017 = vsel %vm1009, 1, 0
  %v1018 = vsel %vm1010, 1, 0
  %v1019 = vsel %vm1011, 1, 0
  %v1020 = vsel %vm1012, 1, 0
  %v1021 = vsel %vm1013, 1, 0
  %v1022 = vsel %vm1014, 1, 0
  %v1023 = vsel %vm1015, 1, 0
  %v1024 = vsel %vm1016, 1, 0
  %vm1025 = vcmp.eq.s32.totalorder %v1017, 1
  %vm1026 = vcmp.eq.s32.totalorder %v1018, 1
  %vm1027 = vcmp.eq.s32.totalorder %v1019, 1
  %vm1028 = vcmp.eq.s32.totalorder %v1020, 1
  %vm1029 = vcmp.eq.s32.totalorder %v1021, 1
  %vm1030 = vcmp.eq.s32.totalorder %v1022, 1
  %vm1031 = vcmp.eq.s32.totalorder %v1023, 1
  %vm1032 = vcmp.eq.s32.totalorder %v1024, 1
  %v1033 = vsel %vm1025, %v983, 0.0
  %v1034 = vsel %vm1026, %v982, 0.0
  %v1035 = vsel %vm1027, %v981, 0.0
  %v1036 = vsel %vm1028, %v980, 0.0
  %v1037 = vsel %vm1029, %v979, 0.0
  %v1038 = vsel %vm1030, %v978, 0.0
  %v1039 = vsel %vm1031, %v977, 0.0
  %v1040 = vsel %vm1032, %v984, 0.0
  %v1041 = vld [vmem:[%s1 + $0xa0] sm:$0xff]
  %v1042 = vld [vmem:[%s1 + $0xb0] sm:$0xff]
  %v1044 = vsel %vm22, %v1033, 0
  %v1047 = vsel %vm22, %v1034, 0
  %v1050 = vsel %vm22, %v1035, 0
  %v1053 = vsel %vm22, %v1036, 0
  %v1056 = vsel %vm22, %v1037, 0
  %v1059 = vsel %vm22, %v1038, 0
  %v1062 = vsel %vm22, %v1039, 0
  %v1065 = vsel %vm22, %v1040, 0
  %1067 = vmatprep.subr.mxu0 0.0
  %1068 = vmatpush1.msra.mxu0 0.0
  %1069 = vmatprep.subr.mxu0 0.0
  %1070 = vmatpush1.msra.mxu0 0.0
  %1071 = vmatprep.subr.mxu0 0.0
  %1072 = vmatpush1.msra.mxu0 0.0
  %1073 = vmatprep.subr.mxu0 0.0
  %1074 = vmatpush1.msra.mxu0 0.0
  %1075 = vmatprep.subr.mxu0 0.0
  %1076 = vmatpush1.msra.mxu0 0.0
  %1077 = vmatprep.subr.mxu0 0.0
  %1078 = vmatpush1.msra.mxu0 0.0
  %1079 = vmatprep.subr.mxu0 0.0
  %1080 = vmatpush1.msra.mxu0 0.0
  %1081 = vmatprep.subr.mxu0 0.0
  %1082 = vmatpush1.msra.mxu0 0.0
  %1083 = vmatprep.subr.mxu0 0.0
  %1084 = vmatpush1.msra.mxu0 0.0
  %1085 = vmatprep.subr.mxu0 0.0
  %1086 = vmatpush1.msra.mxu0 0.0
  %1087 = vmatprep.subr.mxu0 0.0
  %1088 = vmatpush1.msra.mxu0 0.0
  %1089 = vmatprep.subr.mxu0 0.0
  %1090 = vmatpush1.msra.mxu0 0.0
  %1091 = vmatprep.subr.mxu0 0.0
  %1092 = vmatpush1.msra.mxu0 0.0
  %1093 = vmatprep.subr.mxu0 0.0
  %1094 = vmatpush1.msra.mxu0 0.0
  %1095 = vmatprep.subr.mxu0 0.0
  %1096 = vmatpush1.msra.mxu0 %v1042
  %1097 = vmatprep.subr.mxu0 0.0
  %1098 = vmatpush1.msra.mxu0 %v1041
  %1099 = vmatprep.subr.mxu0 0.0
  %1100 = vmatpush2.msra.mxu0 0.0
  %1101 = vmatprep.subr.mxu0 0.0
  %1102 = vmatpush2.msra.mxu0 0.0
  %1103 = vmatprep.subr.mxu0 0.0
  %1104 = vmatpush2.msra.mxu0 0.0
  %1105 = vmatprep.subr.mxu0 0.0
  %1106 = vmatpush2.msra.mxu0 0.0
  %1107 = vmatprep.subr.mxu0 0.0
  %1108 = vmatpush2.msra.mxu0 0.0
  %1109 = vmatprep.subr.mxu0 0.0
  %1110 = vmatpush2.msra.mxu0 0.0
  %1111 = vmatprep.subr.mxu0 0.0
  %1112 = vmatpush2.msra.mxu0 0.0
  %1113 = vmatprep.subr.mxu0 0.0
  %1114 = vmatpush2.msra.mxu0 0.0
  %1115 = vmatprep.subr.mxu0 0.0
  %1116 = vmatpush2.msra.mxu0 0.0
  %1117 = vmatprep.subr.mxu0 0.0
  %1118 = vmatpush2.msra.mxu0 0.0
  %1119 = vmatprep.subr.mxu0 0.0
  %1120 = vmatpush2.msra.mxu0 0.0
  %1121 = vmatprep.subr.mxu0 0.0
  %1122 = vmatpush2.msra.mxu0 0.0
  %1123 = vmatprep.subr.mxu0 0.0
  %1124 = vmatpush2.msra.mxu0 0.0
  %1125 = vmatprep.subr.mxu0 0.0
  %1126 = vmatpush2.msra.mxu0 0.0
  %1127 = vmatprep.subr.mxu0 0.0
  %1128 = vmatpush2.msra.mxu0 0.0
  %1129 = vmatprep.subr.mxu0 0.0
  %1130 = vmatpush2.msra.mxu0 0.0
  %1131 = vmatprep.mubr.f32.mxu0 0.0
  %1132 = vmatmul.mubr.f32.gmra.mxu0 %v1044
  %v1133 = vpop.f32.mrf.mxu0
  %v1134 = vadd.f32 0.0, %v1133
  %v1135 = vpop.f32.mrf.mxu0
  %1136 = vmatprep.mubr.f32.mxu0 0.0
  %1137 = vmatmul.mubr.f32.gmra.mxu0 %v1047
  %v1138 = vpop.f32.mrf.mxu0
  %v1139 = vadd.f32 0.0, %v1138
  %v1140 = vpop.f32.mrf.mxu0
  %1141 = vmatprep.mubr.f32.mxu0 0.0
  %1142 = vmatmul.mubr.f32.gmra.mxu0 %v1050
  %v1143 = vpop.f32.mrf.mxu0
  %v1144 = vadd.f32 0.0, %v1143
  %v1145 = vpop.f32.mrf.mxu0
  %1146 = vmatprep.mubr.f32.mxu0 0.0
  %1147 = vmatmul.mubr.f32.gmra.mxu0 %v1053
  %v1148 = vpop.f32.mrf.mxu0
  %v1149 = vadd.f32 0.0, %v1148
  %v1150 = vpop.f32.mrf.mxu0
  %1151 = vmatprep.mubr.f32.mxu0 0.0
  %1152 = vmatmul.mubr.f32.gmra.mxu0 %v1056
  %v1153 = vpop.f32.mrf.mxu0
  %v1154 = vadd.f32 0.0, %v1153
  %v1155 = vpop.f32.mrf.mxu0
  %1156 = vmatprep.mubr.f32.mxu0 0.0
  %1157 = vmatmul.mubr.f32.gmra.mxu0 %v1059
  %v1158 = vpop.f32.mrf.mxu0
  %v1159 = vadd.f32 0.0, %v1158
  %v1160 = vpop.f32.mrf.mxu0
  %1161 = vmatprep.mubr.f32.mxu0 0.0
  %1162 = vmatmul.mubr.f32.gmra.mxu0 %v1062
  %v1163 = vpop.f32.mrf.mxu0
  %v1164 = vadd.f32 0.0, %v1163
  %v1165 = vpop.f32.mrf.mxu0
  %1166 = vmatprep.mubr.f32.mxu0 0.0
  %1167 = vmatmul.mubr.f32.gmra.mxu0 %v1065
  %v1168 = vpop.f32.mrf.mxu0
  %v1169 = vadd.f32 0.0, %v1168
  %v1170 = vpop.f32.mrf.mxu0
  %1171 = vdwg.mxu0
  %v1172 = vadd.f32 %v960, %v1134
  %v1173 = vadd.f32 %v961, %v1139
  %v1174 = vadd.f32 %v962, %v1144
  %v1175 = vadd.f32 %v963, %v1149
  %v1176 = vadd.f32 %v964, %v1154
  %v1177 = vadd.f32 %v965, %v1159
  %v1178 = vadd.f32 %v966, %v1164
  %v1179 = vadd.f32 %v967, %v1169
  %v1180 = vld [vmem:[%s1 + $0x341] ss:$0 sm:$0xff]
  %v1181 = vadd.f32 %v1172, %v1180
  %v1182 = vadd.f32 %v1173, %v1180
  %v1183 = vadd.f32 %v1174, %v1180
  %v1184 = vadd.f32 %v1175, %v1180
  %v1185 = vadd.f32 %v1176, %v1180
  %v1186 = vadd.f32 %v1177, %v1180
  %v1187 = vadd.f32 %v1178, %v1180
  %v1188 = vadd.f32 %v1179, %v1180
  %vm1189 = vcmp.gt.f32.partialorder %v1181, 0.0
  %vm1190 = vcmp.gt.f32.partialorder %v1182, 0.0
  %vm1191 = vcmp.gt.f32.partialorder %v1183, 0.0
  %vm1192 = vcmp.gt.f32.partialorder %v1184, 0.0
  %vm1193 = vcmp.gt.f32.partialorder %v1185, 0.0
  %vm1194 = vcmp.gt.f32.partialorder %v1186, 0.0
  %vm1195 = vcmp.gt.f32.partialorder %v1187, 0.0
  %vm1196 = vcmp.gt.f32.partialorder %v1188, 0.0
  %v1197 = vmul.f32 %v1181, 1.442695
  %v1198 = vpow.pop %v1197
  %v1199 = vmul.f32 %v1182, 1.442695
  %v1200 = vpow.pop %v1199
  %v1201 = vmul.f32 %v1183, 1.442695
  %v1202 = vpow.pop %v1201
  %v1203 = vmul.f32 %v1184, 1.442695
  %v1204 = vpow.pop %v1203
  %v1205 = vmul.f32 %v1185, 1.442695
  %v1206 = vpow.pop %v1205
  %v1207 = vmul.f32 %v1186, 1.442695
  %v1208 = vpow.pop %v1207
  %v1209 = vmul.f32 %v1187, 1.442695
  %v1210 = vpow.pop %v1209
  %v1211 = vmul.f32 %v1188, 1.442695
  %v1212 = vpow.pop %v1211
  %v1213 = vsub.f32 %v1198, 1.0
  %v1214 = vsub.f32 %v1200, 1.0
  %v1215 = vsub.f32 %v1202, 1.0
  %v1216 = vsub.f32 %v1204, 1.0
  %v1217 = vsub.f32 %v1206, 1.0
  %v1218 = vsub.f32 %v1208, 1.0
  %v1219 = vsub.f32 %v1210, 1.0
  %v1220 = vsub.f32 %v1212, 1.0
  %v1221 = vsel %vm1189, %v1181, %v1213
  %v1222 = vsel %vm1190, %v1182, %v1214
  %v1223 = vsel %vm1191, %v1183, %v1215
  %v1224 = vsel %vm1192, %v1184, %v1216
  %v1225 = vsel %vm1193, %v1185, %v1217
  %v1226 = vsel %vm1194, %v1186, %v1218
  %v1227 = vsel %vm1195, %v1187, %v1219
  %v1228 = vsel %vm1196, %v1188, %v1220
  %v1229 = vld [vmem:[%s1 + $0xc0] sm:$0xff]
  %v1230 = vld [vmem:[%s1 + $0xd0] sm:$0xff]
  %v1231 = vld [vmem:[%s1 + $0xe0] sm:$0xff]
  %v1232 = vld [vmem:[%s1 + $0xf0] sm:$0xff]
  %v1233 = vld [vmem:[%s1 + $0x342] ss:$0 sm:$0xff]
  %vm1234 = vcmask 261120
  %v1236 = vsel %vm1234, %v1221, 0
  %v1239 = vsel %vm1234, %v1222, 0
  %v1242 = vsel %vm1234, %v1223, 0
  %v1245 = vsel %vm1234, %v1224, 0
  %v1248 = vsel %vm1234, %v1225, 0
  %v1251 = vsel %vm1234, %v1226, 0
  %v1254 = vsel %vm1234, %v1227, 0
  %v1257 = vsel %vm1234, %v1228, 0
  %1259 = vmatprep.subr.mxu0 0.0
  %1260 = vmatpush1.msra.mxu0 0.0
  %1261 = vmatprep.subr.mxu0 0.0
  %1262 = vmatpush1.msra.mxu0 0.0
  %1263 = vmatprep.subr.mxu0 0.0
  %1264 = vmatpush1.msra.mxu0 0.0
  %1265 = vmatprep.subr.mxu0 0.0
  %1266 = vmatpush1.msra.mxu0 0.0
  %1267 = vmatprep.subr.mxu0 0.0
  %1268 = vmatpush1.msra.mxu0 0.0
  %1269 = vmatprep.subr.mxu0 0.0
  %1270 = vmatpush1.msra.mxu0 0.0
  %1271 = vmatprep.subr.mxu0 0.0
  %1272 = vmatpush1.msra.mxu0 0.0
  %1273 = vmatprep.subr.mxu0 0.0
  %1274 = vmatpush1.msra.mxu0 0.0
  %1275 = vmatprep.subr.mxu0 0.0
  %1276 = vmatpush1.msra.mxu0 0.0
  %1277 = vmatprep.subr.mxu0 0.0
  %1278 = vmatpush1.msra.mxu0 0.0
  %1279 = vmatprep.subr.mxu0 0.0
  %1280 = vmatpush1.msra.mxu0 0.0
  %1281 = vmatprep.subr.mxu0 0.0
  %1282 = vmatpush1.msra.mxu0 0.0
  %1283 = vmatprep.subr.mxu0 0.0
  %1284 = vmatpush1.msra.mxu0 %v1232
  %1285 = vmatprep.subr.mxu0 0.0
  %1286 = vmatpush1.msra.mxu0 %v1231
  %1287 = vmatprep.subr.mxu0 0.0
  %1288 = vmatpush1.msra.mxu0 %v1230
  %1289 = vmatprep.subr.mxu0 0.0
  %1290 = vmatpush1.msra.mxu0 %v1229
  %1291 = vmatprep.subr.mxu0 0.0
  %1292 = vmatpush2.msra.mxu0 0.0
  %1293 = vmatprep.subr.mxu0 0.0
  %1294 = vmatpush2.msra.mxu0 0.0
  %1295 = vmatprep.subr.mxu0 0.0
  %1296 = vmatpush2.msra.mxu0 0.0
  %1297 = vmatprep.subr.mxu0 0.0
  %1298 = vmatpush2.msra.mxu0 0.0
  %1299 = vmatprep.subr.mxu0 0.0
  %1300 = vmatpush2.msra.mxu0 0.0
  %1301 = vmatprep.subr.mxu0 0.0
  %1302 = vmatpush2.msra.mxu0 0.0
  %1303 = vmatprep.subr.mxu0 0.0
  %1304 = vmatpush2.msra.mxu0 0.0
  %1305 = vmatprep.subr.mxu0 0.0
  %1306 = vmatpush2.msra.mxu0 0.0
  %1307 = vmatprep.subr.mxu0 0.0
  %1308 = vmatpush2.msra.mxu0 0.0
  %1309 = vmatprep.subr.mxu0 0.0
  %1310 = vmatpush2.msra.mxu0 0.0
  %1311 = vmatprep.subr.mxu0 0.0
  %1312 = vmatpush2.msra.mxu0 0.0
  %1313 = vmatprep.subr.mxu0 0.0
  %1314 = vmatpush2.msra.mxu0 0.0
  %1315 = vmatprep.subr.mxu0 0.0
  %1316 = vmatpush2.msra.mxu0 0.0
  %1317 = vmatprep.subr.mxu0 0.0
  %1318 = vmatpush2.msra.mxu0 0.0
  %1319 = vmatprep.subr.mxu0 0.0
  %1320 = vmatpush2.msra.mxu0 0.0
  %1321 = vmatprep.subr.mxu0 0.0
  %1322 = vmatpush2.msra.mxu0 0.0
  %1323 = vmatprep.mubr.f32.mxu0 0.0
  %1324 = vmatmul.mubr.f32.gmra.mxu0 %v1236
  %v1325 = vpop.f32.mrf.mxu0
  %v1326 = vadd.f32 %v1233, %v1325
  %v1327 = vpop.f32.mrf.mxu0
  %1328 = vmatprep.mubr.f32.mxu0 0.0
  %1329 = vmatmul.mubr.f32.gmra.mxu0 %v1239
  %v1330 = vpop.f32.mrf.mxu0
  %v1331 = vadd.f32 %v1233, %v1330
  %v1332 = vpop.f32.mrf.mxu0
  %1333 = vmatprep.mubr.f32.mxu0 0.0
  %1334 = vmatmul.mubr.f32.gmra.mxu0 %v1242
  %v1335 = vpop.f32.mrf.mxu0
  %v1336 = vadd.f32 %v1233, %v1335
  %v1337 = vpop.f32.mrf.mxu0
  %1338 = vmatprep.mubr.f32.mxu0 0.0
  %1339 = vmatmul.mubr.f32.gmra.mxu0 %v1245
  %v1340 = vpop.f32.mrf.mxu0
  %v1341 = vadd.f32 %v1233, %v1340
  %v1342 = vpop.f32.mrf.mxu0
  %1343 = vmatprep.mubr.f32.mxu0 0.0
  %1344 = vmatmul.mubr.f32.gmra.mxu0 %v1248
  %v1345 = vpop.f32.mrf.mxu0
  %v1346 = vadd.f32 %v1233, %v1345
  %v1347 = vpop.f32.mrf.mxu0
  %1348 = vmatprep.mubr.f32.mxu0 0.0
  %1349 = vmatmul.mubr.f32.gmra.mxu0 %v1251
  %v1350 = vpop.f32.mrf.mxu0
  %v1351 = vadd.f32 %v1233, %v1350
  %v1352 = vpop.f32.mrf.mxu0
  %1353 = vmatprep.mubr.f32.mxu0 0.0
  %1354 = vmatmul.mubr.f32.gmra.mxu0 %v1254
  %v1355 = vpop.f32.mrf.mxu0
  %v1356 = vadd.f32 %v1233, %v1355
  %v1357 = vpop.f32.mrf.mxu0
  %1358 = vmatprep.mubr.f32.mxu0 0.0
  %1359 = vmatmul.mubr.f32.gmra.mxu0 %v1257
  %v1360 = vpop.f32.mrf.mxu0
  %v1361 = vadd.f32 %v1233, %v1360
  %v1362 = vpop.f32.mrf.mxu0
  %1363 = vdwg.mxu0
  %v1364 = vld [vmem:[%s1 + $0x343] ss:$0 sm:$0xff]
  %v1365 = vld [vmem:[%s1 + $0x344] ss:$0 sm:$0xff]
  %vm1366 = vcmask 523264
  %v1367 = vsel %vm1366, %v1326, 0.0
  %1368 = vadd.xlane.f32.xlu0 %v1367
  %v1369 = vpop.xlane.xlu0 %1368
  %v1370 = vsel %vm1366, %v1331, 0.0
  %1371 = vadd.xlane.f32.xlu0 %v1370
  %v1372 = vpop.xlane.xlu0 %1371
  %v1373 = vsel %vm1366, %v1336, 0.0
  %1374 = vadd.xlane.f32.xlu0 %v1373
  %v1375 = vpop.xlane.xlu0 %1374
  %v1376 = vsel %vm1366, %v1341, 0.0
  %1377 = vadd.xlane.f32.xlu0 %v1376
  %v1378 = vpop.xlane.xlu0 %1377
  %v1379 = vsel %vm1366, %v1346, 0.0
  %1380 = vadd.xlane.f32.xlu0 %v1379
  %v1381 = vpop.xlane.xlu0 %1380
  %v1382 = vsel %vm1366, %v1351, 0.0
  %1383 = vadd.xlane.f32.xlu0 %v1382
  %v1384 = vpop.xlane.xlu0 %1383
  %v1385 = vsel %vm1366, %v1356, 0.0
  %1386 = vadd.xlane.f32.xlu0 %v1385
  %v1387 = vpop.xlane.xlu0 %1386
  %v1388 = vsel %vm1366, %v1361, 0.0
  %1389 = vadd.xlane.f32.xlu0 %v1388
  %v1390 = vpop.xlane.xlu0 %1389
  %v1391 = vrcp.pop 64.0
  %v1392 = vmul.f32 %v1369, %v1391
  %v1393 = vmul.f32 %v1372, %v1391
  %v1394 = vmul.f32 %v1375, %v1391
  %v1395 = vmul.f32 %v1378, %v1391
  %v1396 = vmul.f32 %v1381, %v1391
  %v1397 = vmul.f32 %v1384, %v1391
  %v1398 = vmul.f32 %v1387, %v1391
  %v1399 = vmul.f32 %v1390, %v1391
  %v1400 = vsub.f32 %v1326, %v1392
  %v1401 = vsub.f32 %v1331, %v1393
  %v1402 = vsub.f32 %v1336, %v1394
  %v1403 = vsub.f32 %v1341, %v1395
  %v1404 = vsub.f32 %v1346, %v1396
  %v1405 = vsub.f32 %v1351, %v1397
  %v1406 = vsub.f32 %v1356, %v1398
  %v1407 = vsub.f32 %v1361, %v1399
  %v1408 = vmul.f32 %v1400, %v1400
  %v1409 = vmul.f32 %v1401, %v1401
  %v1410 = vmul.f32 %v1402, %v1402
  %v1411 = vmul.f32 %v1403, %v1403
  %v1412 = vmul.f32 %v1404, %v1404
  %v1413 = vmul.f32 %v1405, %v1405
  %v1414 = vmul.f32 %v1406, %v1406
  %v1415 = vmul.f32 %v1407, %v1407
  %v1416 = vsel %vm1366, %v1408, 0.0
  %1417 = vadd.xlane.f32.xlu0 %v1416
  %v1418 = vpop.xlane.xlu0 %1417
  %v1419 = vsel %vm1366, %v1409, 0.0
  %1420 = vadd.xlane.f32.xlu0 %v1419
  %v1421 = vpop.xlane.xlu0 %1420
  %v1422 = vsel %vm1366, %v1410, 0.0
  %1423 = vadd.xlane.f32.xlu0 %v1422
  %v1424 = vpop.xlane.xlu0 %1423
  %v1425 = vsel %vm1366, %v1411, 0.0
  %1426 = vadd.xlane.f32.xlu0 %v1425
  %v1427 = vpop.xlane.xlu0 %1426
  %v1428 = vsel %vm1366, %v1412, 0.0
  %1429 = vadd.xlane.f32.xlu0 %v1428
  %v1430 = vpop.xlane.xlu0 %1429
  %v1431 = vsel %vm1366, %v1413, 0.0
  %1432 = vadd.xlane.f32.xlu0 %v1431
  %v1433 = vpop.xlane.xlu0 %1432
  %v1434 = vsel %vm1366, %v1414, 0.0
  %1435 = vadd.xlane.f32.xlu0 %v1434
  %v1436 = vpop.xlane.xlu0 %1435
  %v1437 = vsel %vm1366, %v1415, 0.0
  %1438 = vadd.xlane.f32.xlu0 %v1437
  %v1439 = vpop.xlane.xlu0 %1438
  %v1440 = vmul.f32 %v1418, %v1391
  %v1441 = vmul.f32 %v1421, %v1391
  %v1442 = vmul.f32 %v1424, %v1391
  %v1443 = vmul.f32 %v1427, %v1391
  %v1444 = vmul.f32 %v1430, %v1391
  %v1445 = vmul.f32 %v1433, %v1391
  %v1446 = vmul.f32 %v1436, %v1391
  %v1447 = vmul.f32 %v1439, %v1391
  %v1448 = vadd.f32 %v1440, 1e-05
  %v1449 = vadd.f32 %v1441, 1e-05
  %v1450 = vadd.f32 %v1442, 1e-05
  %v1451 = vadd.f32 %v1443, 1e-05
  %v1452 = vadd.f32 %v1444, 1e-05
  %v1453 = vadd.f32 %v1445, 1e-05
  %v1454 = vadd.f32 %v1446, 1e-05
  %v1455 = vadd.f32 %v1447, 1e-05
  %v1456 = vrsqrt.pop %v1448
  %v1457 = vrsqrt.pop %v1449
  %v1458 = vrsqrt.pop %v1450
  %v1459 = vrsqrt.pop %v1451
  %v1460 = vrsqrt.pop %v1452
  %v1461 = vrsqrt.pop %v1453
  %v1462 = vrsqrt.pop %v1454
  %v1463 = vrsqrt.pop %v1455
  %v1464 = vmul.f32 %v1400, %v1456
  %v1465 = vmul.f32 %v1401, %v1457
  %v1466 = vmul.f32 %v1402, %v1458
  %v1467 = vmul.f32 %v1403, %v1459
  %v1468 = vmul.f32 %v1404, %v1460
  %v1469 = vmul.f32 %v1405, %v1461
  %v1470 = vmul.f32 %v1406, %v1462
  %v1471 = vmul.f32 %v1407, %v1463
  %v1472 = vmul.f32 %v1464, %v1364
  %v1473 = vmul.f32 %v1465, %v1364
  %v1474 = vmul.f32 %v1466, %v1364
  %v1475 = vmul.f32 %v1467, %v1364
  %v1476 = vmul.f32 %v1468, %v1364
  %v1477 = vmul.f32 %v1469, %v1364
  %v1478 = vmul.f32 %v1470, %v1364
  %v1479 = vmul.f32 %v1471, %v1364
  %v1480 = vadd.f32 %v1472, %v1365
  %v1481 = vadd.f32 %v1473, %v1365
  %v1482 = vadd.f32 %v1474, %v1365
  %v1483 = vadd.f32 %v1475, %v1365
  %v1484 = vadd.f32 %v1476, %v1365
  %v1485 = vadd.f32 %v1477, %v1365
  %v1486 = vadd.f32 %v1478, %v1365
  %v1487 = vadd.f32 %v1479, %v1365
  %v1488 = vmul.f32 %v1480, 0.5
  %v1489 = vmul.f32 %v1481, 0.5
  %v1490 = vmul.f32 %v1482, 0.5
  %v1491 = vmul.f32 %v1483, 0.5
  %v1492 = vmul.f32 %v1484, 0.5
  %v1493 = vmul.f32 %v1485, 0.5
  %v1494 = vmul.f32 %v1486, 0.5
  %v1495 = vmul.f32 %v1487, 0.5
  %v1496 = vmul.f32 %v1480, 0.70710677
  %v1497 = vmul.f32 %v1481, 0.70710677
  %v1498 = vmul.f32 %v1482, 0.70710677
  %v1499 = vmul.f32 %v1483, 0.70710677
  %v1500 = vmul.f32 %v1484, 0.70710677
  %v1501 = vmul.f32 %v1485, 0.70710677
  %v1502 = vmul.f32 %v1486, 0.70710677
  %v1503 = vmul.f32 %v1487, 0.70710677
  %v1504 = verf.f32.pop %v1496
  %v1505 = verf.f32.pop %v1497
  %v1506 = verf.f32.pop %v1498
  %v1507 = verf.f32.pop %v1499
  %v1508 = verf.f32.pop %v1500
  %v1509 = verf.f32.pop %v1501
  %v1510 = verf.f32.pop %v1502
  %v1511 = verf.f32.pop %v1503
  %v1512 = vadd.f32 %v1504, 1.0
  %v1513 = vadd.f32 %v1505, 1.0
  %v1514 = vadd.f32 %v1506, 1.0
  %v1515 = vadd.f32 %v1507, 1.0
  %v1516 = vadd.f32 %v1508, 1.0
  %v1517 = vadd.f32 %v1509, 1.0
  %v1518 = vadd.f32 %v1510, 1.0
  %v1519 = vadd.f32 %v1511, 1.0
  %v1520 = vmul.f32 %v1488, %v1512
  %v1521 = vmul.f32 %v1489, %v1513
  %v1522 = vmul.f32 %v1490, %v1514
  %v1523 = vmul.f32 %v1491, %v1515
  %v1524 = vmul.f32 %v1492, %v1516
  %v1525 = vmul.f32 %v1493, %v1517
  %v1526 = vmul.f32 %v1494, %v1518
  %v1527 = vmul.f32 %v1495, %v1519
  %v1528 = vld [vmem:[%s1 + $0x100] sm:$0xff]
  %v1529 = vld [vmem:[%s1 + $0x110] sm:$0xff]
  %v1530 = vld [vmem:[%s1 + $0x120] sm:$0xff]
  %v1531 = vld [vmem:[%s1 + $0x130] sm:$0xff]
  %v1532 = vld [vmem:[%s1 + $0x140] sm:$0xff]
  %v1533 = vld [vmem:[%s1 + $0x150] sm:$0xff]
  %v1534 = vld [vmem:[%s1 + $0x160] sm:$0xff]
  %v1535 = vld [vmem:[%s1 + $0x170] sm:$0xff]
  %v1536 = vld [vmem:[%s1 + $0x345] ss:$0 sm:$0xff]
  %v1538 = vsel %vm1366, %v1520, 0
  %v1541 = vsel %vm1366, %v1521, 0
  %v1544 = vsel %vm1366, %v1522, 0
  %v1547 = vsel %vm1366, %v1523, 0
  %v1550 = vsel %vm1366, %v1524, 0
  %v1553 = vsel %vm1366, %v1525, 0
  %v1556 = vsel %vm1366, %v1526, 0
  %v1559 = vsel %vm1366, %v1527, 0
  %1561 = vmatprep.subr.mxu0 0.0
  %1562 = vmatpush1.msra.mxu0 0.0
  %1563 = vmatprep.subr.mxu0 0.0
  %1564 = vmatpush1.msra.mxu0 0.0
  %1565 = vmatprep.subr.mxu0 0.0
  %1566 = vmatpush1.msra.mxu0 0.0
  %1567 = vmatprep.subr.mxu0 0.0
  %1568 = vmatpush1.msra.mxu0 0.0
  %1569 = vmatprep.subr.mxu0 0.0
  %1570 = vmatpush1.msra.mxu0 0.0
  %1571 = vmatprep.subr.mxu0 0.0
  %1572 = vmatpush1.msra.mxu0 0.0
  %1573 = vmatprep.subr.mxu0 0.0
  %1574 = vmatpush1.msra.mxu0 0.0
  %1575 = vmatprep.subr.mxu0 0.0
  %1576 = vmatpush1.msra.mxu0 0.0
  %1577 = vmatprep.subr.mxu0 0.0
  %1578 = vmatpush1.msra.mxu0 %v1535
  %1579 = vmatprep.subr.mxu0 0.0
  %1580 = vmatpush1.msra.mxu0 %v1534
  %1581 = vmatprep.subr.mxu0 0.0
  %1582 = vmatpush1.msra.mxu0 %v1533
  %1583 = vmatprep.subr.mxu0 0.0
  %1584 = vmatpush1.msra.mxu0 %v1532
  %1585 = vmatprep.subr.mxu0 0.0
  %1586 = vmatpush1.msra.mxu0 %v1531
  %1587 = vmatprep.subr.mxu0 0.0
  %1588 = vmatpush1.msra.mxu0 %v1530
  %1589 = vmatprep.subr.mxu0 0.0
  %1590 = vmatpush1.msra.mxu0 %v1529
  %1591 = vmatprep.subr.mxu0 0.0
  %1592 = vmatpush1.msra.mxu0 %v1528
  %1593 = vmatprep.subr.mxu0 0.0
  %1594 = vmatpush2.msra.mxu0 0.0
  %1595 = vmatprep.subr.mxu0 0.0
  %1596 = vmatpush2.msra.mxu0 0.0
  %1597 = vmatprep.subr.mxu0 0.0
  %1598 = vmatpush2.msra.mxu0 0.0
  %1599 = vmatprep.subr.mxu0 0.0
  %1600 = vmatpush2.msra.mxu0 0.0
  %1601 = vmatprep.subr.mxu0 0.0
  %1602 = vmatpush2.msra.mxu0 0.0
  %1603 = vmatprep.subr.mxu0 0.0
  %1604 = vmatpush2.msra.mxu0 0.0
  %1605 = vmatprep.subr.mxu0 0.0
  %1606 = vmatpush2.msra.mxu0 0.0
  %1607 = vmatprep.subr.mxu0 0.0
  %1608 = vmatpush2.msra.mxu0 0.0
  %1609 = vmatprep.subr.mxu0 0.0
  %1610 = vmatpush2.msra.mxu0 0.0
  %1611 = vmatprep.subr.mxu0 0.0
  %1612 = vmatpush2.msra.mxu0 0.0
  %1613 = vmatprep.subr.mxu0 0.0
  %1614 = vmatpush2.msra.mxu0 0.0
  %1615 = vmatprep.subr.mxu0 0.0
  %1616 = vmatpush2.msra.mxu0 0.0
  %1617 = vmatprep.subr.mxu0 0.0
  %1618 = vmatpush2.msra.mxu0 0.0
  %1619 = vmatprep.subr.mxu0 0.0
  %1620 = vmatpush2.msra.mxu0 0.0
  %1621 = vmatprep.subr.mxu0 0.0
  %1622 = vmatpush2.msra.mxu0 0.0
  %1623 = vmatprep.subr.mxu0 0.0
  %1624 = vmatpush2.msra.mxu0 0.0
  %1625 = vmatprep.mubr.f32.mxu0 0.0
  %1626 = vmatmul.mubr.f32.gmra.mxu0 %v1538
  %v1627 = vpop.f32.mrf.mxu0
  %v1628 = vadd.f32 %v1536, %v1627
  %v1629 = vpop.f32.mrf.mxu0
  %1630 = vmatprep.mubr.f32.mxu0 0.0
  %1631 = vmatmul.mubr.f32.gmra.mxu0 %v1541
  %v1632 = vpop.f32.mrf.mxu0
  %v1633 = vadd.f32 %v1536, %v1632
  %v1634 = vpop.f32.mrf.mxu0
  %1635 = vmatprep.mubr.f32.mxu0 0.0
  %1636 = vmatmul.mubr.f32.gmra.mxu0 %v1544
  %v1637 = vpop.f32.mrf.mxu0
  %v1638 = vadd.f32 %v1536, %v1637
  %v1639 = vpop.f32.mrf.mxu0
  %1640 = vmatprep.mubr.f32.mxu0 0.0
  %1641 = vmatmul.mubr.f32.gmra.mxu0 %v1547
  %v1642 = vpop.f32.mrf.mxu0
  %v1643 = vadd.f32 %v1536, %v1642
  %v1644 = vpop.f32.mrf.mxu0
  %1645 = vmatprep.mubr.f32.mxu0 0.0
  %1646 = vmatmul.mubr.f32.gmra.mxu0 %v1550
  %v1647 = vpop.f32.mrf.mxu0
  %v1648 = vadd.f32 %v1536, %v1647
  %v1649 = vpop.f32.mrf.mxu0
  %1650 = vmatprep.mubr.f32.mxu0 0.0
  %1651 = vmatmul.mubr.f32.gmra.mxu0 %v1553
  %v1652 = vpop.f32.mrf.mxu0
  %v1653 = vadd.f32 %v1536, %v1652
  %v1654 = vpop.f32.mrf.mxu0
  %1655 = vmatprep.mubr.f32.mxu0 0.0
  %1656 = vmatmul.mubr.f32.gmra.mxu0 %v1556
  %v1657 = vpop.f32.mrf.mxu0
  %v1658 = vadd.f32 %v1536, %v1657
  %v1659 = vpop.f32.mrf.mxu0
  %1660 = vmatprep.mubr.f32.mxu0 0.0
  %1661 = vmatmul.mubr.f32.gmra.mxu0 %v1559
  %v1662 = vpop.f32.mrf.mxu0
  %v1663 = vadd.f32 %v1536, %v1662
  %v1664 = vpop.f32.mrf.mxu0
  %1665 = vdwg.mxu0
  %v1666 = vld [vmem:[%s1 + $0x346] ss:$0 sm:$0xff]
  %v1667 = vld [vmem:[%s1 + $0x347] ss:$0 sm:$0xff]
  %v1668 = vsel %vm1366, %v1628, 0.0
  %1669 = vadd.xlane.f32.xlu0 %v1668
  %v1670 = vpop.xlane.xlu0 %1669
  %v1671 = vsel %vm1366, %v1633, 0.0
  %1672 = vadd.xlane.f32.xlu0 %v1671
  %v1673 = vpop.xlane.xlu0 %1672
  %v1674 = vsel %vm1366, %v1638, 0.0
  %1675 = vadd.xlane.f32.xlu0 %v1674
  %v1676 = vpop.xlane.xlu0 %1675
  %v1677 = vsel %vm1366, %v1643, 0.0
  %1678 = vadd.xlane.f32.xlu0 %v1677
  %v1679 = vpop.xlane.xlu0 %1678
  %v1680 = vsel %vm1366, %v1648, 0.0
  %1681 = vadd.xlane.f32.xlu0 %v1680
  %v1682 = vpop.xlane.xlu0 %1681
  %v1683 = vsel %vm1366, %v1653, 0.0
  %1684 = vadd.xlane.f32.xlu0 %v1683
  %v1685 = vpop.xlane.xlu0 %1684
  %v1686 = vsel %vm1366, %v1658, 0.0
  %1687 = vadd.xlane.f32.xlu0 %v1686
  %v1688 = vpop.xlane.xlu0 %1687
  %v1689 = vsel %vm1366, %v1663, 0.0
  %1690 = vadd.xlane.f32.xlu0 %v1689
  %v1691 = vpop.xlane.xlu0 %1690
  %v1692 = vmul.f32 %v1670, %v1391
  %v1693 = vmul.f32 %v1673, %v1391
  %v1694 = vmul.f32 %v1676, %v1391
  %v1695 = vmul.f32 %v1679, %v1391
  %v1696 = vmul.f32 %v1682, %v1391
  %v1697 = vmul.f32 %v1685, %v1391
  %v1698 = vmul.f32 %v1688, %v1391
  %v1699 = vmul.f32 %v1691, %v1391
  %v1700 = vsub.f32 %v1628, %v1692
  %v1701 = vsub.f32 %v1633, %v1693
  %v1702 = vsub.f32 %v1638, %v1694
  %v1703 = vsub.f32 %v1643, %v1695
  %v1704 = vsub.f32 %v1648, %v1696
  %v1705 = vsub.f32 %v1653, %v1697
  %v1706 = vsub.f32 %v1658, %v1698
  %v1707 = vsub.f32 %v1663, %v1699
  %v1708 = vmul.f32 %v1700, %v1700
  %v1709 = vmul.f32 %v1701, %v1701
  %v1710 = vmul.f32 %v1702, %v1702
  %v1711 = vmul.f32 %v1703, %v1703
  %v1712 = vmul.f32 %v1704, %v1704
  %v1713 = vmul.f32 %v1705, %v1705
  %v1714 = vmul.f32 %v1706, %v1706
  %v1715 = vmul.f32 %v1707, %v1707
  %v1716 = vsel %vm1366, %v1708, 0.0
  %1717 = vadd.xlane.f32.xlu0 %v1716
  %v1718 = vpop.xlane.xlu0 %1717
  %v1719 = vsel %vm1366, %v1709, 0.0
  %1720 = vadd.xlane.f32.xlu0 %v1719
  %v1721 = vpop.xlane.xlu0 %1720
  %v1722 = vsel %vm1366, %v1710, 0.0
  %1723 = vadd.xlane.f32.xlu0 %v1722
  %v1724 = vpop.xlane.xlu0 %1723
  %v1725 = vsel %vm1366, %v1711, 0.0
  %1726 = vadd.xlane.f32.xlu0 %v1725
  %v1727 = vpop.xlane.xlu0 %1726
  %v1728 = vsel %vm1366, %v1712, 0.0
  %1729 = vadd.xlane.f32.xlu0 %v1728
  %v1730 = vpop.xlane.xlu0 %1729
  %v1731 = vsel %vm1366, %v1713, 0.0
  %1732 = vadd.xlane.f32.xlu0 %v1731
  %v1733 = vpop.xlane.xlu0 %1732
  %v1734 = vsel %vm1366, %v1714, 0.0
  %1735 = vadd.xlane.f32.xlu0 %v1734
  %v1736 = vpop.xlane.xlu0 %1735
  %v1737 = vsel %vm1366, %v1715, 0.0
  %1738 = vadd.xlane.f32.xlu0 %v1737
  %v1739 = vpop.xlane.xlu0 %1738
  %v1740 = vmul.f32 %v1718, %v1391
  %v1741 = vmul.f32 %v1721, %v1391
  %v1742 = vmul.f32 %v1724, %v1391
  %v1743 = vmul.f32 %v1727, %v1391
  %v1744 = vmul.f32 %v1730, %v1391
  %v1745 = vmul.f32 %v1733, %v1391
  %v1746 = vmul.f32 %v1736, %v1391
  %v1747 = vmul.f32 %v1739, %v1391
  %v1748 = vadd.f32 %v1740, 1e-05
  %v1749 = vadd.f32 %v1741, 1e-05
  %v1750 = vadd.f32 %v1742, 1e-05
  %v1751 = vadd.f32 %v1743, 1e-05
  %v1752 = vadd.f32 %v1744, 1e-05
  %v1753 = vadd.f32 %v1745, 1e-05
  %v1754 = vadd.f32 %v1746, 1e-05
  %v1755 = vadd.f32 %v1747, 1e-05
  %v1756 = vrsqrt.pop %v1748
  %v1757 = vrsqrt.pop %v1749
  %v1758 = vrsqrt.pop %v1750
  %v1759 = vrsqrt.pop %v1751
  %v1760 = vrsqrt.pop %v1752
  %v1761 = vrsqrt.pop %v1753
  %v1762 = vrsqrt.pop %v1754
  %v1763 = vrsqrt.pop %v1755
  %v1764 = vmul.f32 %v1700, %v1756
  %v1765 = vmul.f32 %v1701, %v1757
  %v1766 = vmul.f32 %v1702, %v1758
  %v1767 = vmul.f32 %v1703, %v1759
  %v1768 = vmul.f32 %v1704, %v1760
  %v1769 = vmul.f32 %v1705, %v1761
  %v1770 = vmul.f32 %v1706, %v1762
  %v1771 = vmul.f32 %v1707, %v1763
  %v1772 = vmul.f32 %v1764, %v1666
  %v1773 = vmul.f32 %v1765, %v1666
  %v1774 = vmul.f32 %v1766, %v1666
  %v1775 = vmul.f32 %v1767, %v1666
  %v1776 = vmul.f32 %v1768, %v1666
  %v1777 = vmul.f32 %v1769, %v1666
  %v1778 = vmul.f32 %v1770, %v1666
  %v1779 = vmul.f32 %v1771, %v1666
  %v1780 = vadd.f32 %v1772, %v1667
  %v1781 = vadd.f32 %v1773, %v1667
  %v1782 = vadd.f32 %v1774, %v1667
  %v1783 = vadd.f32 %v1775, %v1667
  %v1784 = vadd.f32 %v1776, %v1667
  %v1785 = vadd.f32 %v1777, %v1667
  %v1786 = vadd.f32 %v1778, %v1667
  %v1787 = vadd.f32 %v1779, %v1667
  %v1788 = vmul.f32 %v1780, 0.5
  %v1789 = vmul.f32 %v1781, 0.5
  %v1790 = vmul.f32 %v1782, 0.5
  %v1791 = vmul.f32 %v1783, 0.5
  %v1792 = vmul.f32 %v1784, 0.5
  %v1793 = vmul.f32 %v1785, 0.5
  %v1794 = vmul.f32 %v1786, 0.5
  %v1795 = vmul.f32 %v1787, 0.5
  %v1796 = vmul.f32 %v1780, 0.70710677
  %v1797 = vmul.f32 %v1781, 0.70710677
  %v1798 = vmul.f32 %v1782, 0.70710677
  %v1799 = vmul.f32 %v1783, 0.70710677
  %v1800 = vmul.f32 %v1784, 0.70710677
  %v1801 = vmul.f32 %v1785, 0.70710677
  %v1802 = vmul.f32 %v1786, 0.70710677
  %v1803 = vmul.f32 %v1787, 0.70710677
  %v1804 = verf.f32.pop %v1796
  %v1805 = verf.f32.pop %v1797
  %v1806 = verf.f32.pop %v1798
  %v1807 = verf.f32.pop %v1799
  %v1808 = verf.f32.pop %v1800
  %v1809 = verf.f32.pop %v1801
  %v1810 = verf.f32.pop %v1802
  %v1811 = verf.f32.pop %v1803
  %v1812 = vadd.f32 %v1804, 1.0
  %v1813 = vadd.f32 %v1805, 1.0
  %v1814 = vadd.f32 %v1806, 1.0
  %v1815 = vadd.f32 %v1807, 1.0
  %v1816 = vadd.f32 %v1808, 1.0
  %v1817 = vadd.f32 %v1809, 1.0
  %v1818 = vadd.f32 %v1810, 1.0
  %v1819 = vadd.f32 %v1811, 1.0
  %v1820 = vmul.f32 %v1788, %v1812
  %v1821 = vmul.f32 %v1789, %v1813
  %v1822 = vmul.f32 %v1790, %v1814
  %v1823 = vmul.f32 %v1791, %v1815
  %v1824 = vmul.f32 %v1792, %v1816
  %v1825 = vmul.f32 %v1793, %v1817
  %v1826 = vmul.f32 %v1794, %v1818
  %v1827 = vmul.f32 %v1795, %v1819
  %v1828 = vld [vmem:[%s1 + $0x180] sm:$0xff]
  %v1829 = vld [vmem:[%s1 + $0x188] sm:$0xff]
  %v1830 = vld [vmem:[%s1 + $0x190] sm:$0xff]
  %v1831 = vld [vmem:[%s1 + $0x198] sm:$0xff]
  %v1832 = vld [vmem:[%s1 + $0x1a0] sm:$0xff]
  %v1833 = vld [vmem:[%s1 + $0x1a8] sm:$0xff]
  %v1834 = vld [vmem:[%s1 + $0x1b0] sm:$0xff]
  %v1835 = vld [vmem:[%s1 + $0x1b8] sm:$0xff]
  %v1836 = vld [vmem:[%s1 + $0x1c0] sm:$0xff]
  %v1837 = vld [vmem:[%s1 + $0x1c8] sm:$0xff]
  %v1838 = vld [vmem:[%s1 + $0x1d0] sm:$0xff]
  %v1839 = vld [vmem:[%s1 + $0x1d8] sm:$0xff]
  %v1840 = vld [vmem:[%s1 + $0x1e0] sm:$0xff]
  %v1841 = vld [vmem:[%s1 + $0x1e8] sm:$0xff]
  %v1842 = vld [vmem:[%s1 + $0x1f0] sm:$0xff]
  %v1843 = vld [vmem:[%s1 + $0x1f8] sm:$0xff]
  %v1845 = vsel %vm1366, %v1820, 0
  %v1848 = vsel %vm1366, %v1821, 0
  %v1851 = vsel %vm1366, %v1822, 0
  %v1854 = vsel %vm1366, %v1823, 0
  %v1857 = vsel %vm1366, %v1824, 0
  %v1860 = vsel %vm1366, %v1825, 0
  %v1863 = vsel %vm1366, %v1826, 0
  %v1866 = vsel %vm1366, %v1827, 0
  %1868 = vmatprep.subr.mxu0 0.0
  %1869 = vmatpush1.msra.mxu0 0.0
  %1870 = vmatprep.subr.mxu0 0.0
  %1871 = vmatpush1.msra.mxu0 0.0
  %1872 = vmatprep.subr.mxu0 0.0
  %1873 = vmatpush1.msra.mxu0 0.0
  %1874 = vmatprep.subr.mxu0 0.0
  %1875 = vmatpush1.msra.mxu0 0.0
  %1876 = vmatprep.subr.mxu0 0.0
  %1877 = vmatpush1.msra.mxu0 0.0
  %1878 = vmatprep.subr.mxu0 0.0
  %1879 = vmatpush1.msra.mxu0 0.0
  %1880 = vmatprep.subr.mxu0 0.0
  %1881 = vmatpush1.msra.mxu0 0.0
  %1882 = vmatprep.subr.mxu0 0.0
  %1883 = vmatpush1.msra.mxu0 0.0
  %1884 = vmatprep.subr.mxu0 %v1843
  %1885 = vmatpush1.msra.mxu0 %v1842
  %1886 = vmatprep.subr.mxu0 %v1841
  %1887 = vmatpush1.msra.mxu0 %v1840
  %1888 = vmatprep.subr.mxu0 %v1839
  %1889 = vmatpush1.msra.mxu0 %v1838
  %1890 = vmatprep.subr.mxu0 %v1837
  %1891 = vmatpush1.msra.mxu0 %v1836
  %1892 = vmatprep.subr.mxu0 %v1835
  %1893 = vmatpush1.msra.mxu0 %v1834
  %1894 = vmatprep.subr.mxu0 %v1833
  %1895 = vmatpush1.msra.mxu0 %v1832
  %1896 = vmatprep.subr.mxu0 %v1831
  %1897 = vmatpush1.msra.mxu0 %v1830
  %1898 = vmatprep.subr.mxu0 %v1829
  %1899 = vmatpush1.msra.mxu0 %v1828
  %1900 = vmatprep.subr.mxu0 0.0
  %1901 = vmatpush2.msra.mxu0 0.0
  %1902 = vmatprep.subr.mxu0 0.0
  %1903 = vmatpush2.msra.mxu0 0.0
  %1904 = vmatprep.subr.mxu0 0.0
  %1905 = vmatpush2.msra.mxu0 0.0
  %1906 = vmatprep.subr.mxu0 0.0
  %1907 = vmatpush2.msra.mxu0 0.0
  %1908 = vmatprep.subr.mxu0 0.0
  %1909 = vmatpush2.msra.mxu0 0.0
  %1910 = vmatprep.subr.mxu0 0.0
  %1911 = vmatpush2.msra.mxu0 0.0
  %1912 = vmatprep.subr.mxu0 0.0
  %1913 = vmatpush2.msra.mxu0 0.0
  %1914 = vmatprep.subr.mxu0 0.0
  %1915 = vmatpush2.msra.mxu0 0.0
  %1916 = vmatprep.subr.mxu0 0.0
  %1917 = vmatpush2.msra.mxu0 0.0
  %1918 = vmatprep.subr.mxu0 0.0
  %1919 = vmatpush2.msra.mxu0 0.0
  %1920 = vmatprep.subr.mxu0 0.0
  %1921 = vmatpush2.msra.mxu0 0.0
  %1922 = vmatprep.subr.mxu0 0.0
  %1923 = vmatpush2.msra.mxu0 0.0
  %1924 = vmatprep.subr.mxu0 0.0
  %1925 = vmatpush2.msra.mxu0 0.0
  %1926 = vmatprep.subr.mxu0 0.0
  %1927 = vmatpush2.msra.mxu0 0.0
  %1928 = vmatprep.subr.mxu0 0.0
  %1929 = vmatpush2.msra.mxu0 0.0
  %1930 = vmatprep.subr.mxu0 0.0
  %1931 = vmatpush2.msra.mxu0 0.0
  %1932 = vmatprep.mubr.f32.mxu0 0.0
  %1933 = vmatmul.mubr.f32.gmra.mxu0 %v1845
  %v1934 = vpop.f32.mrf.mxu0
  %v1935 = vadd.f32 0.0, %v1934
  %v1936 = vpop.f32.mrf.mxu0
  %v1937 = vadd.f32 0.0, %v1936
  %1938 = vmatprep.mubr.f32.mxu0 0.0
  %1939 = vmatmul.mubr.f32.gmra.mxu0 %v1848
  %v1940 = vpop.f32.mrf.mxu0
  %v1941 = vadd.f32 0.0, %v1940
  %v1942 = vpop.f32.mrf.mxu0
  %v1943 = vadd.f32 0.0, %v1942
  %1944 = vmatprep.mubr.f32.mxu0 0.0
  %1945 = vmatmul.mubr.f32.gmra.mxu0 %v1851
  %v1946 = vpop.f32.mrf.mxu0
  %v1947 = vadd.f32 0.0, %v1946
  %v1948 = vpop.f32.mrf.mxu0
  %v1949 = vadd.f32 0.0, %v1948
  %1950 = vmatprep.mubr.f32.mxu0 0.0
  %1951 = vmatmul.mubr.f32.gmra.mxu0 %v1854
  %v1952 = vpop.f32.mrf.mxu0
  %v1953 = vadd.f32 0.0, %v1952
  %v1954 = vpop.f32.mrf.mxu0
  %v1955 = vadd.f32 0.0, %v1954
  %1956 = vmatprep.mubr.f32.mxu0 0.0
  %1957 = vmatmul.mubr.f32.gmra.mxu0 %v1857
  %v1958 = vpop.f32.mrf.mxu0
  %v1959 = vadd.f32 0.0, %v1958
  %v1960 = vpop.f32.mrf.mxu0
  %v1961 = vadd.f32 0.0, %v1960
  %1962 = vmatprep.mubr.f32.mxu0 0.0
  %1963 = vmatmul.mubr.f32.gmra.mxu0 %v1860
  %v1964 = vpop.f32.mrf.mxu0
  %v1965 = vadd.f32 0.0, %v1964
  %v1966 = vpop.f32.mrf.mxu0
  %v1967 = vadd.f32 0.0, %v1966
  %1968 = vmatprep.mubr.f32.mxu0 0.0
  %1969 = vmatmul.mubr.f32.gmra.mxu0 %v1863
  %v1970 = vpop.f32.mrf.mxu0
  %v1971 = vadd.f32 0.0, %v1970
  %v1972 = vpop.f32.mrf.mxu0
  %v1973 = vadd.f32 0.0, %v1972
  %1974 = vmatprep.mubr.f32.mxu0 0.0
  %1975 = vmatmul.mubr.f32.gmra.mxu0 %v1866
  %v1976 = vpop.f32.mrf.mxu0
  %v1977 = vadd.f32 0.0, %v1976
  %v1978 = vpop.f32.mrf.mxu0
  %v1979 = vadd.f32 0.0, %v1978
  %1980 = vdwg.mxu0
  %1981 = vst [vmem:[#allocation2] sm:$0xff] %v1935
  %1982 = vst.msk [vmem:[#allocation2 + $0x8] sm:$0xff] %vm1366, %v1937
  %1983 = vst [vmem:[#allocation2 + $0x10] sm:$0xff] %v1941
  %1984 = vst.msk [vmem:[#allocation2 + $0x18] sm:$0xff] %vm1366, %v1943
  %1985 = vst [vmem:[#allocation2 + $0x20] sm:$0xff] %v1947
  %1986 = vst.msk [vmem:[#allocation2 + $0x28] sm:$0xff] %vm1366, %v1949
  %1987 = vst [vmem:[#allocation2 + $0x30] sm:$0xff] %v1953
  %1988 = vst.msk [vmem:[#allocation2 + $0x38] sm:$0xff] %vm1366, %v1955
  %1989 = vst [vmem:[#allocation2 + $0x40] sm:$0xff] %v1959
  %1990 = vst.msk [vmem:[#allocation2 + $0x48] sm:$0xff] %vm1366, %v1961
  %1991 = vst [vmem:[#allocation2 + $0x50] sm:$0xff] %v1965
  %1992 = vst.msk [vmem:[#allocation2 + $0x58] sm:$0xff] %vm1366, %v1967
  %1993 = vst [vmem:[#allocation2 + $0x60] sm:$0xff] %v1971
  %1994 = vst.msk [vmem:[#allocation2 + $0x68] sm:$0xff] %vm1366, %v1973
  %1995 = vst [vmem:[#allocation2 + $0x70] sm:$0xff] %v1977
  %1996 = vst.msk [vmem:[#allocation2 + $0x78] sm:$0xff] %vm1366, %v1979
  %v1997 = vld [vmem:[#allocation2] sm:$0xff]
  %v1998 = vld [vmem:[#allocation2 + $0x40] sm:$0xff]
  %v1999 = vld [vmem:[#allocation2 + $0x10] sm:$0xff]
  %v2000 = vld [vmem:[#allocation2 + $0x50] sm:$0xff]
  %v2001 = vld [vmem:[#allocation2 + $0x20] sm:$0xff]
  %v2002 = vld [vmem:[#allocation2 + $0x60] sm:$0xff]
  %v2003 = vld [vmem:[#allocation2 + $0x30] sm:$0xff]
  %v2004 = vld [vmem:[#allocation2 + $0x70] sm:$0xff]
  %2013 = vrot.lane.b32.xlu0 %v1997, 64
  %v2014 = vpop.permute.xlu0 %2013
  %2015 = vrot.lane.b32.xlu0 %v1998, 64
  %v2016 = vpop.permute.xlu0 %2015
  %2017 = vrot.lane.b32.xlu0 %v1999, 64
  %v2018 = vpop.permute.xlu0 %2017
  %2019 = vrot.lane.b32.xlu0 %v2000, 64
  %v2020 = vpop.permute.xlu0 %2019
  %2021 = vrot.lane.b32.xlu0 %v2001, 64
  %v2022 = vpop.permute.xlu0 %2021
  %2023 = vrot.lane.b32.xlu0 %v2002, 64
  %v2024 = vpop.permute.xlu0 %2023
  %2025 = vrot.lane.b32.xlu0 %v2003, 64
  %v2026 = vpop.permute.xlu0 %2025
  %2027 = vrot.lane.b32.xlu0 %v2004, 64
  %v2028 = vpop.permute.xlu0 %2027
  %2037 = vxpose.xlu0.b32.start [1/16] %v2014, 128
  %2038 = vxpose.xlu0.b32.cont [2/16] %v2016, 128
  %2039 = vxpose.xlu0.b32.cont [3/16] %v2018, 128
  %2040 = vxpose.xlu0.b32.cont [4/16] %v2020, 128
  %2041 = vxpose.xlu0.b32.cont [5/16] %v2022, 128
  %2042 = vxpose.xlu0.b32.cont [6/16] %v2024, 128
  %2043 = vxpose.xlu0.b32.cont [7/16] %v2026, 128
  %2044 = vxpose.xlu0.b32.cont [8/16] %v2028, 128
  %2045 = vxpose.xlu0.b32.cont [9/16] 0.0, 128
  %2046 = vxpose.xlu0.b32.cont [10/16] 0.0, 128
  %2047 = vxpose.xlu0.b32.cont [11/16] 0.0, 128
  %2048 = vxpose.xlu0.b32.cont [12/16] 0.0, 128
  %2049 = vxpose.xlu0.b32.cont [13/16] 0.0, 128
  %2050 = vxpose.xlu0.b32.cont [14/16] 0.0, 128
  %2051 = vxpose.xlu0.b32.cont [15/16] 0.0, 128
  %2052 = vxpose.xlu0.b32.end [16/16] 0.0, 128
  %v2053 = vpop.trf.xlu0
  %v2054 = vpop.trf.xlu0
  %v2055 = vpop.trf.xlu0
  %v2056 = vpop.trf.xlu0
  %v2057 = vpop.trf.xlu0
  %v2058 = vpop.trf.xlu0
  %v2059 = vpop.trf.xlu0
  %v2060 = vpop.trf.xlu0
  %v2061 = vpop.trf.xlu0
  %v2062 = vpop.trf.xlu0
  %v2063 = vpop.trf.xlu0
  %v2064 = vpop.trf.xlu0
  %v2065 = vpop.trf.xlu0
  %v2066 = vpop.trf.xlu0
  %v2067 = vpop.trf.xlu0
  %v2068 = vpop.trf.xlu0
  %v2069 = vlaneseq
  %v2070 = vand.u32 %v2069, 127
  %vm2071 = vcmp.lt.s32.totalorder %v193, 8
  %vm2072 = vcmp.lt.s32.totalorder %v194, 8
  %vm2073 = vcmp.lt.s32.totalorder %v2070, 64
  %vm2074 = vmxor %vm2071, %vm2073
  %vm2075 = vmxor %vm2072, %vm2073
  %vm2076 = vmxor %vm2074, 1
  %vm2077 = vmxor %vm2075, 1
  %v2078 = vsel %vm2076, 1.0, 0.0
  %v2079 = vsel %vm2077, 1.0, 0.0
  %v2080 = vld [vmem:[#allocation2 + $0x8] sm:$0xff]
  %v2081 = vld [vmem:[#allocation2 + $0x48] sm:$0xff]
  %v2082 = vsel %vm1366, %v2080, 0.0
  %2084 = vrot.lane.b32.xlu0 %v2081, 64
  %v2085 = vpop.permute.xlu0 %2084
  %v2087 = vsel %vm1366, 0.0, %v2085
  %v2088 = vsel %vm1366, %v1997, 0
  %v2090 = vsel %vm1366, %v1998, 0
  %v2092 = vsel %vm1366, %v2014, 0
  %v2094 = vsel %vm1366, %v2016, 0
  %2096 = vmatprep.subr.mxu0 0.0
  %2097 = vmatpush1.msra.mxu0 0.0
  %2098 = vmatprep.subr.mxu0 0.0
  %2099 = vmatpush1.msra.mxu0 0.0
  %2100 = vmatprep.subr.mxu0 0.0
  %2101 = vmatpush1.msra.mxu0 0.0
  %2102 = vmatprep.subr.mxu0 0.0
  %2103 = vmatpush1.msra.mxu0 0.0
  %2104 = vmatprep.subr.mxu0 0.0
  %2105 = vmatpush1.msra.mxu0 0.0
  %2106 = vmatprep.subr.mxu0 0.0
  %2107 = vmatpush1.msra.mxu0 0.0
  %2108 = vmatprep.subr.mxu0 0.0
  %2109 = vmatpush1.msra.mxu0 0.0
  %2110 = vmatprep.subr.mxu0 0.0
  %2111 = vmatpush1.msra.mxu0 0.0
  %2112 = vmatprep.subr.mxu0 0.0
  %2113 = vmatpush1.msra.mxu0 0.0
  %2114 = vmatprep.subr.mxu0 0.0
  %2115 = vmatpush1.msra.mxu0 0.0
  %2116 = vmatprep.subr.mxu0 0.0
  %2117 = vmatpush1.msra.mxu0 0.0
  %2118 = vmatprep.subr.mxu0 0.0
  %2119 = vmatpush1.msra.mxu0 0.0
  %2120 = vmatprep.subr.mxu0 0.0
  %2121 = vmatpush1.msra.mxu0 0.0
  %2122 = vmatprep.subr.mxu0 0.0
  %2123 = vmatpush1.msra.mxu0 0.0
  %2124 = vmatprep.subr.mxu0 0.0
  %2125 = vmatpush1.msra.mxu0 0.0
  %2126 = vmatprep.subr.mxu0 0.0
  %2127 = vmatpush1.msra.mxu0 0.0
  %2128 = vmatprep.subr.mxu0 0.0
  %2129 = vmatpush2.msra.mxu0 0.0
  %2130 = vmatprep.subr.mxu0 0.0
  %2131 = vmatpush2.msra.mxu0 0.0
  %2132 = vmatprep.subr.mxu0 0.0
  %2133 = vmatpush2.msra.mxu0 0.0
  %2134 = vmatprep.subr.mxu0 0.0
  %2135 = vmatpush2.msra.mxu0 0.0
  %2136 = vmatprep.subr.mxu0 0.0
  %2137 = vmatpush2.msra.mxu0 0.0
  %2138 = vmatprep.subr.mxu0 0.0
  %2139 = vmatpush2.msra.mxu0 0.0
  %2140 = vmatprep.subr.mxu0 0.0
  %2141 = vmatpush2.msra.mxu0 0.0
  %2142 = vmatprep.subr.mxu0 0.0
  %2143 = vmatpush2.msra.mxu0 0.0
  %2144 = vmatprep.subr.mxu0 0.0
  %2145 = vmatpush2.msra.mxu0 0.0
  %2146 = vmatprep.subr.mxu0 0.0
  %2147 = vmatpush2.msra.mxu0 0.0
  %2148 = vmatprep.subr.mxu0 0.0
  %2149 = vmatpush2.msra.mxu0 0.0
  %2150 = vmatprep.subr.mxu0 0.0
  %2151 = vmatpush2.msra.mxu0 0.0
  %2152 = vmatprep.subr.mxu0 0.0
  %2153 = vmatpush2.msra.mxu0 0.0
  %2154 = vmatprep.subr.mxu0 0.0
  %2155 = vmatpush2.msra.mxu0 0.0
  %2156 = vmatprep.subr.mxu0 0.0
  %2157 = vmatpush2.msra.mxu0 0.0
  %2158 = vmatprep.subr.mxu0 0.0
  %2159 = vmatpush2.msra.mxu0 0.0
  %2160 = vmatprep.mubr.f32.mxu0 0.0
  %2161 = vmatmul.mubr.f32.gmra.mxu0 %v2088
  %v2162 = vpop.f32.mrf.mxu0
  %v2163 = vadd.f32 0.0, %v2162
  %v2164 = vpop.f32.mrf.mxu0
  %2165 = vmatprep.mubr.f32.mxu0 0.0
  %2166 = vmatmul.mubr.f32.gmra.mxu0 %v2090
  %v2167 = vpop.f32.mrf.mxu0
  %v2168 = vadd.f32 0.0, %v2167
  %v2169 = vpop.f32.mrf.mxu0
  %2170 = vmatprep.mubr.f32.mxu0 0.0
  %2171 = vmatmul.mubr.f32.gmra.mxu0 %v2092
  %v2172 = vpop.f32.mrf.mxu0
  %v2173 = vadd.f32 0.0, %v2172
  %v2174 = vpop.f32.mrf.mxu0
  %2175 = vmatprep.mubr.f32.mxu0 0.0
  %2176 = vmatmul.mubr.f32.gmra.mxu0 %v2094
  %v2177 = vpop.f32.mrf.mxu0
  %v2178 = vadd.f32 0.0, %v2177
  %v2179 = vpop.f32.mrf.mxu0
  %2180 = vdwg.mxu0
  %v2181 = vadd.f32 %v2163, 0.0
  %v2182 = vadd.f32 %v2168, 0.0
  %v2183 = vmul.f32 %v2173, %v2078
  %v2184 = vmul.f32 %v2178, %v2079
  %v2185 = vsub.f32 %v2183, %v2082
  %v2186 = vsub.f32 %v2184, %v2087
  %v2188 = vsel %vm22, %v2053, 0
  %v2191 = vsel %vm22, %v2054, 0
  %v2194 = vsel %vm22, %v2055, 0
  %v2197 = vsel %vm22, %v2056, 0
  %v2200 = vsel %vm22, %v2057, 0
  %v2203 = vsel %vm22, %v2058, 0
  %v2206 = vsel %vm22, %v2059, 0
  %v2209 = vsel %vm22, %v2060, 0
  %2211 = vmatprep.subr.mxu0 0.0
  %2212 = vmatpush1.msra.mxu0 0.0
  %2213 = vmatprep.subr.mxu0 0.0
  %2214 = vmatpush1.msra.mxu0 0.0
  %2215 = vmatprep.subr.mxu0 0.0
  %2216 = vmatpush1.msra.mxu0 0.0
  %2217 = vmatprep.subr.mxu0 0.0
  %2218 = vmatpush1.msra.mxu0 0.0
  %2219 = vmatprep.subr.mxu0 0.0
  %2220 = vmatpush1.msra.mxu0 0.0
  %2221 = vmatprep.subr.mxu0 0.0
  %2222 = vmatpush1.msra.mxu0 0.0
  %2223 = vmatprep.subr.mxu0 0.0
  %2224 = vmatpush1.msra.mxu0 0.0
  %2225 = vmatprep.subr.mxu0 0.0
  %2226 = vmatpush1.msra.mxu0 0.0
  %2227 = vmatprep.subr.mxu0 0.0
  %2228 = vmatpush1.msra.mxu0 0.0
  %2229 = vmatprep.subr.mxu0 0.0
  %2230 = vmatpush1.msra.mxu0 0.0
  %2231 = vmatprep.subr.mxu0 0.0
  %2232 = vmatpush1.msra.mxu0 0.0
  %2233 = vmatprep.subr.mxu0 0.0
  %2234 = vmatpush1.msra.mxu0 0.0
  %2235 = vmatprep.subr.mxu0 0.0
  %2236 = vmatpush1.msra.mxu0 0.0
  %2237 = vmatprep.subr.mxu0 0.0
  %2238 = vmatpush1.msra.mxu0 0.0
  %2239 = vmatprep.subr.mxu0 0.0
  %2240 = vmatpush1.msra.mxu0 %v2186
  %2241 = vmatprep.subr.mxu0 0.0
  %2242 = vmatpush1.msra.mxu0 %v2185
  %2243 = vmatprep.subr.mxu0 0.0
  %2244 = vmatpush2.msra.mxu0 0.0
  %2245 = vmatprep.subr.mxu0 0.0
  %2246 = vmatpush2.msra.mxu0 0.0
  %2247 = vmatprep.subr.mxu0 0.0
  %2248 = vmatpush2.msra.mxu0 0.0
  %2249 = vmatprep.subr.mxu0 0.0
  %2250 = vmatpush2.msra.mxu0 0.0
  %2251 = vmatprep.subr.mxu0 0.0
  %2252 = vmatpush2.msra.mxu0 0.0
  %2253 = vmatprep.subr.mxu0 0.0
  %2254 = vmatpush2.msra.mxu0 0.0
  %2255 = vmatprep.subr.mxu0 0.0
  %2256 = vmatpush2.msra.mxu0 0.0
  %2257 = vmatprep.subr.mxu0 0.0
  %2258 = vmatpush2.msra.mxu0 0.0
  %2259 = vmatprep.subr.mxu0 0.0
  %2260 = vmatpush2.msra.mxu0 0.0
  %2261 = vmatprep.subr.mxu0 0.0
  %2262 = vmatpush2.msra.mxu0 0.0
  %2263 = vmatprep.subr.mxu0 0.0
  %2264 = vmatpush2.msra.mxu0 0.0
  %2265 = vmatprep.subr.mxu0 0.0
  %2266 = vmatpush2.msra.mxu0 0.0
  %2267 = vmatprep.subr.mxu0 0.0
  %2268 = vmatpush2.msra.mxu0 0.0
  %2269 = vmatprep.subr.mxu0 0.0
  %2270 = vmatpush2.msra.mxu0 0.0
  %2271 = vmatprep.subr.mxu0 0.0
  %2272 = vmatpush2.msra.mxu0 0.0
  %2273 = vmatprep.subr.mxu0 0.0
  %2274 = vmatpush2.msra.mxu0 0.0
  %2275 = vmatprep.mubr.f32.mxu0 0.0
  %2276 = vmatmul.mubr.f32.gmra.mxu0 %v2188
  %v2277 = vpop.f32.mrf.mxu0
  %v2278 = vadd.f32 0.0, %v2277
  %v2279 = vpop.f32.mrf.mxu0
  %2280 = vmatprep.mubr.f32.mxu0 0.0
  %2281 = vmatmul.mubr.f32.gmra.mxu0 %v2191
  %v2282 = vpop.f32.mrf.mxu0
  %v2283 = vadd.f32 0.0, %v2282
  %v2284 = vpop.f32.mrf.mxu0
  %2285 = vmatprep.mubr.f32.mxu0 0.0
  %2286 = vmatmul.mubr.f32.gmra.mxu0 %v2194
  %v2287 = vpop.f32.mrf.mxu0
  %v2288 = vadd.f32 0.0, %v2287
  %v2289 = vpop.f32.mrf.mxu0
  %2290 = vmatprep.mubr.f32.mxu0 0.0
  %2291 = vmatmul.mubr.f32.gmra.mxu0 %v2197
  %v2292 = vpop.f32.mrf.mxu0
  %v2293 = vadd.f32 0.0, %v2292
  %v2294 = vpop.f32.mrf.mxu0
  %2295 = vmatprep.mubr.f32.mxu0 0.0
  %2296 = vmatmul.mubr.f32.gmra.mxu0 %v2200
  %v2297 = vpop.f32.mrf.mxu0
  %v2298 = vadd.f32 0.0, %v2297
  %v2299 = vpop.f32.mrf.mxu0
  %2300 = vmatprep.mubr.f32.mxu0 0.0
  %2301 = vmatmul.mubr.f32.gmra.mxu0 %v2203
  %v2302 = vpop.f32.mrf.mxu0
  %v2303 = vadd.f32 0.0, %v2302
  %v2304 = vpop.f32.mrf.mxu0
  %2305 = vmatprep.mubr.f32.mxu0 0.0
  %2306 = vmatmul.mubr.f32.gmra.mxu0 %v2206
  %v2307 = vpop.f32.mrf.mxu0
  %v2308 = vadd.f32 0.0, %v2307
  %v2309 = vpop.f32.mrf.mxu0
  %2310 = vmatprep.mubr.f32.mxu0 0.0
  %2311 = vmatmul.mubr.f32.gmra.mxu0 %v2209
  %v2312 = vpop.f32.mrf.mxu0
  %v2313 = vadd.f32 0.0, %v2312
  %v2314 = vpop.f32.mrf.mxu0
  %2315 = vdwg.mxu0
  %v2316 = vmul.f32 %v2278, 0.01
  %v2317 = vmul.f32 %v2283, 0.01
  %v2318 = vmul.f32 %v2288, 0.01
  %v2319 = vmul.f32 %v2293, 0.01
  %v2320 = vmul.f32 %v2298, 0.01
  %v2321 = vmul.f32 %v2303, 0.01
  %v2322 = vmul.f32 %v2308, 0.01
  %v2323 = vmul.f32 %v2313, 0.01
  %v2324 = vsub.f32 0.0, %v2316
  %v2325 = vsub.f32 0.0, %v2317
  %v2326 = vsub.f32 0.0, %v2318
  %v2327 = vsub.f32 0.0, %v2319
  %v2328 = vsub.f32 0.0, %v2320
  %v2329 = vsub.f32 0.0, %v2321
  %v2330 = vsub.f32 0.0, %v2322
  %v2331 = vsub.f32 0.0, %v2323
  %v2332 = vld [vmem:[#allocation2 + $0x18] sm:$0xff]
  %v2333 = vld [vmem:[#allocation2 + $0x58] sm:$0xff]
  %v2334 = vsel %vm1366, %v2332, 0.0
  %2336 = vrot.lane.b32.xlu0 %v2333, 64
  %v2337 = vpop.permute.xlu0 %2336
  %v2339 = vsel %vm1366, 0.0, %v2337
  %v2340 = vsel %vm1366, %v1999, 0
  %v2342 = vsel %vm1366, %v2000, 0
  %v2344 = vsel %vm1366, %v2018, 0
  %v2346 = vsel %vm1366, %v2020, 0
  %2348 = vmatprep.subr.mxu0 0.0
  %2349 = vmatpush1.msra.mxu0 0.0
  %2350 = vmatprep.subr.mxu0 0.0
  %2351 = vmatpush1.msra.mxu0 0.0
  %2352 = vmatprep.subr.mxu0 0.0
  %2353 = vmatpush1.msra.mxu0 0.0
  %2354 = vmatprep.subr.mxu0 0.0
  %2355 = vmatpush1.msra.mxu0 0.0
  %2356 = vmatprep.subr.mxu0 0.0
  %2357 = vmatpush1.msra.mxu0 0.0
  %2358 = vmatprep.subr.mxu0 0.0
  %2359 = vmatpush1.msra.mxu0 0.0
  %2360 = vmatprep.subr.mxu0 0.0
  %2361 = vmatpush1.msra.mxu0 0.0
  %2362 = vmatprep.subr.mxu0 0.0
  %2363 = vmatpush1.msra.mxu0 0.0
  %2364 = vmatprep.subr.mxu0 0.0
  %2365 = vmatpush1.msra.mxu0 %v2331
  %2366 = vmatprep.subr.mxu0 0.0
  %2367 = vmatpush1.msra.mxu0 %v2330
  %2368 = vmatprep.subr.mxu0 0.0
  %2369 = vmatpush1.msra.mxu0 %v2329
  %2370 = vmatprep.subr.mxu0 0.0
  %2371 = vmatpush1.msra.mxu0 %v2328
  %2372 = vmatprep.subr.mxu0 0.0
  %2373 = vmatpush1.msra.mxu0 %v2327
  %2374 = vmatprep.subr.mxu0 0.0
  %2375 = vmatpush1.msra.mxu0 %v2326
  %2376 = vmatprep.subr.mxu0 0.0
  %2377 = vmatpush1.msra.mxu0 %v2325
  %2378 = vmatprep.subr.mxu0 0.0
  %2379 = vmatpush1.msra.mxu0 %v2324
  %2380 = vmatprep.subr.mxu0 0.0
  %2381 = vmatpush2.msra.mxu0 0.0
  %2382 = vmatprep.subr.mxu0 0.0
  %2383 = vmatpush2.msra.mxu0 0.0
  %2384 = vmatprep.subr.mxu0 0.0
  %2385 = vmatpush2.msra.mxu0 0.0
  %2386 = vmatprep.subr.mxu0 0.0
  %2387 = vmatpush2.msra.mxu0 0.0
  %2388 = vmatprep.subr.mxu0 0.0
  %2389 = vmatpush2.msra.mxu0 0.0
  %2390 = vmatprep.subr.mxu0 0.0
  %2391 = vmatpush2.msra.mxu0 0.0
  %2392 = vmatprep.subr.mxu0 0.0
  %2393 = vmatpush2.msra.mxu0 0.0
  %2394 = vmatprep.subr.mxu0 0.0
  %2395 = vmatpush2.msra.mxu0 0.0
  %2396 = vmatprep.subr.mxu0 0.0
  %2397 = vmatpush2.msra.mxu0 0.0
  %2398 = vmatprep.subr.mxu0 0.0
  %2399 = vmatpush2.msra.mxu0 0.0
  %2400 = vmatprep.subr.mxu0 0.0
  %2401 = vmatpush2.msra.mxu0 0.0
  %2402 = vmatprep.subr.mxu0 0.0
  %2403 = vmatpush2.msra.mxu0 0.0
  %2404 = vmatprep.subr.mxu0 0.0
  %2405 = vmatpush2.msra.mxu0 0.0
  %2406 = vmatprep.subr.mxu0 0.0
  %2407 = vmatpush2.msra.mxu0 0.0
  %2408 = vmatprep.subr.mxu0 0.0
  %2409 = vmatpush2.msra.mxu0 0.0
  %2410 = vmatprep.subr.mxu0 0.0
  %2411 = vmatpush2.msra.mxu0 0.0
  %2412 = vmatprep.mubr.f32.mxu0 0.0
  %2413 = vmatmul.mubr.f32.gmra.mxu0 %v2340
  %v2414 = vpop.f32.mrf.mxu0
  %v2415 = vadd.f32 0.0, %v2414
  %v2416 = vpop.f32.mrf.mxu0
  %2417 = vmatprep.mubr.f32.mxu0 0.0
  %2418 = vmatmul.mubr.f32.gmra.mxu0 %v2342
  %v2419 = vpop.f32.mrf.mxu0
  %v2420 = vadd.f32 0.0, %v2419
  %v2421 = vpop.f32.mrf.mxu0
  %2422 = vmatprep.mubr.f32.mxu0 0.0
  %2423 = vmatmul.mubr.f32.gmra.mxu0 %v2344
  %v2424 = vpop.f32.mrf.mxu0
  %v2425 = vadd.f32 0.0, %v2424
  %v2426 = vpop.f32.mrf.mxu0
  %2427 = vmatprep.mubr.f32.mxu0 0.0
  %2428 = vmatmul.mubr.f32.gmra.mxu0 %v2346
  %v2429 = vpop.f32.mrf.mxu0
  %v2430 = vadd.f32 0.0, %v2429
  %v2431 = vpop.f32.mrf.mxu0
  %2432 = vdwg.mxu0
  %v2433 = vadd.f32 %v2181, %v2415
  %v2434 = vadd.f32 %v2182, %v2420
  %v2435 = vmul.f32 %v2425, %v2078
  %v2436 = vmul.f32 %v2430, %v2079
  %v2437 = vsub.f32 %v2435, %v2334
  %v2438 = vsub.f32 %v2436, %v2339
  %2439 = vrot.lane.b32.xlu0 %v2053, 112
  %v2440 = vpop.permute.xlu0 %2439
  %2441 = vrot.lane.b32.xlu0 %v2054, 112
  %v2442 = vpop.permute.xlu0 %2441
  %2443 = vrot.lane.b32.xlu0 %v2055, 112
  %v2444 = vpop.permute.xlu0 %2443
  %2445 = vrot.lane.b32.xlu0 %v2056, 112
  %v2446 = vpop.permute.xlu0 %2445
  %2447 = vrot.lane.b32.xlu0 %v2057, 112
  %v2448 = vpop.permute.xlu0 %2447
  %2449 = vrot.lane.b32.xlu0 %v2058, 112
  %v2450 = vpop.permute.xlu0 %2449
  %2451 = vrot.lane.b32.xlu0 %v2059, 112
  %v2452 = vpop.permute.xlu0 %2451
  %2453 = vrot.lane.b32.xlu0 %v2060, 112
  %v2454 = vpop.permute.xlu0 %2453
  %v2455 = vsel %vm22, %v2440, 0
  %v2457 = vsel %vm22, %v2442, 0
  %v2459 = vsel %vm22, %v2444, 0
  %v2461 = vsel %vm22, %v2446, 0
  %v2463 = vsel %vm22, %v2448, 0
  %v2465 = vsel %vm22, %v2450, 0
  %v2467 = vsel %vm22, %v2452, 0
  %v2469 = vsel %vm22, %v2454, 0
  %2471 = vmatprep.subr.mxu0 0.0
  %2472 = vmatpush1.msra.mxu0 0.0
  %2473 = vmatprep.subr.mxu0 0.0
  %2474 = vmatpush1.msra.mxu0 0.0
  %2475 = vmatprep.subr.mxu0 0.0
  %2476 = vmatpush1.msra.mxu0 0.0
  %2477 = vmatprep.subr.mxu0 0.0
  %2478 = vmatpush1.msra.mxu0 0.0
  %2479 = vmatprep.subr.mxu0 0.0
  %2480 = vmatpush1.msra.mxu0 0.0
  %2481 = vmatprep.subr.mxu0 0.0
  %2482 = vmatpush1.msra.mxu0 0.0
  %2483 = vmatprep.subr.mxu0 0.0
  %2484 = vmatpush1.msra.mxu0 0.0
  %2485 = vmatprep.subr.mxu0 0.0
  %2486 = vmatpush1.msra.mxu0 0.0
  %2487 = vmatprep.subr.mxu0 0.0
  %2488 = vmatpush1.msra.mxu0 0.0
  %2489 = vmatprep.subr.mxu0 0.0
  %2490 = vmatpush1.msra.mxu0 0.0
  %2491 = vmatprep.subr.mxu0 0.0
  %2492 = vmatpush1.msra.mxu0 0.0
  %2493 = vmatprep.subr.mxu0 0.0
  %2494 = vmatpush1.msra.mxu0 0.0
  %2495 = vmatprep.subr.mxu0 0.0
  %2496 = vmatpush1.msra.mxu0 0.0
  %2497 = vmatprep.subr.mxu0 0.0
  %2498 = vmatpush1.msra.mxu0 0.0
  %2499 = vmatprep.subr.mxu0 0.0
  %2500 = vmatpush1.msra.mxu0 %v2438
  %2501 = vmatprep.subr.mxu0 0.0
  %2502 = vmatpush1.msra.mxu0 %v2437
  %2503 = vmatprep.subr.mxu0 0.0
  %2504 = vmatpush2.msra.mxu0 0.0
  %2505 = vmatprep.subr.mxu0 0.0
  %2506 = vmatpush2.msra.mxu0 0.0
  %2507 = vmatprep.subr.mxu0 0.0
  %2508 = vmatpush2.msra.mxu0 0.0
  %2509 = vmatprep.subr.mxu0 0.0
  %2510 = vmatpush2.msra.mxu0 0.0
  %2511 = vmatprep.subr.mxu0 0.0
  %2512 = vmatpush2.msra.mxu0 0.0
  %2513 = vmatprep.subr.mxu0 0.0
  %2514 = vmatpush2.msra.mxu0 0.0
  %2515 = vmatprep.subr.mxu0 0.0
  %2516 = vmatpush2.msra.mxu0 0.0
  %2517 = vmatprep.subr.mxu0 0.0
  %2518 = vmatpush2.msra.mxu0 0.0
  %2519 = vmatprep.subr.mxu0 0.0
  %2520 = vmatpush2.msra.mxu0 0.0
  %2521 = vmatprep.subr.mxu0 0.0
  %2522 = vmatpush2.msra.mxu0 0.0
  %2523 = vmatprep.subr.mxu0 0.0
  %2524 = vmatpush2.msra.mxu0 0.0
  %2525 = vmatprep.subr.mxu0 0.0
  %2526 = vmatpush2.msra.mxu0 0.0
  %2527 = vmatprep.subr.mxu0 0.0
  %2528 = vmatpush2.msra.mxu0 0.0
  %2529 = vmatprep.subr.mxu0 0.0
  %2530 = vmatpush2.msra.mxu0 0.0
  %2531 = vmatprep.subr.mxu0 0.0
  %2532 = vmatpush2.msra.mxu0 0.0
  %2533 = vmatprep.subr.mxu0 0.0
  %2534 = vmatpush2.msra.mxu0 0.0
  %2535 = vmatprep.mubr.f32.mxu0 0.0
  %2536 = vmatmul.mubr.f32.gmra.mxu0 %v2455
  %v2537 = vpop.f32.mrf.mxu0
  %v2538 = vadd.f32 0.0, %v2537
  %v2539 = vpop.f32.mrf.mxu0
  %2540 = vmatprep.mubr.f32.mxu0 0.0
  %2541 = vmatmul.mubr.f32.gmra.mxu0 %v2457
  %v2542 = vpop.f32.mrf.mxu0
  %v2543 = vadd.f32 0.0, %v2542
  %v2544 = vpop.f32.mrf.mxu0
  %2545 = vmatprep.mubr.f32.mxu0 0.0
  %2546 = vmatmul.mubr.f32.gmra.mxu0 %v2459
  %v2547 = vpop.f32.mrf.mxu0
  %v2548 = vadd.f32 0.0, %v2547
  %v2549 = vpop.f32.mrf.mxu0
  %2550 = vmatprep.mubr.f32.mxu0 0.0
  %2551 = vmatmul.mubr.f32.gmra.mxu0 %v2461
  %v2552 = vpop.f32.mrf.mxu0
  %v2553 = vadd.f32 0.0, %v2552
  %v2554 = vpop.f32.mrf.mxu0
  %2555 = vmatprep.mubr.f32.mxu0 0.0
  %2556 = vmatmul.mubr.f32.gmra.mxu0 %v2463
  %v2557 = vpop.f32.mrf.mxu0
  %v2558 = vadd.f32 0.0, %v2557
  %v2559 = vpop.f32.mrf.mxu0
  %2560 = vmatprep.mubr.f32.mxu0 0.0
  %2561 = vmatmul.mubr.f32.gmra.mxu0 %v2465
  %v2562 = vpop.f32.mrf.mxu0
  %v2563 = vadd.f32 0.0, %v2562
  %v2564 = vpop.f32.mrf.mxu0
  %2565 = vmatprep.mubr.f32.mxu0 0.0
  %2566 = vmatmul.mubr.f32.gmra.mxu0 %v2467
  %v2567 = vpop.f32.mrf.mxu0
  %v2568 = vadd.f32 0.0, %v2567
  %v2569 = vpop.f32.mrf.mxu0
  %2570 = vmatprep.mubr.f32.mxu0 0.0
  %2571 = vmatmul.mubr.f32.gmra.mxu0 %v2469
  %v2572 = vpop.f32.mrf.mxu0
  %v2573 = vadd.f32 0.0, %v2572
  %v2574 = vpop.f32.mrf.mxu0
  %2575 = vdwg.mxu0
  %v2576 = vmul.f32 %v2538, 0.01
  %v2577 = vmul.f32 %v2543, 0.01
  %v2578 = vmul.f32 %v2548, 0.01
  %v2579 = vmul.f32 %v2553, 0.01
  %v2580 = vmul.f32 %v2558, 0.01
  %v2581 = vmul.f32 %v2563, 0.01
  %v2582 = vmul.f32 %v2568, 0.01
  %v2583 = vmul.f32 %v2573, 0.01
  %v2584 = vsub.f32 %v2324, %v2576
  %v2585 = vsub.f32 %v2325, %v2577
  %v2586 = vsub.f32 %v2326, %v2578
  %v2587 = vsub.f32 %v2327, %v2579
  %v2588 = vsub.f32 %v2328, %v2580
  %v2589 = vsub.f32 %v2329, %v2581
  %v2590 = vsub.f32 %v2330, %v2582
  %v2591 = vsub.f32 %v2331, %v2583
  %v2592 = vld [vmem:[#allocation2 + $0x28] sm:$0xff]
  %v2593 = vld [vmem:[#allocation2 + $0x68] sm:$0xff]
  %v2594 = vsel %vm1366, %v2592, 0.0
  %2596 = vrot.lane.b32.xlu0 %v2593, 64
  %v2597 = vpop.permute.xlu0 %2596
  %v2599 = vsel %vm1366, 0.0, %v2597
  %v2600 = vsel %vm1366, %v2001, 0
  %v2602 = vsel %vm1366, %v2002, 0
  %v2604 = vsel %vm1366, %v2022, 0
  %v2606 = vsel %vm1366, %v2024, 0
  %2608 = vmatprep.subr.mxu0 0.0
  %2609 = vmatpush1.msra.mxu0 0.0
  %2610 = vmatprep.subr.mxu0 0.0
  %2611 = vmatpush1.msra.mxu0 0.0
  %2612 = vmatprep.subr.mxu0 0.0
  %2613 = vmatpush1.msra.mxu0 0.0
  %2614 = vmatprep.subr.mxu0 0.0
  %2615 = vmatpush1.msra.mxu0 0.0
  %2616 = vmatprep.subr.mxu0 0.0
  %2617 = vmatpush1.msra.mxu0 0.0
  %2618 = vmatprep.subr.mxu0 0.0
  %2619 = vmatpush1.msra.mxu0 0.0
  %2620 = vmatprep.subr.mxu0 0.0
  %2621 = vmatpush1.msra.mxu0 0.0
  %2622 = vmatprep.subr.mxu0 0.0
  %2623 = vmatpush1.msra.mxu0 0.0
  %2624 = vmatprep.subr.mxu0 0.0
  %2625 = vmatpush1.msra.mxu0 %v2591
  %2626 = vmatprep.subr.mxu0 0.0
  %2627 = vmatpush1.msra.mxu0 %v2590
  %2628 = vmatprep.subr.mxu0 0.0
  %2629 = vmatpush1.msra.mxu0 %v2589
  %2630 = vmatprep.subr.mxu0 0.0
  %2631 = vmatpush1.msra.mxu0 %v2588
  %2632 = vmatprep.subr.mxu0 0.0
  %2633 = vmatpush1.msra.mxu0 %v2587
  %2634 = vmatprep.subr.mxu0 0.0
  %2635 = vmatpush1.msra.mxu0 %v2586
  %2636 = vmatprep.subr.mxu0 0.0
  %2637 = vmatpush1.msra.mxu0 %v2585
  %2638 = vmatprep.subr.mxu0 0.0
  %2639 = vmatpush1.msra.mxu0 %v2584
  %2640 = vmatprep.subr.mxu0 0.0
  %2641 = vmatpush2.msra.mxu0 0.0
  %2642 = vmatprep.subr.mxu0 0.0
  %2643 = vmatpush2.msra.mxu0 0.0
  %2644 = vmatprep.subr.mxu0 0.0
  %2645 = vmatpush2.msra.mxu0 0.0
  %2646 = vmatprep.subr.mxu0 0.0
  %2647 = vmatpush2.msra.mxu0 0.0
  %2648 = vmatprep.subr.mxu0 0.0
  %2649 = vmatpush2.msra.mxu0 0.0
  %2650 = vmatprep.subr.mxu0 0.0
  %2651 = vmatpush2.msra.mxu0 0.0
  %2652 = vmatprep.subr.mxu0 0.0
  %2653 = vmatpush2.msra.mxu0 0.0
  %2654 = vmatprep.subr.mxu0 0.0
  %2655 = vmatpush2.msra.mxu0 0.0
  %2656 = vmatprep.subr.mxu0 0.0
  %2657 = vmatpush2.msra.mxu0 0.0
  %2658 = vmatprep.subr.mxu0 0.0
  %2659 = vmatpush2.msra.mxu0 0.0
  %2660 = vmatprep.subr.mxu0 0.0
  %2661 = vmatpush2.msra.mxu0 0.0
  %2662 = vmatprep.subr.mxu0 0.0
  %2663 = vmatpush2.msra.mxu0 0.0
  %2664 = vmatprep.subr.mxu0 0.0
  %2665 = vmatpush2.msra.mxu0 0.0
  %2666 = vmatprep.subr.mxu0 0.0
  %2667 = vmatpush2.msra.mxu0 0.0
  %2668 = vmatprep.subr.mxu0 0.0
  %2669 = vmatpush2.msra.mxu0 0.0
  %2670 = vmatprep.subr.mxu0 0.0
  %2671 = vmatpush2.msra.mxu0 0.0
  %2672 = vmatprep.mubr.f32.mxu0 0.0
  %2673 = vmatmul.mubr.f32.gmra.mxu0 %v2600
  %v2674 = vpop.f32.mrf.mxu0
  %v2675 = vadd.f32 0.0, %v2674
  %v2676 = vpop.f32.mrf.mxu0
  %2677 = vmatprep.mubr.f32.mxu0 0.0
  %2678 = vmatmul.mubr.f32.gmra.mxu0 %v2602
  %v2679 = vpop.f32.mrf.mxu0
  %v2680 = vadd.f32 0.0, %v2679
  %v2681 = vpop.f32.mrf.mxu0
  %2682 = vmatprep.mubr.f32.mxu0 0.0
  %2683 = vmatmul.mubr.f32.gmra.mxu0 %v2604
  %v2684 = vpop.f32.mrf.mxu0
  %v2685 = vadd.f32 0.0, %v2684
  %v2686 = vpop.f32.mrf.mxu0
  %2687 = vmatprep.mubr.f32.mxu0 0.0
  %2688 = vmatmul.mubr.f32.gmra.mxu0 %v2606
  %v2689 = vpop.f32.mrf.mxu0
  %v2690 = vadd.f32 0.0, %v2689
  %v2691 = vpop.f32.mrf.mxu0
  %2692 = vdwg.mxu0
  %v2693 = vadd.f32 %v2433, %v2675
  %v2694 = vadd.f32 %v2434, %v2680
  %v2695 = vmul.f32 %v2685, %v2078
  %v2696 = vmul.f32 %v2690, %v2079
  %v2697 = vsub.f32 %v2695, %v2594
  %v2698 = vsub.f32 %v2696, %v2599
  %2699 = vrot.lane.b32.xlu0 %v2053, 96
  %v2700 = vpop.permute.xlu0 %2699
  %2701 = vrot.lane.b32.xlu0 %v2054, 96
  %v2702 = vpop.permute.xlu0 %2701
  %2703 = vrot.lane.b32.xlu0 %v2055, 96
  %v2704 = vpop.permute.xlu0 %2703
  %2705 = vrot.lane.b32.xlu0 %v2056, 96
  %v2706 = vpop.permute.xlu0 %2705
  %2707 = vrot.lane.b32.xlu0 %v2057, 96
  %v2708 = vpop.permute.xlu0 %2707
  %2709 = vrot.lane.b32.xlu0 %v2058, 96
  %v2710 = vpop.permute.xlu0 %2709
  %2711 = vrot.lane.b32.xlu0 %v2059, 96
  %v2712 = vpop.permute.xlu0 %2711
  %2713 = vrot.lane.b32.xlu0 %v2060, 96
  %v2714 = vpop.permute.xlu0 %2713
  %v2715 = vsel %vm22, %v2700, 0
  %v2717 = vsel %vm22, %v2702, 0
  %v2719 = vsel %vm22, %v2704, 0
  %v2721 = vsel %vm22, %v2706, 0
  %v2723 = vsel %vm22, %v2708, 0
  %v2725 = vsel %vm22, %v2710, 0
  %v2727 = vsel %vm22, %v2712, 0
  %v2729 = vsel %vm22, %v2714, 0
  %2731 = vmatprep.subr.mxu0 0.0
  %2732 = vmatpush1.msra.mxu0 0.0
  %2733 = vmatprep.subr.mxu0 0.0
  %2734 = vmatpush1.msra.mxu0 0.0
  %2735 = vmatprep.subr.mxu0 0.0
  %2736 = vmatpush1.msra.mxu0 0.0
  %2737 = vmatprep.subr.mxu0 0.0
  %2738 = vmatpush1.msra.mxu0 0.0
  %2739 = vmatprep.subr.mxu0 0.0
  %2740 = vmatpush1.msra.mxu0 0.0
  %2741 = vmatprep.subr.mxu0 0.0
  %2742 = vmatpush1.msra.mxu0 0.0
  %2743 = vmatprep.subr.mxu0 0.0
  %2744 = vmatpush1.msra.mxu0 0.0
  %2745 = vmatprep.subr.mxu0 0.0
  %2746 = vmatpush1.msra.mxu0 0.0
  %2747 = vmatprep.subr.mxu0 0.0
  %2748 = vmatpush1.msra.mxu0 0.0
  %2749 = vmatprep.subr.mxu0 0.0
  %2750 = vmatpush1.msra.mxu0 0.0
  %2751 = vmatprep.subr.mxu0 0.0
  %2752 = vmatpush1.msra.mxu0 0.0
  %2753 = vmatprep.subr.mxu0 0.0
  %2754 = vmatpush1.msra.mxu0 0.0
  %2755 = vmatprep.subr.mxu0 0.0
  %2756 = vmatpush1.msra.mxu0 0.0
  %2757 = vmatprep.subr.mxu0 0.0
  %2758 = vmatpush1.msra.mxu0 0.0
  %2759 = vmatprep.subr.mxu0 0.0
  %2760 = vmatpush1.msra.mxu0 %v2698
  %2761 = vmatprep.subr.mxu0 0.0
  %2762 = vmatpush1.msra.mxu0 %v2697
  %2763 = vmatprep.subr.mxu0 0.0
  %2764 = vmatpush2.msra.mxu0 0.0
  %2765 = vmatprep.subr.mxu0 0.0
  %2766 = vmatpush2.msra.mxu0 0.0
  %2767 = vmatprep.subr.mxu0 0.0
  %2768 = vmatpush2.msra.mxu0 0.0
  %2769 = vmatprep.subr.mxu0 0.0
  %2770 = vmatpush2.msra.mxu0 0.0
  %2771 = vmatprep.subr.mxu0 0.0
  %2772 = vmatpush2.msra.mxu0 0.0
  %2773 = vmatprep.subr.mxu0 0.0
  %2774 = vmatpush2.msra.mxu0 0.0
  %2775 = vmatprep.subr.mxu0 0.0
  %2776 = vmatpush2.msra.mxu0 0.0
  %2777 = vmatprep.subr.mxu0 0.0
  %2778 = vmatpush2.msra.mxu0 0.0
  %2779 = vmatprep.subr.mxu0 0.0
  %2780 = vmatpush2.msra.mxu0 0.0
  %2781 = vmatprep.subr.mxu0 0.0
  %2782 = vmatpush2.msra.mxu0 0.0
  %2783 = vmatprep.subr.mxu0 0.0
  %2784 = vmatpush2.msra.mxu0 0.0
  %2785 = vmatprep.subr.mxu0 0.0
  %2786 = vmatpush2.msra.mxu0 0.0
  %2787 = vmatprep.subr.mxu0 0.0
  %2788 = vmatpush2.msra.mxu0 0.0
  %2789 = vmatprep.subr.mxu0 0.0
  %2790 = vmatpush2.msra.mxu0 0.0
  %2791 = vmatprep.subr.mxu0 0.0
  %2792 = vmatpush2.msra.mxu0 0.0
  %2793 = vmatprep.subr.mxu0 0.0
  %2794 = vmatpush2.msra.mxu0 0.0
  %2795 = vmatprep.mubr.f32.mxu0 0.0
  %2796 = vmatmul.mubr.f32.gmra.mxu0 %v2715
  %v2797 = vpop.f32.mrf.mxu0
  %v2798 = vadd.f32 0.0, %v2797
  %v2799 = vpop.f32.mrf.mxu0
  %2800 = vmatprep.mubr.f32.mxu0 0.0
  %2801 = vmatmul.mubr.f32.gmra.mxu0 %v2717
  %v2802 = vpop.f32.mrf.mxu0
  %v2803 = vadd.f32 0.0, %v2802
  %v2804 = vpop.f32.mrf.mxu0
  %2805 = vmatprep.mubr.f32.mxu0 0.0
  %2806 = vmatmul.mubr.f32.gmra.mxu0 %v2719
  %v2807 = vpop.f32.mrf.mxu0
  %v2808 = vadd.f32 0.0, %v2807
  %v2809 = vpop.f32.mrf.mxu0
  %2810 = vmatprep.mubr.f32.mxu0 0.0
  %2811 = vmatmul.mubr.f32.gmra.mxu0 %v2721
  %v2812 = vpop.f32.mrf.mxu0
  %v2813 = vadd.f32 0.0, %v2812
  %v2814 = vpop.f32.mrf.mxu0
  %2815 = vmatprep.mubr.f32.mxu0 0.0
  %2816 = vmatmul.mubr.f32.gmra.mxu0 %v2723
  %v2817 = vpop.f32.mrf.mxu0
  %v2818 = vadd.f32 0.0, %v2817
  %v2819 = vpop.f32.mrf.mxu0
  %2820 = vmatprep.mubr.f32.mxu0 0.0
  %2821 = vmatmul.mubr.f32.gmra.mxu0 %v2725
  %v2822 = vpop.f32.mrf.mxu0
  %v2823 = vadd.f32 0.0, %v2822
  %v2824 = vpop.f32.mrf.mxu0
  %2825 = vmatprep.mubr.f32.mxu0 0.0
  %2826 = vmatmul.mubr.f32.gmra.mxu0 %v2727
  %v2827 = vpop.f32.mrf.mxu0
  %v2828 = vadd.f32 0.0, %v2827
  %v2829 = vpop.f32.mrf.mxu0
  %2830 = vmatprep.mubr.f32.mxu0 0.0
  %2831 = vmatmul.mubr.f32.gmra.mxu0 %v2729
  %v2832 = vpop.f32.mrf.mxu0
  %v2833 = vadd.f32 0.0, %v2832
  %v2834 = vpop.f32.mrf.mxu0
  %2835 = vdwg.mxu0
  %v2836 = vmul.f32 %v2798, 0.01
  %v2837 = vmul.f32 %v2803, 0.01
  %v2838 = vmul.f32 %v2808, 0.01
  %v2839 = vmul.f32 %v2813, 0.01
  %v2840 = vmul.f32 %v2818, 0.01
  %v2841 = vmul.f32 %v2823, 0.01
  %v2842 = vmul.f32 %v2828, 0.01
  %v2843 = vmul.f32 %v2833, 0.01
  %v2844 = vsub.f32 %v2584, %v2836
  %v2845 = vsub.f32 %v2585, %v2837
  %v2846 = vsub.f32 %v2586, %v2838
  %v2847 = vsub.f32 %v2587, %v2839
  %v2848 = vsub.f32 %v2588, %v2840
  %v2849 = vsub.f32 %v2589, %v2841
  %v2850 = vsub.f32 %v2590, %v2842
  %v2851 = vsub.f32 %v2591, %v2843
  %v2852 = vsel %vm1366, %v2003, 0
  %v2854 = vsel %vm1366, %v2004, 0
  %v2856 = vsel %vm1366, %v2026, 0
  %v2858 = vsel %vm1366, %v2028, 0
  %2860 = vmatprep.subr.mxu0 0.0
  %2861 = vmatpush1.msra.mxu0 0.0
  %2862 = vmatprep.subr.mxu0 0.0
  %2863 = vmatpush1.msra.mxu0 0.0
  %2864 = vmatprep.subr.mxu0 0.0
  %2865 = vmatpush1.msra.mxu0 0.0
  %2866 = vmatprep.subr.mxu0 0.0
  %2867 = vmatpush1.msra.mxu0 0.0
  %2868 = vmatprep.subr.mxu0 0.0
  %2869 = vmatpush1.msra.mxu0 0.0
  %2870 = vmatprep.subr.mxu0 0.0
  %2871 = vmatpush1.msra.mxu0 0.0
  %2872 = vmatprep.subr.mxu0 0.0
  %2873 = vmatpush1.msra.mxu0 0.0
  %2874 = vmatprep.subr.mxu0 0.0
  %2875 = vmatpush1.msra.mxu0 0.0
  %2876 = vmatprep.subr.mxu0 0.0
  %2877 = vmatpush1.msra.mxu0 %v2851
  %2878 = vmatprep.subr.mxu0 0.0
  %2879 = vmatpush1.msra.mxu0 %v2850
  %2880 = vmatprep.subr.mxu0 0.0
  %2881 = vmatpush1.msra.mxu0 %v2849
  %2882 = vmatprep.subr.mxu0 0.0
  %2883 = vmatpush1.msra.mxu0 %v2848
  %2884 = vmatprep.subr.mxu0 0.0
  %2885 = vmatpush1.msra.mxu0 %v2847
  %2886 = vmatprep.subr.mxu0 0.0
  %2887 = vmatpush1.msra.mxu0 %v2846
  %2888 = vmatprep.subr.mxu0 0.0
  %2889 = vmatpush1.msra.mxu0 %v2845
  %2890 = vmatprep.subr.mxu0 0.0
  %2891 = vmatpush1.msra.mxu0 %v2844
  %2892 = vmatprep.subr.mxu0 0.0
  %2893 = vmatpush2.msra.mxu0 0.0
  %2894 = vmatprep.subr.mxu0 0.0
  %2895 = vmatpush2.msra.mxu0 0.0
  %2896 = vmatprep.subr.mxu0 0.0
  %2897 = vmatpush2.msra.mxu0 0.0
  %2898 = vmatprep.subr.mxu0 0.0
  %2899 = vmatpush2.msra.mxu0 0.0
  %2900 = vmatprep.subr.mxu0 0.0
  %2901 = vmatpush2.msra.mxu0 0.0
  %2902 = vmatprep.subr.mxu0 0.0
  %2903 = vmatpush2.msra.mxu0 0.0
  %2904 = vmatprep.subr.mxu0 0.0
  %2905 = vmatpush2.msra.mxu0 0.0
  %2906 = vmatprep.subr.mxu0 0.0
  %2907 = vmatpush2.msra.mxu0 0.0
  %2908 = vmatprep.subr.mxu0 0.0
  %2909 = vmatpush2.msra.mxu0 0.0
  %2910 = vmatprep.subr.mxu0 0.0
  %2911 = vmatpush2.msra.mxu0 0.0
  %2912 = vmatprep.subr.mxu0 0.0
  %2913 = vmatpush2.msra.mxu0 0.0
  %2914 = vmatprep.subr.mxu0 0.0
  %2915 = vmatpush2.msra.mxu0 0.0
  %2916 = vmatprep.subr.mxu0 0.0
  %2917 = vmatpush2.msra.mxu0 0.0
  %2918 = vmatprep.subr.mxu0 0.0
  %2919 = vmatpush2.msra.mxu0 0.0
  %2920 = vmatprep.subr.mxu0 0.0
  %2921 = vmatpush2.msra.mxu0 0.0
  %2922 = vmatprep.subr.mxu0 0.0
  %2923 = vmatpush2.msra.mxu0 0.0
  %2924 = vmatprep.mubr.f32.mxu0 0.0
  %2925 = vmatmul.mubr.f32.gmra.mxu0 %v2852
  %v2926 = vpop.f32.mrf.mxu0
  %v2927 = vadd.f32 0.0, %v2926
  %v2928 = vpop.f32.mrf.mxu0
  %2929 = vmatprep.mubr.f32.mxu0 0.0
  %2930 = vmatmul.mubr.f32.gmra.mxu0 %v2854
  %v2931 = vpop.f32.mrf.mxu0
  %v2932 = vadd.f32 0.0, %v2931
  %v2933 = vpop.f32.mrf.mxu0
  %2934 = vmatprep.mubr.f32.mxu0 0.0
  %2935 = vmatmul.mubr.f32.gmra.mxu0 %v2856
  %v2936 = vpop.f32.mrf.mxu0
  %v2937 = vpop.f32.mrf.mxu0
  %2938 = vmatprep.mubr.f32.mxu0 0.0
  %2939 = vmatmul.mubr.f32.gmra.mxu0 %v2858
  %v2940 = vpop.f32.mrf.mxu0
  %v2941 = vpop.f32.mrf.mxu0
  %2942 = vdwg.mxu0
  %v2943 = vadd.f32 %v2693, %v2927
  %v2944 = vadd.f32 %v2694, %v2932
  %v2945 = vsel %vm1366, %v2943, 0.0
  %v2946 = vrot.slane %v2945, 4
  %v2947 = vadd.f32 %v2945, %v2946
  %v2948 = vrot.slane %v2947, 2
  %v2949 = vadd.f32 %v2947, %v2948
  %v2950 = vrot.slane %v2949, 1
  %v2951 = vadd.f32 %v2949, %v2950
  %vm2952 = vcmask 1048064
  %v2953 = vsel %vm2952, %v2944, 0.0
  %v2954 = vrot.slane %v2953, 4
  %v2955 = vadd.f32 %v2953, %v2954
  %v2956 = vrot.slane %v2955, 2
  %v2957 = vadd.f32 %v2955, %v2956
  %v2958 = vrot.slane %v2957, 1
  %v2959 = vadd.f32 %v2957, %v2958
  %2961 = vrot.lane.b32.xlu0 %v2959, 64
  %v2962 = vpop.permute.xlu0 %2961
  %vm2964 = vcmask 1040384
  %v2965 = vsel %vm2964, %v2951, %v2962
  %vm2966 = vcmask 1041408
  %v2967 = vsel %vm2966, %v2965, 0.0
  %v2968 = vmul.f32 %v2967, 0.03125
  %v2969 = vld [vmem:[%s1 + $0x200] sm:$0xff]
  %v2970 = vld [vmem:[%s1 + $0x210] sm:$0xff]
  %v2971 = vld [vmem:[%s1 + $0x220] sm:$0xff]
  %v2972 = vld [vmem:[%s1 + $0x230] sm:$0xff]
  %v2973 = vld [vmem:[%s1 + $0x240] sm:$0xff]
  %v2974 = vld [vmem:[%s1 + $0x250] sm:$0xff]
  %v2975 = vld [vmem:[%s1 + $0x260] sm:$0xff]
  %v2976 = vld [vmem:[%s1 + $0x270] sm:$0xff]
  %v2977 = vld [vmem:[%s1 + $0x350] ss:$0 sm:$0xff]
  %v2979 = vsel %vm1366, %v2968, 0
  %2981 = vmatprep.subr.mxu0 0.0
  %2982 = vmatpush1.msra.mxu0 0.0
  %2983 = vmatprep.subr.mxu0 0.0
  %2984 = vmatpush1.msra.mxu0 0.0
  %2985 = vmatprep.subr.mxu0 0.0
  %2986 = vmatpush1.msra.mxu0 0.0
  %2987 = vmatprep.subr.mxu0 0.0
  %2988 = vmatpush1.msra.mxu0 0.0
  %2989 = vmatprep.subr.mxu0 0.0
  %2990 = vmatpush1.msra.mxu0 0.0
  %2991 = vmatprep.subr.mxu0 0.0
  %2992 = vmatpush1.msra.mxu0 0.0
  %2993 = vmatprep.subr.mxu0 0.0
  %2994 = vmatpush1.msra.mxu0 0.0
  %2995 = vmatprep.subr.mxu0 0.0
  %2996 = vmatpush1.msra.mxu0 0.0
  %2997 = vmatprep.subr.mxu0 0.0
  %2998 = vmatpush1.msra.mxu0 %v2976
  %2999 = vmatprep.subr.mxu0 0.0
  %3000 = vmatpush1.msra.mxu0 %v2975
  %3001 = vmatprep.subr.mxu0 0.0
  %3002 = vmatpush1.msra.mxu0 %v2974
  %3003 = vmatprep.subr.mxu0 0.0
  %3004 = vmatpush1.msra.mxu0 %v2973
  %3005 = vmatprep.subr.mxu0 0.0
  %3006 = vmatpush1.msra.mxu0 %v2972
  %3007 = vmatprep.subr.mxu0 0.0
  %3008 = vmatpush1.msra.mxu0 %v2971
  %3009 = vmatprep.subr.mxu0 0.0
  %3010 = vmatpush1.msra.mxu0 %v2970
  %3011 = vmatprep.subr.mxu0 0.0
  %3012 = vmatpush1.msra.mxu0 %v2969
  %3013 = vmatprep.subr.mxu0 0.0
  %3014 = vmatpush2.msra.mxu0 0.0
  %3015 = vmatprep.subr.mxu0 0.0
  %3016 = vmatpush2.msra.mxu0 0.0
  %3017 = vmatprep.subr.mxu0 0.0
  %3018 = vmatpush2.msra.mxu0 0.0
  %3019 = vmatprep.subr.mxu0 0.0
  %3020 = vmatpush2.msra.mxu0 0.0
  %3021 = vmatprep.subr.mxu0 0.0
  %3022 = vmatpush2.msra.mxu0 0.0
  %3023 = vmatprep.subr.mxu0 0.0
  %3024 = vmatpush2.msra.mxu0 0.0
  %3025 = vmatprep.subr.mxu0 0.0
  %3026 = vmatpush2.msra.mxu0 0.0
  %3027 = vmatprep.subr.mxu0 0.0
  %3028 = vmatpush2.msra.mxu0 0.0
  %3029 = vmatprep.subr.mxu0 0.0
  %3030 = vmatpush2.msra.mxu0 0.0
  %3031 = vmatprep.subr.mxu0 0.0
  %3032 = vmatpush2.msra.mxu0 0.0
  %3033 = vmatprep.subr.mxu0 0.0
  %3034 = vmatpush2.msra.mxu0 0.0
  %3035 = vmatprep.subr.mxu0 0.0
  %3036 = vmatpush2.msra.mxu0 0.0
  %3037 = vmatprep.subr.mxu0 0.0
  %3038 = vmatpush2.msra.mxu0 0.0
  %3039 = vmatprep.subr.mxu0 0.0
  %3040 = vmatpush2.msra.mxu0 0.0
  %3041 = vmatprep.subr.mxu0 0.0
  %3042 = vmatpush2.msra.mxu0 0.0
  %3043 = vmatprep.subr.mxu0 0.0
  %3044 = vmatpush2.msra.mxu0 0.0
  %3045 = vmatprep.mubr.f32.mxu0 0.0
  %3046 = vmatmul.mubr.f32.gmra.mxu0 %v2979
  %v3047 = vpop.f32.mrf.mxu0
  %v3048 = vadd.f32 %v2977, %v3047
  %v3049 = vpop.f32.mrf.mxu0
  %3050 = vdwg.mxu0
  %v3051 = vld [vmem:[%s1 + $0x351] ss:$0 sm:$0xff]
  %v3052 = vld [vmem:[%s1 + $0x352] ss:$0 sm:$0xff]
  %v3053 = vsel %vm1366, %v3048, 0.0
  %3054 = vadd.xlane.f32.xlu0 %v3053
  %v3055 = vpop.xlane.xlu0 %3054
  %v3056 = vmul.f32 %v3055, %v1391
  %v3057 = vsub.f32 %v3048, %v3056
  %v3058 = vmul.f32 %v3057, %v3057
  %v3059 = vsel %vm1366, %v3058, 0.0
  %3060 = vadd.xlane.f32.xlu0 %v3059
  %v3061 = vpop.xlane.xlu0 %3060
  %v3062 = vmul.f32 %v3061, %v1391
  %v3063 = vadd.f32 %v3062, 1e-05
  %v3064 = vrsqrt.pop %v3063
  %v3065 = vmul.f32 %v3057, %v3064
  %v3066 = vmul.f32 %v3065, %v3051
  %v3067 = vadd.f32 %v3066, %v3052
  %v3068 = vmul.f32 %v3067, 0.5
  %v3069 = vmul.f32 %v3067, 0.70710677
  %v3070 = verf.f32.pop %v3069
  %v3071 = vadd.f32 %v3070, 1.0
  %v3072 = vmul.f32 %v3068, %v3071
  %v3073 = vld [vmem:[%s1 + $0x280] sm:$0xff]
  %v3074 = vld [vmem:[%s1 + $0x290] sm:$0xff]
  %v3075 = vld [vmem:[%s1 + $0x2a0] sm:$0xff]
  %v3076 = vld [vmem:[%s1 + $0x2b0] sm:$0xff]
  %v3077 = vld [vmem:[%s1 + $0x2c0] sm:$0xff]
  %v3078 = vld [vmem:[%s1 + $0x2d0] sm:$0xff]
  %v3079 = vld [vmem:[%s1 + $0x2e0] sm:$0xff]
  %v3080 = vld [vmem:[%s1 + $0x2f0] sm:$0xff]
  %v3081 = vld [vmem:[%s1 + $0x353] ss:$0 sm:$0xff]
  %v3083 = vsel %vm1366, %v3072, 0
  %3085 = vmatprep.subr.mxu0 0.0
  %3086 = vmatpush1.msra.mxu0 0.0
  %3087 = vmatprep.subr.mxu0 0.0
  %3088 = vmatpush1.msra.mxu0 0.0
  %3089 = vmatprep.subr.mxu0 0.0
  %3090 = vmatpush1.msra.mxu0 0.0
  %3091 = vmatprep.subr.mxu0 0.0
  %3092 = vmatpush1.msra.mxu0 0.0
  %3093 = vmatprep.subr.mxu0 0.0
  %3094 = vmatpush1.msra.mxu0 0.0
  %3095 = vmatprep.subr.mxu0 0.0
  %3096 = vmatpush1.msra.mxu0 0.0
  %3097 = vmatprep.subr.mxu0 0.0
  %3098 = vmatpush1.msra.mxu0 0.0
  %3099 = vmatprep.subr.mxu0 0.0
  %3100 = vmatpush1.msra.mxu0 0.0
  %3101 = vmatprep.subr.mxu0 0.0
  %3102 = vmatpush1.msra.mxu0 %v3080
  %3103 = vmatprep.subr.mxu0 0.0
  %3104 = vmatpush1.msra.mxu0 %v3079
  %3105 = vmatprep.subr.mxu0 0.0
  %3106 = vmatpush1.msra.mxu0 %v3078
  %3107 = vmatprep.subr.mxu0 0.0
  %3108 = vmatpush1.msra.mxu0 %v3077
  %3109 = vmatprep.subr.mxu0 0.0
  %3110 = vmatpush1.msra.mxu0 %v3076
  %3111 = vmatprep.subr.mxu0 0.0
  %3112 = vmatpush1.msra.mxu0 %v3075
  %3113 = vmatprep.subr.mxu0 0.0
  %3114 = vmatpush1.msra.mxu0 %v3074
  %3115 = vmatprep.subr.mxu0 0.0
  %3116 = vmatpush1.msra.mxu0 %v3073
  %3117 = vmatprep.subr.mxu0 0.0
  %3118 = vmatpush2.msra.mxu0 0.0
  %3119 = vmatprep.subr.mxu0 0.0
  %3120 = vmatpush2.msra.mxu0 0.0
  %3121 = vmatprep.subr.mxu0 0.0
  %3122 = vmatpush2.msra.mxu0 0.0
  %3123 = vmatprep.subr.mxu0 0.0
  %3124 = vmatpush2.msra.mxu0 0.0
  %3125 = vmatprep.subr.mxu0 0.0
  %3126 = vmatpush2.msra.mxu0 0.0
  %3127 = vmatprep.subr.mxu0 0.0
  %3128 = vmatpush2.msra.mxu0 0.0
  %3129 = vmatprep.subr.mxu0 0.0
  %3130 = vmatpush2.msra.mxu0 0.0
  %3131 = vmatprep.subr.mxu0 0.0
  %3132 = vmatpush2.msra.mxu0 0.0
  %3133 = vmatprep.subr.mxu0 0.0
  %3134 = vmatpush2.msra.mxu0 0.0
  %3135 = vmatprep.subr.mxu0 0.0
  %3136 = vmatpush2.msra.mxu0 0.0
  %3137 = vmatprep.subr.mxu0 0.0
  %3138 = vmatpush2.msra.mxu0 0.0
  %3139 = vmatprep.subr.mxu0 0.0
  %3140 = vmatpush2.msra.mxu0 0.0
  %3141 = vmatprep.subr.mxu0 0.0
  %3142 = vmatpush2.msra.mxu0 0.0
  %3143 = vmatprep.subr.mxu0 0.0
  %3144 = vmatpush2.msra.mxu0 0.0
  %3145 = vmatprep.subr.mxu0 0.0
  %3146 = vmatpush2.msra.mxu0 0.0
  %3147 = vmatprep.subr.mxu0 0.0
  %3148 = vmatpush2.msra.mxu0 0.0
  %3149 = vmatprep.mubr.f32.mxu0 0.0
  %3150 = vmatmul.mubr.f32.gmra.mxu0 %v3083
  %v3151 = vpop.f32.mrf.mxu0
  %v3152 = vadd.f32 %v3081, %v3151
  %v3153 = vpop.f32.mrf.mxu0
  %3154 = vdwg.mxu0
  %v3155 = vld [vmem:[%s1 + $0x354] ss:$0 sm:$0xff]
  %v3156 = vld [vmem:[%s1 + $0x355] ss:$0 sm:$0xff]
  %v3157 = vsel %vm1234, %v3152, 0.0
  %3158 = vadd.xlane.f32.xlu0 %v3157
  %v3159 = vpop.xlane.xlu0 %3158
  %v3160 = vrcp.pop 32.0
  %v3161 = vmul.f32 %v3159, %v3160
  %v3162 = vsub.f32 %v3152, %v3161
  %v3163 = vmul.f32 %v3162, %v3162
  %v3164 = vsel %vm1234, %v3163, 0.0
  %3165 = vadd.xlane.f32.xlu0 %v3164
  %v3166 = vpop.xlane.xlu0 %3165
  %v3167 = vmul.f32 %v3166, %v3160
  %v3168 = vadd.f32 %v3167, 1e-05
  %v3169 = vrsqrt.pop %v3168
  %v3170 = vmul.f32 %v3162, %v3169
  %v3171 = vmul.f32 %v3170, %v3155
  %v3172 = vadd.f32 %v3171, %v3156
  %v3173 = vmul.f32 %v3172, 0.5
  %v3174 = vmul.f32 %v3172, 0.70710677
  %v3175 = verf.f32.pop %v3174
  %v3176 = vadd.f32 %v3175, 1.0
  %v3177 = vmul.f32 %v3173, %v3176
  %v3178 = vld [vmem:[%s1 + $0x300] sm:$0xff]
  %v3179 = vld [vmem:[%s1 + $0x310] sm:$0xff]
  %v3180 = vld [vmem:[%s1 + $0x320] sm:$0xff]
  %v3181 = vld [vmem:[%s1 + $0x330] sm:$0xff]
  %v3182 = vld [vmem:[%s1 + $0x356] ss:$0 sm:$0xff]
  %v3184 = vsel %vm1234, %v3177, 0
  %3186 = vmatprep.subr.mxu0 0.0
  %3187 = vmatpush1.msra.mxu0 0.0
  %3188 = vmatprep.subr.mxu0 0.0
  %3189 = vmatpush1.msra.mxu0 0.0
  %3190 = vmatprep.subr.mxu0 0.0
  %3191 = vmatpush1.msra.mxu0 0.0
  %3192 = vmatprep.subr.mxu0 0.0
  %3193 = vmatpush1.msra.mxu0 0.0
  %3194 = vmatprep.subr.mxu0 0.0
  %3195 = vmatpush1.msra.mxu0 0.0
  %3196 = vmatprep.subr.mxu0 0.0
  %3197 = vmatpush1.msra.mxu0 0.0
  %3198 = vmatprep.subr.mxu0 0.0
  %3199 = vmatpush1.msra.mxu0 0.0
  %3200 = vmatprep.subr.mxu0 0.0
  %3201 = vmatpush1.msra.mxu0 0.0
  %3202 = vmatprep.subr.mxu0 0.0
  %3203 = vmatpush1.msra.mxu0 0.0
  %3204 = vmatprep.subr.mxu0 0.0
  %3205 = vmatpush1.msra.mxu0 0.0
  %3206 = vmatprep.subr.mxu0 0.0
  %3207 = vmatpush1.msra.mxu0 0.0
  %3208 = vmatprep.subr.mxu0 0.0
  %3209 = vmatpush1.msra.mxu0 0.0
  %3210 = vmatprep.subr.mxu0 0.0
  %3211 = vmatpush1.msra.mxu0 %v3181
  %3212 = vmatprep.subr.mxu0 0.0
  %3213 = vmatpush1.msra.mxu0 %v3180
  %3214 = vmatprep.subr.mxu0 0.0
  %3215 = vmatpush1.msra.mxu0 %v3179
  %3216 = vmatprep.subr.mxu0 0.0
  %3217 = vmatpush1.msra.mxu0 %v3178
  %3218 = vmatprep.subr.mxu0 0.0
  %3219 = vmatpush2.msra.mxu0 0.0
  %3220 = vmatprep.subr.mxu0 0.0
  %3221 = vmatpush2.msra.mxu0 0.0
  %3222 = vmatprep.subr.mxu0 0.0
  %3223 = vmatpush2.msra.mxu0 0.0
  %3224 = vmatprep.subr.mxu0 0.0
  %3225 = vmatpush2.msra.mxu0 0.0
  %3226 = vmatprep.subr.mxu0 0.0
  %3227 = vmatpush2.msra.mxu0 0.0
  %3228 = vmatprep.subr.mxu0 0.0
  %3229 = vmatpush2.msra.mxu0 0.0
  %3230 = vmatprep.subr.mxu0 0.0
  %3231 = vmatpush2.msra.mxu0 0.0
  %3232 = vmatprep.subr.mxu0 0.0
  %3233 = vmatpush2.msra.mxu0 0.0
  %3234 = vmatprep.subr.mxu0 0.0
  %3235 = vmatpush2.msra.mxu0 0.0
  %3236 = vmatprep.subr.mxu0 0.0
  %3237 = vmatpush2.msra.mxu0 0.0
  %3238 = vmatprep.subr.mxu0 0.0
  %3239 = vmatpush2.msra.mxu0 0.0
  %3240 = vmatprep.subr.mxu0 0.0
  %3241 = vmatpush2.msra.mxu0 0.0
  %3242 = vmatprep.subr.mxu0 0.0
  %3243 = vmatpush2.msra.mxu0 0.0
  %3244 = vmatprep.subr.mxu0 0.0
  %3245 = vmatpush2.msra.mxu0 0.0
  %3246 = vmatprep.subr.mxu0 0.0
  %3247 = vmatpush2.msra.mxu0 0.0
  %3248 = vmatprep.subr.mxu0 0.0
  %3249 = vmatpush2.msra.mxu0 0.0
  %3250 = vmatprep.mubr.f32.mxu0 0.0
  %3251 = vmatmul.mubr.f32.gmra.mxu0 %v3184
  %v3252 = vpop.f32.mrf.mxu0
  %v3253 = vadd.f32 %v3182, %v3252
  %v3254 = vpop.f32.mrf.mxu0
  %3255 = vdwg.mxu0
  %3256 = vst [vmem:[%s2] sm:$0xff] %v3253
  // Predicated region
  $region10: #{titans_eeg_forward.1} parent=0 // pred_check
    _
  $region11: #{titans_eeg_forward.1} parent=0 // pred_check_branch
    %3258 = sbr.rel (0) target = $region13
  $region12: #{titans_eeg_forward.1} parent=0 // pred_region
    _
  $region13: #{titans_eeg_forward.1} parent=0 // pred_fallthru
    _
  // Predicated region
  $region14: #{titans_eeg_forward.1} parent=0 // pred_check
    _
  $region15: #{titans_eeg_forward.1} parent=0 // pred_check_branch
    %3260 = sbr.rel (0) target = $region17
  $region16: #{titans_eeg_forward.1} parent=0 // pred_region
    _
  $region17: #{titans_eeg_forward.1} parent=0 // pred_fallthru
    _

</llo_original>
